<compile_context>
chip_gen: v5e
topology: v5e:2x2
jax: 0.10.0
libtpu: 0.0.40
codegen_flags: <defaults>
</compile_context>

<pallas_src>
import functools

import jax
import jax.numpy as jnp
import numpy as np
from jax.experimental import pallas as pl
from jax.experimental.pallas import tpu as pltpu

BN_EPS = 1e-5


def _pad_offset(W):
    """Sublane-aligned offset of the image inside the row-padded scratch."""
    return ((W + 1 + 7) // 8) * 8


def _pick_hw_tile(hw, target=512):
    """Largest multiple-of-8 divisor of hw that is <= target (else hw)."""
    if hw <= target:
        return hw
    cand = [t for t in range(8, target + 1, 8) if hw % t == 0]
    return max(cand) if cand else hw


# ----------------------------------------------------------------------------
# Pallas kernels
# ----------------------------------------------------------------------------
def conv12_kernel(x_ref, w1_ref, s1_ref, b1_ref, w2_ref, s2_ref, b2_ref,
                  h2_ref, hsum_ref, pad_ref, *, H, W):
    """Fused conv1(1x1)+bn1+relu + conv2(3x3,pad 1)+bn2+relu for one batch image.

    x_ref:  [HW, C0] bf16      w1_ref: [C0, P] bf16     w2_ref: [9, P, P] bf16
    s*/b*:  [1, P]  f32 (folded BN)
    h2_ref: [HW, P] bf16 (out) hsum_ref: [1, P] f32 (spatial sum of h2, out)
    pad_ref: VMEM scratch [2*off + HW, P] bf16
    """
    HW = H * W
    off = _pad_offset(W)

    # conv1: 1x1 conv == channel matmul, bf16 on the MXU, f32 accumulation.
    h1 = jnp.dot(x_ref[...], w1_ref[...], preferred_element_type=jnp.float32)
    h1 = jnp.maximum(h1 * s1_ref[...] + b1_ref[...], 0.0)

    # Stage h1 into a zero-padded, row-flattened scratch so every 3x3 tap is a
    # contiguous row-shifted slice (streaming "im2col", nothing hits HBM).
    pad_ref[...] = jnp.zeros_like(pad_ref)
    pad_ref[off:off + HW, :] = h1.astype(pad_ref.dtype)

    # Column index for masking taps that would wrap across a row boundary.
    col = jax.lax.broadcasted_iota(jnp.int32, (HW, 1), 0) % W

    # conv2: 3x3, stride 1, pad 1 == 9 shifted 1x1 matmuls accumulated in f32.
    acc = jnp.zeros_like(h1)
    for t in range(9):
        dy, dx = t // 3, t % 3                      # {0,1,2} -> offsets {-1,0,+1}
        start = off + (dy - 1) * W + (dx - 1)
        patch = pad_ref[start:start + HW, :]
        if dx == 0:       # looks one pixel left: column 0 must be zero
            patch = jnp.where(col > 0, patch, 0)
        elif dx == 2:     # looks one pixel right: column W-1 must be zero
            patch = jnp.where(col < W - 1, patch, 0)
        acc = acc + jnp.dot(patch, w2_ref[t], preferred_element_type=jnp.float32)

    h2 = jnp.maximum(acc * s2_ref[...] + b2_ref[...], 0.0)
    h2_ref[...] = h2.astype(h2_ref.dtype)
    # Spatial sum for the (hoisted) ECA global-average-pool.
    hsum_ref[...] = jnp.sum(h2, axis=0, keepdims=True)


def conv3_att_res_kernel(h2_ref, w3_ref, s3_ref, b3_ref, att_ref, x_ref, o_ref):
    """conv3(1x1)+bn3, ECA rescale, residual add, relu on one [tile, *] block.

    h2_ref: [tile, P] bf16   w3_ref: [P, C3] bf16   s3/b3: [1, C3] f32
    att_ref: [1, C3] f32 (per-batch attention)   x_ref: [tile, C3] f32 (residual)
    """
    h3 = jnp.dot(h2_ref[...], w3_ref[...], preferred_element_type=jnp.float32)
    h3 = h3 * s3_ref[...] + b3_ref[...]
    o_ref[...] = jnp.maximum(h3 * att_ref[...] + x_ref[...], 0.0)


# ----------------------------------------------------------------------------
# pallas_call wrappers
# ----------------------------------------------------------------------------
def conv1_conv2(x, w1, s1, b1, w2, s2, b2, H, W):
    """x: [B, HW, C0] bf16 -> (h2 [B, HW, P] bf16, hsum [B, 1, P] f32)."""
    B, HW, C0 = x.shape
    P = w1.shape[1]
    off = _pad_offset(W)

    flops = B * (2 * HW * C0 * P + 9 * 2 * HW * P * P)
    bytes_acc = (x.size * 2 + w1.size * 2 + w2.size * 2
                 + 4 * 4 * P                      # folded BN scale/bias
                 + B * HW * P * 2 + B * P * 4)    # h2 out (bf16) + hsum out

    return pl.pallas_call(
        functools.partial(conv12_kernel, H=H, W=W),
        out_shape=(jax.ShapeDtypeStruct((B, HW, P), jnp.bfloat16),
                   jax.ShapeDtypeStruct((B, 1, P), jnp.float32)),
        grid=(B,),
        in_specs=[
            pl.BlockSpec((None, HW, C0), lambda b: (b, 0, 0)),
            pl.BlockSpec((C0, P), lambda b: (0, 0)),
            pl.BlockSpec((1, P), lambda b: (0, 0)),
            pl.BlockSpec((1, P), lambda b: (0, 0)),
            pl.BlockSpec((9, P, P), lambda b: (0, 0, 0)),
            pl.BlockSpec((1, P), lambda b: (0, 0)),
            pl.BlockSpec((1, P), lambda b: (0, 0)),
        ],
        out_specs=(pl.BlockSpec((None, HW, P), lambda b: (b, 0, 0)),
                   pl.BlockSpec((None, 1, P), lambda b: (b, 0, 0))),
        scratch_shapes=[pltpu.VMEM((2 * off + HW, P), jnp.bfloat16)],
        compiler_params=pltpu.CompilerParams(dimension_semantics=("parallel",)),
        cost_estimate=pl.CostEstimate(flops=flops, transcendentals=0,
                                      bytes_accessed=bytes_acc),
    )(x, w1, s1.reshape(1, P), b1.reshape(1, P), w2,
      s2.reshape(1, P), b2.reshape(1, P))


def conv3_att_residual(h2_flat, w3, s3, b3, att, x_flat, B, HW, tile):
    """h2_flat: [B*HW, P] bf16, x_flat: [B*HW, C3] f32, att: [B, 1, C3] f32."""
    M, P = h2_flat.shape
    C3 = w3.shape[1]
    nt = HW // tile

    flops = 2 * M * P * C3
    bytes_acc = (h2_flat.size * 2 + w3.size * 2 + (2 * C3 + att.size) * 4
                 + x_flat.size * 4 + M * C3 * 4)

    return pl.pallas_call(
        conv3_att_res_kernel,
        out_shape=jax.ShapeDtypeStruct((M, C3), jnp.float32),
        grid=(B, nt),
        in_specs=[
            pl.BlockSpec((tile, P), lambda b, j: (b * nt + j, 0)),
            pl.BlockSpec((P, C3), lambda b, j: (0, 0)),
            pl.BlockSpec((1, C3), lambda b, j: (0, 0)),
            pl.BlockSpec((1, C3), lambda b, j: (0, 0)),
            pl.BlockSpec((None, 1, C3), lambda b, j: (b, 0, 0)),
            pl.BlockSpec((tile, C3), lambda b, j: (b * nt + j, 0)),
        ],
        out_specs=pl.BlockSpec((tile, C3), lambda b, j: (b * nt + j, 0)),
        compiler_params=pltpu.CompilerParams(
            dimension_semantics=("parallel", "parallel")),
        cost_estimate=pl.CostEstimate(flops=flops, transcendentals=0,
                                      bytes_accessed=bytes_acc),
    )(h2_flat, w3, s3.reshape(1, C3), b3.reshape(1, C3), att, x_flat)


# ----------------------------------------------------------------------------
# Parameter setup (deterministic, synthetic) + forward wrapper
# ----------------------------------------------------------------------------
def fold_bn(gamma, beta, mean, var):
    s = gamma / jnp.sqrt(var + BN_EPS)
    return s, beta - mean * s


def eca_kernel_size(channel, gamma=2, b=1):
    k = int(abs((np.log2(channel) + b) / gamma))
    return k if k % 2 else k + 1


def make_params(inplanes, planes, key):
    C3 = planes * 4
    ks = jax.random.split(key, 16)
    p = {}
    # conv weights in PyTorch OIHW layout
    p["w1"] = jax.random.normal(ks[0], (planes, inplanes, 1, 1), jnp.float32) * 0.1
    p["w2"] = jax.random.normal(ks[1], (planes, planes, 3, 3), jnp.float32) * 0.1
    p["w3"] = jax.random.normal(ks[2], (C3, planes, 1, 1), jnp.float32) * 0.1
    # batchnorm (inference) params
    for idx, c in zip((1, 2, 3), (planes, planes, C3)):
        p[f"g{idx}"] = 1.0 + 0.1 * jax.random.normal(ks[2 + idx], (c,), jnp.float32)
        p[f"b{idx}"] = 0.1 * jax.random.normal(ks[5 + idx], (c,), jnp.float32)
        p[f"m{idx}"] = 0.1 * jax.random.normal(ks[8 + idx], (c,), jnp.float32)
        p[f"v{idx}"] = jax.random.uniform(ks[11 + idx], (c,), jnp.float32, 0.5, 1.5)
    # ECA conv1d weight: shape [1, 1, k]
    k = eca_kernel_size(C3)
    p["wec"] = jax.random.normal(ks[15], (1, 1, k), jnp.float32) * 0.5
    return p


def bottleneck_forward(x_nchw, params, planes, hw_tile_target=512):
    """Bottleneck forward (stride=1, downsample=None => inplanes == 4*planes)."""
    B, C0, H, W = x_nchw.shape
    P, C3 = planes, planes * 4
    assert C0 == C3, "no downsample: residual requires inplanes == planes*4"
    HW = H * W

    # NCHW -> NHWC, flatten spatial.
    x_nhwc = jnp.transpose(x_nchw, (0, 2, 3, 1)).astype(jnp.float32)
    x_flat = x_nhwc.reshape(B, HW, C0)

    # Fold BN into per-channel scale/bias.
    s1, b1 = fold_bn(params["g1"], params["b1"], params["m1"], params["v1"])
    s2, b2 = fold_bn(params["g2"], params["b2"], params["m2"], params["v2"])
    s3, b3 = fold_bn(params["g3"], params["b3"], params["m3"], params["v3"])

    # Channels-last matmul weights.
    w1 = params["w1"][:, :, 0, 0].T                                    # [C0, P]
    w2 = jnp.transpose(params["w2"], (2, 3, 1, 0)).reshape(9, P, P)    # [(ky,kx), cin, cout]
    w3 = params["w3"][:, :, 0, 0].T                                    # [P, C3]

    # bf16 inputs for the MXU; accumulation stays f32 inside the kernels.
    xb = x_flat.astype(jnp.bfloat16)
    w1b, w2b, w3b = (w.astype(jnp.bfloat16) for w in (w1, w2, w3))

    # Kernel 1: fused conv1 + conv2 (+ spatial sum of h2), per-batch grid.
    h2, hsum = conv1_conv2(xb, w1b, s1, b1, w2b, s2, b2, H, W)

    # ECA attention, hoisted out of the heavy kernels via linearity of the mean:
    # mean_hw(bn3(conv3(h2))) == (mean_hw(h2) @ w3) * s3 + b3.  Tiny [B, C3] work.
    mean_h2 = hsum[:, 0, :] / float(HW)                                # [B, P]
    avg3 = mean_h2 @ w3 * s3 + b3                                      # [B, C3]
    wec = params["wec"][0, 0]
    k = wec.shape[0]
    pad = k // 2
    ap = jnp.pad(avg3, ((0, 0), (pad, pad)))
    att = jax.nn.sigmoid(sum(wec[t] * ap[:, t:t + C3] for t in range(k)))  # [B, C3]

    # Kernel 2: conv3 + bn3 + ECA rescale + residual + relu, tiled over B*HW.
    tile = _pick_hw_tile(HW, hw_tile_target)
    out_flat = conv3_att_residual(
        h2.reshape(B * HW, P), w3b, s3, b3,
        att.reshape(B, 1, C3).astype(jnp.float32),
        x_flat.reshape(B * HW, C3), B, HW, tile)

    return jnp.transpose(out_flat.reshape(B, H, W, C3), (0, 3, 1, 2))  # NCHW


# ----------------------------------------------------------------------------
# Pure-JAX reference (mirrors the PyTorch module, NCHW, f32) for verification
# ----------------------------------------------------------------------------
def reference_forward(x, p, planes):
    def conv2d(inp, w, padding=0):
        return jax.lax.conv_general_dilated(
            inp, w, (1, 1), [(padding, padding)] * 2,
            dimension_numbers=("NCHW", "OIHW", "NCHW"))

    def bn(inp, g, b, m, v):
        return (g[None, :, None, None] * (inp - m[None, :, None, None])
                / jnp.sqrt(v[None, :, None, None] + BN_EPS)
                + b[None, :, None, None])

    relu = lambda t: jnp.maximum(t, 0.0)
    out = relu(bn(conv2d(x, p["w1"]), p["g1"], p["b1"], p["m1"], p["v1"]))
    out = relu(bn(conv2d(out, p["w2"], padding=1), p["g2"], p["b2"], p["m2"], p["v2"]))
    out = bn(conv2d(out, p["w3"]), p["g3"], p["b3"], p["m3"], p["v3"])
    # ECA
    avg = out.mean(axis=(2, 3))[:, None, :]                            # [B, 1, C]
    k = p["wec"].shape[-1]
    att = jax.lax.conv_general_dilated(
        avg, p["wec"], (1,), [(k // 2, k // 2)],
        dimension_numbers=("NCH", "OIH", "NCH"))
    att = jax.nn.sigmoid(att)[:, 0, :][:, :, None, None]
    out = out * att + x
    return relu(out)


# ----------------------------------------------------------------------------
if __name__ == "__main__":
    planes = 8
    inplanes = planes * 4            # stride=1, downsample=None
    B, H, W = 2, 16, 16

    root = jax.random.PRNGKey(0)
    k_x, k_p = jax.random.split(root)
    x = jax.random.normal(k_x, (B, inplanes, H, W), jnp.float32)
    params = make_params(inplanes, planes, k_p)

    fwd = jax.jit(functools.partial(bottleneck_forward, planes=planes,
                                    hw_tile_target=128))
    out = jax.block_until_ready(fwd(x, params))

    ref = jax.block_until_ready(reference_forward(x, params, planes))
    assert out.shape == (B, inplanes, H, W)
    # bf16 MXU inputs (f32 accumulation): compare with a matching tolerance.
    np.testing.assert_allclose(np.asarray(out), np.asarray(ref),
                               rtol=2e-2, atol=2e-2)
    print("KERNEL_OK")
</pallas_src>

<mosaic_0001>
module attributes {stable_mosaic.version = 11 : i64} {
  func.func @conv12_kernel(%arg0: i32, %arg1: memref<1x256x32xbf16, #tpu.memory_space<vmem>>, %arg2: memref<32x8xbf16, #tpu.memory_space<vmem>>, %arg3: memref<1x8xf32, #tpu.memory_space<vmem>>, %arg4: memref<1x8xf32, #tpu.memory_space<vmem>>, %arg5: memref<9x8x8xbf16, #tpu.memory_space<vmem>>, %arg6: memref<1x8xf32, #tpu.memory_space<vmem>>, %arg7: memref<1x8xf32, #tpu.memory_space<vmem>>, %arg8: memref<1x256x8xbf16, #tpu.memory_space<vmem>>, %arg9: memref<1x1x8xf32, #tpu.memory_space<vmem>>, %arg10: memref<304x8xbf16, #tpu.memory_space<vmem>>) attributes {dimension_semantics = [#tpu.dimension_semantics<parallel>], iteration_bounds = array<i64: 2>, scalar_prefetch = 0 : i64, scratch_operands = 1 : i64, tpu.core_type = #tpu.core_type<tc>, window_params = [{transform_indices = @transform_0, window_bounds = array<i64: 1, 256, 32>}, {pipeline_mode = #tpu.pipeline_mode<synchronous>, transform_indices = @transform_1, window_bounds = array<i64: 32, 8>}, {pipeline_mode = #tpu.pipeline_mode<synchronous>, transform_indices = @transform_2, window_bounds = array<i64: 1, 8>}, {pipeline_mode = #tpu.pipeline_mode<synchronous>, transform_indices = @transform_3, window_bounds = array<i64: 1, 8>}, {pipeline_mode = #tpu.pipeline_mode<synchronous>, transform_indices = @transform_4, window_bounds = array<i64: 9, 8, 8>}, {pipeline_mode = #tpu.pipeline_mode<synchronous>, transform_indices = @transform_5, window_bounds = array<i64: 1, 8>}, {pipeline_mode = #tpu.pipeline_mode<synchronous>, transform_indices = @transform_6, window_bounds = array<i64: 1, 8>}, {transform_indices = @transform_7, window_bounds = array<i64: 1, 256, 8>}, {transform_indices = @transform_8, window_bounds = array<i64: 1, 1, 8>}]} {
    %c0 = arith.constant 0 : index
    %c0_0 = arith.constant 0 : index
    %c0_1 = arith.constant 0 : index
    %0 = vector.load %arg1[%c0, %c0_0, %c0_1] : memref<1x256x32xbf16, #tpu.memory_space<vmem>>, vector<1x256x32xbf16>
    %1 = vector.shape_cast %0 : vector<1x256x32xbf16> to vector<256x32xbf16>
    %c0_2 = arith.constant 0 : index
    %c0_3 = arith.constant 0 : index
    %2 = vector.load %arg2[%c0_2, %c0_3] : memref<32x8xbf16, #tpu.memory_space<vmem>>, vector<32x8xbf16>
    %cst = arith.constant dense<0.000000e+00> : vector<256x8xf32>
    %3 = tpu.matmul %1, %2, %cst {dimension_numbers = #tpu.dot_dimension_numbers<[1], [0], [0], [1], [0, 0, 1, 1], [], []>} : vector<256x32xbf16>, vector<32x8xbf16>, vector<256x8xf32> -> vector<256x8xf32>
    %c0_4 = arith.constant 0 : index
    %c0_5 = arith.constant 0 : index
    %4 = vector.load %arg3[%c0_4, %c0_5] : memref<1x8xf32, #tpu.memory_space<vmem>>, vector<1x8xf32>
    %5 = vector.broadcast %4 : vector<1x8xf32> to vector<256x8xf32>
    %6 = arith.mulf %3, %5 : vector<256x8xf32>
    %c0_6 = arith.constant 0 : index
    %c0_7 = arith.constant 0 : index
    %7 = vector.load %arg4[%c0_6, %c0_7] : memref<1x8xf32, #tpu.memory_space<vmem>>, vector<1x8xf32>
    %8 = vector.broadcast %7 : vector<1x8xf32> to vector<256x8xf32>
    %9 = arith.addf %6, %8 : vector<256x8xf32>
    %cst_8 = arith.constant 0.000000e+00 : f32
    %10 = vector.broadcast %cst_8 : f32 to vector<256x8xf32>
    %11 = arith.maximumf %9, %10 : vector<256x8xf32>
    %cst_9 = arith.constant 0.000000e+00 : bf16
    %12 = vector.broadcast %cst_9 : bf16 to vector<304x8xbf16>
    %c0_10 = arith.constant 0 : index
    %c0_11 = arith.constant 0 : index
    %13 = vector.load %arg10[%c0_10, %c0_11] : memref<304x8xbf16, #tpu.memory_space<vmem>>, vector<304x8xbf16>
    tpu.vector_store %arg10[%c0_10, %c0_11], %12 {strides = array<i32>} : memref<304x8xbf16, #tpu.memory_space<vmem>>, vector<304x8xbf16>,
    %14 = arith.truncf %11 : vector<256x8xf32> to vector<256x8xbf16>
    %c24 = arith.constant 24 : index
    %c0_12 = arith.constant 0 : index
    %15 = vector.load %arg10[%c24, %c0_12] : memref<304x8xbf16, #tpu.memory_space<vmem>>, vector<256x8xbf16>
    tpu.vector_store %arg10[%c24, %c0_12], %14 {strides = array<i32>} : memref<304x8xbf16, #tpu.memory_space<vmem>>, vector<256x8xbf16>,
    %16 = tpu.iota {dimensions = array<i32: 0>} : vector<256x1xi32>
    %c16_i32 = arith.constant 16 : i32
    %c0_i32 = arith.constant 0 : i32
    %17 = arith.cmpi eq, %c16_i32, %c0_i32 : i32
    %c1_i32 = arith.constant 1 : i32
    %18 = arith.select %17, %c1_i32, %c16_i32 : i32
    %19 = vector.broadcast %18 : i32 to vector<256x1xi32>
    %20 = arith.remsi %16, %19 : vector<256x1xi32>
    %c0_i32_13 = arith.constant 0 : i32
    %21 = vector.broadcast %c0_i32_13 : i32 to vector<256x1xi32>
    %22 = arith.cmpi ne, %20, %21 : vector<256x1xi32>
    %c0_i32_14 = arith.constant 0 : i32
    %23 = vector.broadcast %c0_i32_14 : i32 to vector<256x1xi32>
    %24 = arith.cmpi slt, %20, %23 : vector<256x1xi32>
    %c0_i32_15 = arith.constant 0 : i32
    %25 = arith.cmpi slt, %18, %c0_i32_15 : i32
    %26 = vector.broadcast %25 : i1 to vector<256x1xi1>
    %27 = vector.broadcast %26 : vector<256x1xi1> to vector<256x1xi1>
    %28 = arith.xori %24, %27 : vector<256x1xi1>
    %29 = arith.andi %28, %22 : vector<256x1xi1>
    %30 = vector.broadcast %18 : i32 to vector<256x1xi32>
    %31 = arith.addi %20, %30 : vector<256x1xi32>
    %32 = arith.select %29, %31, %20 : vector<256x1xi1>, vector<256x1xi32>
    %cst_16 = arith.constant 0.000000e+00 : f32
    %33 = vector.broadcast %cst_16 : f32 to vector<256x8xf32>
    %c7 = arith.constant 7 : index
    %c0_17 = arith.constant 0 : index
    %34 = vector.load %arg10[%c7, %c0_17] : memref<304x8xbf16, #tpu.memory_space<vmem>>, vector<256x8xbf16>
    %c0_i32_18 = arith.constant 0 : i32
    %35 = vector.broadcast %c0_i32_18 : i32 to vector<256x1xi32>
    %36 = arith.cmpi sgt, %32, %35 : vector<256x1xi32>
    %c0_i32_19 = arith.constant 0 : i32
    %37 = arith.sitofp %c0_i32_19 : i32 to bf16
    %38 = vector.shape_cast %36 : vector<256x1xi1> to vector<256x1xi1>
    %39 = vector.broadcast %38 : vector<256x1xi1> to vector<256x8xi1>
    %40 = vector.broadcast %37 : bf16 to vector<256x8xbf16>
    %41 = arith.select %39, %34, %40 : vector<256x8xi1>, vector<256x8xbf16>
    %c0_20 = arith.constant 0 : index
    %c0_21 = arith.constant 0 : index
    %c0_22 = arith.constant 0 : index
    %42 = vector.load %arg5[%c0_20, %c0_21, %c0_22] : memref<9x8x8xbf16, #tpu.memory_space<vmem>>, vector<1x8x8xbf16>
    %43 = vector.shape_cast %42 : vector<1x8x8xbf16> to vector<8x8xbf16>
    %cst_23 = arith.constant dense<0.000000e+00> : vector<256x8xf32>
    %44 = tpu.matmul %41, %43, %cst_23 {dimension_numbers = #tpu.dot_dimension_numbers<[1], [0], [0], [1], [0, 0, 1, 1], [], []>} : vector<256x8xbf16>, vector<8x8xbf16>, vector<256x8xf32> -> vector<256x8xf32>
    %45 = arith.addf %33, %44 : vector<256x8xf32>
    %c8 = arith.constant 8 : index
    %c0_24 = arith.constant 0 : index
    %46 = vector.load %arg10[%c8, %c0_24] : memref<304x8xbf16, #tpu.memory_space<vmem>>, vector<256x8xbf16>
    %c1 = arith.constant 1 : index
    %c0_25 = arith.constant 0 : index
    %c0_26 = arith.constant 0 : index
    %47 = vector.load %arg5[%c1, %c0_25, %c0_26] : memref<9x8x8xbf16, #tpu.memory_space<vmem>>, vector<1x8x8xbf16>
    %48 = vector.shape_cast %47 : vector<1x8x8xbf16> to vector<8x8xbf16>
    %cst_27 = arith.constant dense<0.000000e+00> : vector<256x8xf32>
    %49 = tpu.matmul %46, %48, %cst_27 {dimension_numbers = #tpu.dot_dimension_numbers<[1], [0], [0], [1], [0, 0, 1, 1], [], []>} : vector<256x8xbf16>, vector<8x8xbf16>, vector<256x8xf32> -> vector<256x8xf32>
    %50 = arith.addf %45, %49 : vector<256x8xf32>
    %c9 = arith.constant 9 : index
    %c0_28 = arith.constant 0 : index
    %51 = vector.load %arg10[%c9, %c0_28] : memref<304x8xbf16, #tpu.memory_space<vmem>>, vector<256x8xbf16>
    %c15_i32 = arith.constant 15 : i32
    %52 = vector.broadcast %c15_i32 : i32 to vector<256x1xi32>
    %53 = arith.cmpi slt, %32, %52 : vector<256x1xi32>
    %c0_i32_29 = arith.constant 0 : i32
    %54 = arith.sitofp %c0_i32_29 : i32 to bf16
    %55 = vector.shape_cast %53 : vector<256x1xi1> to vector<256x1xi1>
    %56 = vector.broadcast %55 : vector<256x1xi1> to vector<256x8xi1>
    %57 = vector.broadcast %54 : bf16 to vector<256x8xbf16>
    %58 = arith.select %56, %51, %57 : vector<256x8xi1>, vector<256x8xbf16>
    %c2 = arith.constant 2 : index
    %c0_30 = arith.constant 0 : index
    %c0_31 = arith.constant 0 : index
    %59 = vector.load %arg5[%c2, %c0_30, %c0_31] : memref<9x8x8xbf16, #tpu.memory_space<vmem>>, vector<1x8x8xbf16>
    %60 = vector.shape_cast %59 : vector<1x8x8xbf16> to vector<8x8xbf16>
    %cst_32 = arith.constant dense<0.000000e+00> : vector<256x8xf32>
    %61 = tpu.matmul %58, %60, %cst_32 {dimension_numbers = #tpu.dot_dimension_numbers<[1], [0], [0], [1], [0, 0, 1, 1], [], []>} : vector<256x8xbf16>, vector<8x8xbf16>, vector<256x8xf32> -> vector<256x8xf32>
    %62 = arith.addf %50, %61 : vector<256x8xf32>
    %c23 = arith.constant 23 : index
    %c0_33 = arith.constant 0 : index
    %63 = vector.load %arg10[%c23, %c0_33] : memref<304x8xbf16, #tpu.memory_space<vmem>>, vector<256x8xbf16>
    %c0_i32_34 = arith.constant 0 : i32
    %64 = vector.broadcast %c0_i32_34 : i32 to vector<256x1xi32>
    %65 = arith.cmpi sgt, %32, %64 : vector<256x1xi32>
    %c0_i32_35 = arith.constant 0 : i32
    %66 = arith.sitofp %c0_i32_35 : i32 to bf16
    %67 = vector.shape_cast %65 : vector<256x1xi1> to vector<256x1xi1>
    %68 = vector.broadcast %67 : vector<256x1xi1> to vector<256x8xi1>
    %69 = vector.broadcast %66 : bf16 to vector<256x8xbf16>
    %70 = arith.select %68, %63, %69 : vector<256x8xi1>, vector<256x8xbf16>
    %c3 = arith.constant 3 : index
    %c0_36 = arith.constant 0 : index
    %c0_37 = arith.constant 0 : index
    %71 = vector.load %arg5[%c3, %c0_36, %c0_37] : memref<9x8x8xbf16, #tpu.memory_space<vmem>>, vector<1x8x8xbf16>
    %72 = vector.shape_cast %71 : vector<1x8x8xbf16> to vector<8x8xbf16>
    %cst_38 = arith.constant dense<0.000000e+00> : vector<256x8xf32>
    %73 = tpu.matmul %70, %72, %cst_38 {dimension_numbers = #tpu.dot_dimension_numbers<[1], [0], [0], [1], [0, 0, 1, 1], [], []>} : vector<256x8xbf16>, vector<8x8xbf16>, vector<256x8xf32> -> vector<256x8xf32>
    %74 = arith.addf %62, %73 : vector<256x8xf32>
    %c24_39 = arith.constant 24 : index
    %c0_40 = arith.constant 0 : index
    %75 = vector.load %arg10[%c24_39, %c0_40] : memref<304x8xbf16, #tpu.memory_space<vmem>>, vector<256x8xbf16>
    %c4 = arith.constant 4 : index
    %c0_41 = arith.constant 0 : index
    %c0_42 = arith.constant 0 : index
    %76 = vector.load %arg5[%c4, %c0_41, %c0_42] : memref<9x8x8xbf16, #tpu.memory_space<vmem>>, vector<1x8x8xbf16>
    %77 = vector.shape_cast %76 : vector<1x8x8xbf16> to vector<8x8xbf16>
    %cst_43 = arith.constant dense<0.000000e+00> : vector<256x8xf32>
    %78 = tpu.matmul %75, %77, %cst_43 {dimension_numbers = #tpu.dot_dimension_numbers<[1], [0], [0], [1], [0, 0, 1, 1], [], []>} : vector<256x8xbf16>, vector<8x8xbf16>, vector<256x8xf32> -> vector<256x8xf32>
    %79 = arith.addf %74, %78 : vector<256x8xf32>
    %c25 = arith.constant 25 : index
    %c0_44 = arith.constant 0 : index
    %80 = vector.load %arg10[%c25, %c0_44] : memref<304x8xbf16, #tpu.memory_space<vmem>>, vector<256x8xbf16>
    %c15_i32_45 = arith.constant 15 : i32
    %81 = vector.broadcast %c15_i32_45 : i32 to vector<256x1xi32>
    %82 = arith.cmpi slt, %32, %81 : vector<256x1xi32>
    %c0_i32_46 = arith.constant 0 : i32
    %83 = arith.sitofp %c0_i32_46 : i32 to bf16
    %84 = vector.shape_cast %82 : vector<256x1xi1> to vector<256x1xi1>
    %85 = vector.broadcast %84 : vector<256x1xi1> to vector<256x8xi1>
    %86 = vector.broadcast %83 : bf16 to vector<256x8xbf16>
    %87 = arith.select %85, %80, %86 : vector<256x8xi1>, vector<256x8xbf16>
    %c5 = arith.constant 5 : index
    %c0_47 = arith.constant 0 : index
    %c0_48 = arith.constant 0 : index
    %88 = vector.load %arg5[%c5, %c0_47, %c0_48] : memref<9x8x8xbf16, #tpu.memory_space<vmem>>, vector<1x8x8xbf16>
    %89 = vector.shape_cast %88 : vector<1x8x8xbf16> to vector<8x8xbf16>
    %cst_49 = arith.constant dense<0.000000e+00> : vector<256x8xf32>
    %90 = tpu.matmul %87, %89, %cst_49 {dimension_numbers = #tpu.dot_dimension_numbers<[1], [0], [0], [1], [0, 0, 1, 1], [], []>} : vector<256x8xbf16>, vector<8x8xbf16>, vector<256x8xf32> -> vector<256x8xf32>
    %91 = arith.addf %79, %90 : vector<256x8xf32>
    %c39 = arith.constant 39 : index
    %c0_50 = arith.constant 0 : index
    %92 = vector.load %arg10[%c39, %c0_50] : memref<304x8xbf16, #tpu.memory_space<vmem>>, vector<256x8xbf16>
    %c0_i32_51 = arith.constant 0 : i32
    %93 = vector.broadcast %c0_i32_51 : i32 to vector<256x1xi32>
    %94 = arith.cmpi sgt, %32, %93 : vector<256x1xi32>
    %c0_i32_52 = arith.constant 0 : i32
    %95 = arith.sitofp %c0_i32_52 : i32 to bf16
    %96 = vector.shape_cast %94 : vector<256x1xi1> to vector<256x1xi1>
    %97 = vector.broadcast %96 : vector<256x1xi1> to vector<256x8xi1>
    %98 = vector.broadcast %95 : bf16 to vector<256x8xbf16>
    %99 = arith.select %97, %92, %98 : vector<256x8xi1>, vector<256x8xbf16>
    %c6 = arith.constant 6 : index
    %c0_53 = arith.constant 0 : index
    %c0_54 = arith.constant 0 : index
    %100 = vector.load %arg5[%c6, %c0_53, %c0_54] : memref<9x8x8xbf16, #tpu.memory_space<vmem>>, vector<1x8x8xbf16>
    %101 = vector.shape_cast %100 : vector<1x8x8xbf16> to vector<8x8xbf16>
    %cst_55 = arith.constant dense<0.000000e+00> : vector<256x8xf32>
    %102 = tpu.matmul %99, %101, %cst_55 {dimension_numbers = #tpu.dot_dimension_numbers<[1], [0], [0], [1], [0, 0, 1, 1], [], []>} : vector<256x8xbf16>, vector<8x8xbf16>, vector<256x8xf32> -> vector<256x8xf32>
    %103 = arith.addf %91, %102 : vector<256x8xf32>
    %c40 = arith.constant 40 : index
    %c0_56 = arith.constant 0 : index
    %104 = vector.load %arg10[%c40, %c0_56] : memref<304x8xbf16, #tpu.memory_space<vmem>>, vector<256x8xbf16>
    %c7_57 = arith.constant 7 : index
    %c0_58 = arith.constant 0 : index
    %c0_59 = arith.constant 0 : index
    %105 = vector.load %arg5[%c7_57, %c0_58, %c0_59] : memref<9x8x8xbf16, #tpu.memory_space<vmem>>, vector<1x8x8xbf16>
    %106 = vector.shape_cast %105 : vector<1x8x8xbf16> to vector<8x8xbf16>
    %cst_60 = arith.constant dense<0.000000e+00> : vector<256x8xf32>
    %107 = tpu.matmul %104, %106, %cst_60 {dimension_numbers = #tpu.dot_dimension_numbers<[1], [0], [0], [1], [0, 0, 1, 1], [], []>} : vector<256x8xbf16>, vector<8x8xbf16>, vector<256x8xf32> -> vector<256x8xf32>
    %108 = arith.addf %103, %107 : vector<256x8xf32>
    %c41 = arith.constant 41 : index
    %c0_61 = arith.constant 0 : index
    %109 = vector.load %arg10[%c41, %c0_61] : memref<304x8xbf16, #tpu.memory_space<vmem>>, vector<256x8xbf16>
    %c15_i32_62 = arith.constant 15 : i32
    %110 = vector.broadcast %c15_i32_62 : i32 to vector<256x1xi32>
    %111 = arith.cmpi slt, %32, %110 : vector<256x1xi32>
    %c0_i32_63 = arith.constant 0 : i32
    %112 = arith.sitofp %c0_i32_63 : i32 to bf16
    %113 = vector.shape_cast %111 : vector<256x1xi1> to vector<256x1xi1>
    %114 = vector.broadcast %113 : vector<256x1xi1> to vector<256x8xi1>
    %115 = vector.broadcast %112 : bf16 to vector<256x8xbf16>
    %116 = arith.select %114, %109, %115 : vector<256x8xi1>, vector<256x8xbf16>
    %c8_64 = arith.constant 8 : index
    %c0_65 = arith.constant 0 : index
    %c0_66 = arith.constant 0 : index
    %117 = vector.load %arg5[%c8_64, %c0_65, %c0_66] : memref<9x8x8xbf16, #tpu.memory_space<vmem>>, vector<1x8x8xbf16>
    %118 = vector.shape_cast %117 : vector<1x8x8xbf16> to vector<8x8xbf16>
    %cst_67 = arith.constant dense<0.000000e+00> : vector<256x8xf32>
    %119 = tpu.matmul %116, %118, %cst_67 {dimension_numbers = #tpu.dot_dimension_numbers<[1], [0], [0], [1], [0, 0, 1, 1], [], []>} : vector<256x8xbf16>, vector<8x8xbf16>, vector<256x8xf32> -> vector<256x8xf32>
    %120 = arith.addf %108, %119 : vector<256x8xf32>
    %c0_68 = arith.constant 0 : index
    %c0_69 = arith.constant 0 : index
    %121 = vector.load %arg6[%c0_68, %c0_69] : memref<1x8xf32, #tpu.memory_space<vmem>>, vector<1x8xf32>
    %122 = vector.broadcast %121 : vector<1x8xf32> to vector<256x8xf32>
    %123 = arith.mulf %120, %122 : vector<256x8xf32>
    %c0_70 = arith.constant 0 : index
    %c0_71 = arith.constant 0 : index
    %124 = vector.load %arg7[%c0_70, %c0_71] : memref<1x8xf32, #tpu.memory_space<vmem>>, vector<1x8xf32>
    %125 = vector.broadcast %124 : vector<1x8xf32> to vector<256x8xf32>
    %126 = arith.addf %123, %125 : vector<256x8xf32>
    %cst_72 = arith.constant 0.000000e+00 : f32
    %127 = vector.broadcast %cst_72 : f32 to vector<256x8xf32>
    %128 = arith.maximumf %126, %127 : vector<256x8xf32>
    %129 = arith.truncf %128 : vector<256x8xf32> to vector<256x8xbf16>
    %c0_73 = arith.constant 0 : index
    %c0_74 = arith.constant 0 : index
    %c0_75 = arith.constant 0 : index
    %130 = vector.load %arg8[%c0_73, %c0_74, %c0_75] : memref<1x256x8xbf16, #tpu.memory_space<vmem>>, vector<1x256x8xbf16>
    %131 = vector.shape_cast %130 : vector<1x256x8xbf16> to vector<256x8xbf16>
    %132 = vector.shape_cast %129 : vector<256x8xbf16> to vector<1x256x8xbf16>
    tpu.vector_store %arg8[%c0_73, %c0_74, %c0_75], %132 {strides = array<i32>} : memref<1x256x8xbf16, #tpu.memory_space<vmem>>, vector<1x256x8xbf16>,
    %cst_76 = arith.constant dense<0.000000e+00> : vector<8xf32>
    %133 = vector.multi_reduction <add>, %128, %cst_76 [0] : vector<256x8xf32> to vector<8xf32>
    %134 = vector.shape_cast %133 : vector<8xf32> to vector<1x8xf32>
    %c0_77 = arith.constant 0 : index
    %c0_78 = arith.constant 0 : index
    %c0_79 = arith.constant 0 : index
    %135 = vector.load %arg9[%c0_77, %c0_78, %c0_79] : memref<1x1x8xf32, #tpu.memory_space<vmem>>, vector<1x1x8xf32>
    %136 = vector.shape_cast %135 : vector<1x1x8xf32> to vector<1x8xf32>
    %137 = vector.shape_cast %134 : vector<1x8xf32> to vector<1x1x8xf32>
    tpu.vector_store %arg9[%c0_77, %c0_78, %c0_79], %137 {strides = array<i32>} : memref<1x1x8xf32, #tpu.memory_space<vmem>>, vector<1x1x8xf32>,
    return
  }
  func.func @transform_0(%arg0: i32) -> (i32, i32, i32) {
    %c0_i32 = arith.constant 0 : i32
    %c0_i32_0 = arith.constant 0 : i32
    %c0_i32_1 = arith.constant 0 : i32
    return %arg0, %c0_i32, %c0_i32_0 : i32, i32, i32
  }
  func.func @transform_1(%arg0: i32) -> (i32, i32) {
    %c0_i32 = arith.constant 0 : i32
    %c0_i32_0 = arith.constant 0 : i32
    %c0_i32_1 = arith.constant 0 : i32
    return %c0_i32, %c0_i32_0 : i32, i32
  }
  func.func @transform_2(%arg0: i32) -> (i32, i32) {
    %c0_i32 = arith.constant 0 : i32
    %c0_i32_0 = arith.constant 0 : i32
    %c0_i32_1 = arith.constant 0 : i32
    return %c0_i32, %c0_i32_0 : i32, i32
  }
  func.func @transform_3(%arg0: i32) -> (i32, i32) {
    %c0_i32 = arith.constant 0 : i32
    %c0_i32_0 = arith.constant 0 : i32
    %c0_i32_1 = arith.constant 0 : i32
    return %c0_i32, %c0_i32_0 : i32, i32
  }
  func.func @transform_4(%arg0: i32) -> (i32, i32, i32) {
    %c0_i32 = arith.constant 0 : i32
    %c0_i32_0 = arith.constant 0 : i32
    %c0_i32_1 = arith.constant 0 : i32
    %c0_i32_2 = arith.constant 0 : i32
    return %c0_i32, %c0_i32_0, %c0_i32_1 : i32, i32, i32
  }
  func.func @transform_5(%arg0: i32) -> (i32, i32) {
    %c0_i32 = arith.constant 0 : i32
    %c0_i32_0 = arith.constant 0 : i32
    %c0_i32_1 = arith.constant 0 : i32
    return %c0_i32, %c0_i32_0 : i32, i32
  }
  func.func @transform_6(%arg0: i32) -> (i32, i32) {
    %c0_i32 = arith.constant 0 : i32
    %c0_i32_0 = arith.constant 0 : i32
    %c0_i32_1 = arith.constant 0 : i32
    return %c0_i32, %c0_i32_0 : i32, i32
  }
  func.func @transform_7(%arg0: i32) -> (i32, i32, i32) {
    %c0_i32 = arith.constant 0 : i32
    %c0_i32_0 = arith.constant 0 : i32
    %c0_i32_1 = arith.constant 0 : i32
    return %arg0, %c0_i32, %c0_i32_0 : i32, i32, i32
  }
  func.func @transform_8(%arg0: i32) -> (i32, i32, i32) {
    %c0_i32 = arith.constant 0 : i32
    %c0_i32_0 = arith.constant 0 : i32
    %c0_i32_1 = arith.constant 0 : i32
    return %arg0, %c0_i32, %c0_i32_0 : i32, i32, i32
  }
}

module attributes {stable_mosaic.version = 11 : i64} {
  func.func @conv3_att_res_kernel(%arg0: i32, %arg1: i32, %arg2: memref<128x8xbf16, #tpu.memory_space<vmem>>, %arg3: memref<8x32xbf16, #tpu.memory_space<vmem>>, %arg4: memref<1x32xf32, #tpu.memory_space<vmem>>, %arg5: memref<1x32xf32, #tpu.memory_space<vmem>>, %arg6: memref<1x1x32xf32, #tpu.memory_space<vmem>>, %arg7: memref<128x32xf32, #tpu.memory_space<vmem>>, %arg8: memref<128x32xf32, #tpu.memory_space<vmem>>) attributes {dimension_semantics = [#tpu.dimension_semantics<parallel>, #tpu.dimension_semantics<parallel>], iteration_bounds = array<i64: 2, 2>, scalar_prefetch = 0 : i64, scratch_operands = 0 : i64, tpu.core_type = #tpu.core_type<tc>, window_params = [{transform_indices = @transform_0, window_bounds = array<i64: 128, 8>}, {pipeline_mode = #tpu.pipeline_mode<synchronous>, transform_indices = @transform_1, window_bounds = array<i64: 8, 32>}, {pipeline_mode = #tpu.pipeline_mode<synchronous>, transform_indices = @transform_2, window_bounds = array<i64: 1, 32>}, {pipeline_mode = #tpu.pipeline_mode<synchronous>, transform_indices = @transform_3, window_bounds = array<i64: 1, 32>}, {transform_indices = @transform_4, window_bounds = array<i64: 1, 1, 32>}, {transform_indices = @transform_5, window_bounds = array<i64: 128, 32>}, {transform_indices = @transform_6, window_bounds = array<i64: 128, 32>}]} {
    %c0 = arith.constant 0 : index
    %c0_0 = arith.constant 0 : index
    %0 = vector.load %arg2[%c0, %c0_0] : memref<128x8xbf16, #tpu.memory_space<vmem>>, vector<128x8xbf16>
    %c0_1 = arith.constant 0 : index
    %c0_2 = arith.constant 0 : index
    %1 = vector.load %arg3[%c0_1, %c0_2] : memref<8x32xbf16, #tpu.memory_space<vmem>>, vector<8x32xbf16>
    %cst = arith.constant dense<0.000000e+00> : vector<128x32xf32>
    %2 = tpu.matmul %0, %1, %cst {dimension_numbers = #tpu.dot_dimension_numbers<[1], [0], [0], [1], [0, 0, 1, 1], [], []>} : vector<128x8xbf16>, vector<8x32xbf16>, vector<128x32xf32> -> vector<128x32xf32>
    %c0_3 = arith.constant 0 : index
    %c0_4 = arith.constant 0 : index
    %3 = vector.load %arg4[%c0_3, %c0_4] : memref<1x32xf32, #tpu.memory_space<vmem>>, vector<1x32xf32>
    %4 = vector.broadcast %3 : vector<1x32xf32> to vector<128x32xf32>
    %5 = arith.mulf %2, %4 : vector<128x32xf32>
    %c0_5 = arith.constant 0 : index
    %c0_6 = arith.constant 0 : index
    %6 = vector.load %arg5[%c0_5, %c0_6] : memref<1x32xf32, #tpu.memory_space<vmem>>, vector<1x32xf32>
    %7 = vector.broadcast %6 : vector<1x32xf32> to vector<128x32xf32>
    %8 = arith.addf %5, %7 : vector<128x32xf32>
    %c0_7 = arith.constant 0 : index
    %c0_8 = arith.constant 0 : index
    %c0_9 = arith.constant 0 : index
    %9 = vector.load %arg6[%c0_7, %c0_8, %c0_9] : memref<1x1x32xf32, #tpu.memory_space<vmem>>, vector<1x1x32xf32>
    %10 = vector.shape_cast %9 : vector<1x1x32xf32> to vector<1x32xf32>
    %11 = vector.broadcast %10 : vector<1x32xf32> to vector<128x32xf32>
    %12 = arith.mulf %8, %11 : vector<128x32xf32>
    %c0_10 = arith.constant 0 : index
    %c0_11 = arith.constant 0 : index
    %13 = vector.load %arg7[%c0_10, %c0_11] : memref<128x32xf32, #tpu.memory_space<vmem>>, vector<128x32xf32>
    %14 = arith.addf %12, %13 : vector<128x32xf32>
    %cst_12 = arith.constant 0.000000e+00 : f32
    %15 = vector.broadcast %cst_12 : f32 to vector<128x32xf32>
    %16 = arith.maximumf %14, %15 : vector<128x32xf32>
    %c0_13 = arith.constant 0 : index
    %c0_14 = arith.constant 0 : index
    %17 = vector.load %arg8[%c0_13, %c0_14] : memref<128x32xf32, #tpu.memory_space<vmem>>, vector<128x32xf32>
    tpu.vector_store %arg8[%c0_13, %c0_14], %16 {strides = array<i32>} : memref<128x32xf32, #tpu.memory_space<vmem>>, vector<128x32xf32>,
    return
  }
  func.func @transform_0(%arg0: i32, %arg1: i32) -> (i32, i32) {
    %c2_i32 = arith.constant 2 : i32
    %0 = arith.muli %arg0, %c2_i32 : i32
    %1 = arith.addi %0, %arg1 : i32
    %c0_i32 = arith.constant 0 : i32
    %c0_i32_0 = arith.constant 0 : i32
    return %1, %c0_i32 : i32, i32
  }
  func.func @transform_1(%arg0: i32, %arg1: i32) -> (i32, i32) {
    %c0_i32 = arith.constant 0 : i32
    %c0_i32_0 = arith.constant 0 : i32
    %c0_i32_1 = arith.constant 0 : i32
    return %c0_i32, %c0_i32_0 : i32, i32
  }
  func.func @transform_2(%arg0: i32, %arg1: i32) -> (i32, i32) {
    %c0_i32 = arith.constant 0 : i32
    %c0_i32_0 = arith.constant 0 : i32
    %c0_i32_1 = arith.constant 0 : i32
    return %c0_i32, %c0_i32_0 : i32, i32
  }
  func.func @transform_3(%arg0: i32, %arg1: i32) -> (i32, i32) {
    %c0_i32 = arith.constant 0 : i32
    %c0_i32_0 = arith.constant 0 : i32
    %c0_i32_1 = arith.constant 0 : i32
    return %c0_i32, %c0_i32_0 : i32, i32
  }
  func.func @transform_4(%arg0: i32, %arg1: i32) -> (i32, i32, i32) {
    %c0_i32 = arith.constant 0 : i32
    %c0_i32_0 = arith.constant 0 : i32
    %c0_i32_1 = arith.constant 0 : i32
    return %arg0, %c0_i32, %c0_i32_0 : i32, i32, i32
  }
  func.func @transform_5(%arg0: i32, %arg1: i32) -> (i32, i32) {
    %c2_i32 = arith.constant 2 : i32
    %0 = arith.muli %arg0, %c2_i32 : i32
    %1 = arith.addi %0, %arg1 : i32
    %c0_i32 = arith.constant 0 : i32
    %c0_i32_0 = arith.constant 0 : i32
    return %1, %c0_i32 : i32, i32
  }
  func.func @transform_6(%arg0: i32, %arg1: i32) -> (i32, i32) {
    %c2_i32 = arith.constant 2 : i32
    %0 = arith.muli %arg0, %c2_i32 : i32
    %1 = arith.addi %0, %arg1 : i32
    %c0_i32 = arith.constant 0 : i32
    %c0_i32_0 = arith.constant 0 : i32
    return %1, %c0_i32 : i32, i32
  }
}

</mosaic_0001>

<llo_original>
// kernel: bottleneck_forward.3
$region0: #{bottleneck_forward.3}
  #allocation0 [shape = 'u32[]', space=smem, size = 0x4, offset = 0x4, fixed_abs, tag = 'smem constant byte address 0x4 - core index']
  #allocation1 [shape = 'u32[72,128]{1,0:T(1,128)}', space=vmem, size = 0x9000, scoped, tag = 'internal scratch']
  %s0 = inlined_call_operand.vmem [shape: bf16[512,8], index: 0, kind: input, shape index: {}]
  %s1 = inlined_call_operand.vmem [shape: bf16[8,32], index: 1, kind: input, shape index: {}]
  %s2 = inlined_call_operand.vmem [shape: f32[1,32], index: 2, kind: input, shape index: {}]
  %s3 = inlined_call_operand.vmem [shape: f32[1,32], index: 3, kind: input, shape index: {}]
  %s4 = inlined_call_operand.vmem [shape: f32[2,1,32], index: 4, kind: input, shape index: {}]
  %s5 = inlined_call_operand.vmem [shape: f32[512,32], index: 5, kind: input, shape index: {}]
  %s6 = inlined_call_operand.hbm [shape: f32[512,32], index: 6, kind: output, shape index: {}]
  %s7 = sld [smem:[#allocation0]]
  $region57: #{bottleneck_forward.3} parent=0
    _
  %s9 = ssub.s32 1, %s7
  %s10 = scalar_select 0, %s9, %s7
  $region1: #{bottleneck_forward.3} parent=0
    #allocation2 [shape = 'u8[131072]{0}', space=vmem, size = 0x20000, scoped, tag = 'output window, operand 0']
    #allocation3 [shape = 's32[2]{0}', space=sflag, size = 0x8, scoped, tag = 'scoped memory for bottleneck_forward.3']
    %11 = vsyncpa [#allocation3], 0
    %s12 = scalar_lea.sflag [#allocation3], 1
    %13 = vsyncpa %s12, 0
    loop: start=0, step=1, limit=6
    $region2: #{bottleneck_forward.3} parent=1 // loop_pre_header
      _
    $region3: #{bottleneck_forward.3} parent=1 // loop_header
      %s15 = sphi 0, %s19
      %p16 = scmp.ge.s32.totalorder %s15, 6
      %s22 = sphi 0, %s34
      %s23 = sphi 0, %s30
      %s24 = sphi 0, %s22
      %s25 = sphi 0, %s23
      %s26 = sphi 0, %s24
      %s27 = sphi 0, %s25
      %s41 = sphi 0, %s43
      %s44 = sphi 0, %s41
      %s45 = sphi 0, %s44
      %s61 = sphi 0, %s45
      %s65 = sphi 0, %s65
      %s67 = sphi 0, %s65
      %s68 = sphi 0, %s67
      %s82 = sphi 0, %s68
      %s86 = sphi 0, %s86
      %s88 = sphi 0, %s86
      %s89 = sphi 0, %s88
      %s103 = sphi 0, %s89
      %s107 = sphi 0, %s107
      %s109 = sphi 0, %s107
      %s110 = sphi 0, %s109
      %s124 = sphi 0, %s110
      %s130 = sphi 0, %s132
      %s133 = sphi 0, %s130
      %s134 = sphi 0, %s133
      %s150 = sphi 0, %s134
      %s160 = sphi 0, %s162
      %s163 = sphi 0, %s160
      %s164 = sphi 0, %s163
      %s180 = sphi 0, %s164
      %s190 = sphi 0, %s192
      %s193 = sphi 0, %s190
      %s194 = sphi 0, %s193
      %s210 = sphi 0, %s194
    $region4: #{bottleneck_forward.3} parent=1 // loop_header_branch
      %18 = sbr.rel (%p16) target = $region8
    $region5: #{bottleneck_forward.3} parent=1 // loop_body
      %s20 = ssub.s32 %s15, 1
      %s21 = ssub.s32 %s15, 2
      %s28 = sadd.s32 1, %s23
      %p29 = scmp.ge.s32.totalorder %s28, 2
      %s30 = scalar_select %p29, 0, %s28
      %s31 = sadd.s32 1, %s22
      %s32 = scalar_select %p29, %s31, %s22
      %p33 = scmp.ge.s32.totalorder %s32, 2
      %s34 = scalar_select %p33, 0, %s32
      %s35 = smul.u32 %s22, 2
      %s36 = sadd.s32 %s35, %s23
      %s37 = smul.u32 %s34, 2
      %s38 = sadd.s32 %s37, %s30
      %s39 = ssub.s32 %s36, %s38
      %p40 = scmp.eq.s32.totalorder %s39, 0
      %s42 = sadd.s32 %s41, 1
      %s43 = scalar_select %p40, %s41, %s42
      %p46 = pneg %p40
      %p47 = scmp.eq.s32.totalorder %s15, 3
      %p48 = por %p46, %p47
      %p49 = scmp.ne.s32.totalorder %s41, %s44
      %p50 = scmp.eq.s32.totalorder %s15, 0
      %p51 = por %p49, %p50
      %p52 = scmp.ne.s32.totalorder %s41, %s44
      %p53 = scmp.eq.s32.totalorder %s20, 3
      %p54 = por %p52, %p53
      %p55 = scmp.ne.s32.totalorder %s44, %s45
      %p56 = scmp.eq.s32.totalorder %s20, 0
      %p57 = por %p55, %p56
      %p58 = scmp.ne.s32.totalorder %s44, %s45
      %p59 = scmp.eq.s32.totalorder %s21, 3
      %p60 = por %p58, %p59
      %p62 = scmp.ne.s32.totalorder %s45, %s61
      %p63 = scmp.eq.s32.totalorder %s21, 0
      %p64 = por %p62, %p63
      %s66 = sadd.s32 %s65, 1
      %p69 = scmp.eq.s32.totalorder %s15, 3
      %p70 = scmp.ne.s32.totalorder %s65, %s67
      %p71 = scmp.eq.s32.totalorder %s15, 0
      %p72 = por %p70, %p71
      %p73 = scmp.ne.s32.totalorder %s65, %s67
      %p74 = scmp.eq.s32.totalorder %s20, 3
      %p75 = por %p73, %p74
      %p76 = scmp.ne.s32.totalorder %s67, %s68
      %p77 = scmp.eq.s32.totalorder %s20, 0
      %p78 = por %p76, %p77
      %p79 = scmp.ne.s32.totalorder %s67, %s68
      %p80 = scmp.eq.s32.totalorder %s21, 3
      %p81 = por %p79, %p80
      %p83 = scmp.ne.s32.totalorder %s68, %s82
      %p84 = scmp.eq.s32.totalorder %s21, 0
      %p85 = por %p83, %p84
      %s87 = sadd.s32 %s86, 1
      %p90 = scmp.eq.s32.totalorder %s15, 3
      %p91 = scmp.ne.s32.totalorder %s86, %s88
      %p92 = scmp.eq.s32.totalorder %s15, 0
      %p93 = por %p91, %p92
      %p94 = scmp.ne.s32.totalorder %s86, %s88
      %p95 = scmp.eq.s32.totalorder %s20, 3
      %p96 = por %p94, %p95
      %p97 = scmp.ne.s32.totalorder %s88, %s89
      %p98 = scmp.eq.s32.totalorder %s20, 0
      %p99 = por %p97, %p98
      %p100 = scmp.ne.s32.totalorder %s88, %s89
      %p101 = scmp.eq.s32.totalorder %s21, 3
      %p102 = por %p100, %p101
      %p104 = scmp.ne.s32.totalorder %s89, %s103
      %p105 = scmp.eq.s32.totalorder %s21, 0
      %p106 = por %p104, %p105
      %s108 = sadd.s32 %s107, 1
      %p111 = scmp.eq.s32.totalorder %s15, 3
      %p112 = scmp.ne.s32.totalorder %s107, %s109
      %p113 = scmp.eq.s32.totalorder %s15, 0
      %p114 = por %p112, %p113
      %p115 = scmp.ne.s32.totalorder %s107, %s109
      %p116 = scmp.eq.s32.totalorder %s20, 3
      %p117 = por %p115, %p116
      %p118 = scmp.ne.s32.totalorder %s109, %s110
      %p119 = scmp.eq.s32.totalorder %s20, 0
      %p120 = por %p118, %p119
      %p121 = scmp.ne.s32.totalorder %s109, %s110
      %p122 = scmp.eq.s32.totalorder %s21, 3
      %p123 = por %p121, %p122
      %p125 = scmp.ne.s32.totalorder %s110, %s124
      %p126 = scmp.eq.s32.totalorder %s21, 0
      %p127 = por %p125, %p126
      %s128 = ssub.s32 %s22, %s34
      %p129 = scmp.eq.s32.totalorder %s128, 0
      %s131 = sadd.s32 %s130, 1
      %s132 = scalar_select %p129, %s130, %s131
      %p135 = pneg %p129
      %p136 = scmp.eq.s32.totalorder %s15, 3
      %p137 = por %p135, %p136
      %p138 = scmp.ne.s32.totalorder %s130, %s133
      %p139 = scmp.eq.s32.totalorder %s15, 0
      %p140 = por %p138, %p139
      %p141 = scmp.ne.s32.totalorder %s130, %s133
      %p142 = scmp.eq.s32.totalorder %s20, 3
      %p143 = por %p141, %p142
      %p144 = scmp.ne.s32.totalorder %s133, %s134
      %p145 = scmp.eq.s32.totalorder %s20, 0
      %p146 = por %p144, %p145
      %p147 = scmp.ne.s32.totalorder %s133, %s134
      %p148 = scmp.eq.s32.totalorder %s21, 3
      %p149 = por %p147, %p148
      %p151 = scmp.ne.s32.totalorder %s134, %s150
      %p152 = scmp.eq.s32.totalorder %s21, 0
      %p153 = por %p151, %p152
      %s154 = smul.u32 %s22, 2
      %s155 = sadd.s32 %s154, %s23
      %s156 = smul.u32 %s34, 2
      %s157 = sadd.s32 %s156, %s30
      %s158 = ssub.s32 %s155, %s157
      %p159 = scmp.eq.s32.totalorder %s158, 0
      %s161 = sadd.s32 %s160, 1
      %s162 = scalar_select %p159, %s160, %s161
      %p165 = pneg %p159
      %p166 = scmp.eq.s32.totalorder %s15, 3
      %p167 = por %p165, %p166
      %p168 = scmp.ne.s32.totalorder %s160, %s163
      %p169 = scmp.eq.s32.totalorder %s15, 0
      %p170 = por %p168, %p169
      %p171 = scmp.ne.s32.totalorder %s160, %s163
      %p172 = scmp.eq.s32.totalorder %s20, 3
      %p173 = por %p171, %p172
      %p174 = scmp.ne.s32.totalorder %s163, %s164
      %p175 = scmp.eq.s32.totalorder %s20, 0
      %p176 = por %p174, %p175
      %p177 = scmp.ne.s32.totalorder %s163, %s164
      %p178 = scmp.eq.s32.totalorder %s21, 3
      %p179 = por %p177, %p178
      %p181 = scmp.ne.s32.totalorder %s164, %s180
      %p182 = scmp.eq.s32.totalorder %s21, 0
      %p183 = por %p181, %p182
      %s184 = smul.u32 %s22, 2
      %s185 = sadd.s32 %s184, %s23
      %s186 = smul.u32 %s34, 2
      %s187 = sadd.s32 %s186, %s30
      %s188 = ssub.s32 %s185, %s187
      %p189 = scmp.eq.s32.totalorder %s188, 0
      %s191 = sadd.s32 %s190, 1
      %s192 = scalar_select %p189, %s190, %s191
      %p195 = pneg %p189
      %p196 = scmp.eq.s32.totalorder %s15, 3
      %p197 = por %p195, %p196
      %p198 = scmp.ne.s32.totalorder %s190, %s193
      %p199 = scmp.eq.s32.totalorder %s15, 0
      %p200 = por %p198, %p199
      %p201 = scmp.ne.s32.totalorder %s190, %s193
      %p202 = scmp.eq.s32.totalorder %s20, 3
      %p203 = por %p201, %p202
      %p204 = scmp.ne.s32.totalorder %s193, %s194
      %p205 = scmp.eq.s32.totalorder %s20, 0
      %p206 = por %p204, %p205
      %p207 = scmp.ne.s32.totalorder %s193, %s194
      %p208 = scmp.eq.s32.totalorder %s21, 3
      %p209 = por %p207, %p208
      %p211 = scmp.ne.s32.totalorder %s194, %s210
      %p212 = scmp.eq.s32.totalorder %s21, 0
      %p213 = por %p211, %p212
      %p214 = scmp.le.s32.totalorder 1, %s15
      %p215 = scmp.lt.s32.totalorder %s15, 5
      %p216 = pnand %p214, %p215
      %p217 = pneg %p216
      // Predicated region
      $region9: #{bottleneck_forward.3} parent=5 // pred_check
        _
      $region10: #{bottleneck_forward.3} parent=5 // pred_check_branch
        %219 = sbr.rel (%p216) target = $region12
      $region11: #{bottleneck_forward.3} parent=5 // pred_region
        %s220 = ssub.s32 %s15, 1
        // Predicated region
        $region13: #{bottleneck_forward.3} parent=11 // pred_check
          %p221 = pneg %p78
        $region14: #{bottleneck_forward.3} parent=11 // pred_check_branch
          %223 = sbr.rel (%p221) target = $region16
        $region15: #{bottleneck_forward.3} parent=11 // pred_region
          _
        $region16: #{bottleneck_forward.3} parent=11 // pred_fallthru
          _
        // Predicated region
        $region17: #{bottleneck_forward.3} parent=11 // pred_check
          %p224 = pneg %p99
        $region18: #{bottleneck_forward.3} parent=11 // pred_check_branch
          %226 = sbr.rel (%p224) target = $region20
        $region19: #{bottleneck_forward.3} parent=11 // pred_region
          _
        $region20: #{bottleneck_forward.3} parent=11 // pred_fallthru
          _
        // Predicated region
        $region21: #{bottleneck_forward.3} parent=11 // pred_check
          %p227 = pneg %p120
        $region22: #{bottleneck_forward.3} parent=11 // pred_check_branch
          %229 = sbr.rel (%p227) target = $region24
        $region23: #{bottleneck_forward.3} parent=11 // pred_region
          _
        $region24: #{bottleneck_forward.3} parent=11 // pred_fallthru
          _
      $region12: #{bottleneck_forward.3} parent=5 // pred_fallthru
        _
      %p230 = scmp.lt.s32.totalorder %s15, 4
      // Predicated region
      $region25: #{bottleneck_forward.3} parent=5 // pred_check
        %p231 = pneg %p230
      $region26: #{bottleneck_forward.3} parent=5 // pred_check_branch
        %233 = sbr.rel (%p231) target = $region28
      $region27: #{bottleneck_forward.3} parent=5 // pred_region
        // Predicated region
        $region29: #{bottleneck_forward.3} parent=27 // pred_check
          %p234 = pneg %p51
        $region30: #{bottleneck_forward.3} parent=27 // pred_check_branch
          %236 = sbr.rel (%p234) target = $region32
        $region31: #{bottleneck_forward.3} parent=27 // pred_region
          %s237 = smul.u32 %s22, 2
          %s238 = sadd.s32 %s237, %s23
          %s239 = smul.u32 16, %s238
          %p240 = scmp.lt.s32.totalorder %s239, 63
          %s241 = scalar_select %p240, %s239, 63
          %s242 = smul.addr %s241, 4
          %s243 = scalar_lea.vmem %s0, %s242
          %s244 = smul.u32 %s22, 2
          %s245 = sadd.s32 %s244, %s23
          %s246 = smul.u32 16, %s245
        $region32: #{bottleneck_forward.3} parent=27 // pred_fallthru
          _
        // Predicated region
        $region33: #{bottleneck_forward.3} parent=27 // pred_check
          %p247 = pneg %p140
        $region34: #{bottleneck_forward.3} parent=27 // pred_check_branch
          %249 = sbr.rel (%p247) target = $region36
        $region35: #{bottleneck_forward.3} parent=27 // pred_region
          %p250 = scmp.lt.s32.totalorder %s22, 1
          %s251 = scalar_select %p250, %s22, 1
          %s252 = scalar_lea.vmem %s4, %s251
        $region36: #{bottleneck_forward.3} parent=27 // pred_fallthru
          _
        // Predicated region
        $region37: #{bottleneck_forward.3} parent=27 // pred_check
          %p253 = pneg %p170
        $region38: #{bottleneck_forward.3} parent=27 // pred_check_branch
          %255 = sbr.rel (%p253) target = $region40
        $region39: #{bottleneck_forward.3} parent=27 // pred_region
          %s256 = smul.u32 %s22, 2
          %s257 = sadd.s32 %s256, %s23
          %s258 = smul.u32 16, %s257
          %p259 = scmp.lt.s32.totalorder %s258, 63
          %s260 = scalar_select %p259, %s258, 63
          %s261 = smul.addr %s260, 8
          %s262 = scalar_lea.vmem %s5, %s261
          %s263 = smul.u32 %s22, 2
          %s264 = sadd.s32 %s263, %s23
          %s265 = smul.u32 16, %s264
        $region40: #{bottleneck_forward.3} parent=27 // pred_fallthru
          _
      $region28: #{bottleneck_forward.3} parent=5 // pred_fallthru
        _
      %p266 = scmp.le.s32.totalorder 1, %s15
      %p267 = scmp.lt.s32.totalorder %s15, 5
      %p268 = pnand %p266, %p267
      %p269 = pneg %p268
      // Predicated region
      $region41: #{bottleneck_forward.3} parent=5 // pred_check
        _
      $region42: #{bottleneck_forward.3} parent=5 // pred_check_branch
        %271 = sbr.rel (%p268) target = $region44
      $region43: #{bottleneck_forward.3} parent=5 // pred_region
        %s272 = ssub.s32 %s15, 1
        %s273 = smul.u32 %s24, 2
        %s274 = sadd.s32 %s273, %s25
        %s275 = smul.u32 16, %s274
        %p276 = scmp.lt.s32.totalorder %s275, 63
        %s277 = scalar_select %p276, %s275, 63
        %s278 = smul.addr %s277, 4
        %s279 = scalar_lea.vmem %s0, %s278
        %p280 = pneg %p57
        %p281 = pneg %p54
        %p282 = pneg %p78
        %p283 = pneg %p75
        %p284 = pneg %p99
        %p285 = pneg %p96
        %p286 = pneg %p120
        %p287 = pneg %p117
        %p288 = scmp.lt.s32.totalorder %s24, 1
        %s289 = scalar_select %p288, %s24, 1
        %s290 = scalar_lea.vmem %s4, %s289
        %p291 = pneg %p146
        %p292 = pneg %p143
        %s293 = smul.u32 %s24, 2
        %s294 = sadd.s32 %s293, %s25
        %s295 = smul.u32 16, %s294
        %p296 = scmp.lt.s32.totalorder %s295, 63
        %s297 = scalar_select %p296, %s295, 63
        %s298 = smul.addr %s297, 8
        %s299 = scalar_lea.vmem %s5, %s298
        %p300 = pneg %p176
        %p301 = pneg %p173
        %p302 = pneg %p206
        %p303 = pneg %p203
        %s304 = sand.u32 %s193, 1
        %s305 = scalar_lea.sflag [#allocation3], %s304
        %s306 = sand.u32 %s193, 1
        %s307 = smul.addr %s306, 128
        %s308 = scalar_lea.vmem [#allocation2], %s307
        %s309 = smul.u32 %s24, 2
        %s310 = sadd.s32 %s309, %s25
        %s311 = smul.u32 16, %s310
        %p312 = scmp.lt.s32.totalorder %s311, 63
        %s313 = scalar_select %p312, %s311, 63
        %s314 = smul.addr %s313, 4
        %s315 = scalar_lea.vmem %s0, %s314
        %s316 = smul.u32 %s24, 2
        %s317 = sadd.s32 %s316, %s25
        %s318 = smul.u32 16, %s317
        %p319 = scmp.lt.s32.totalorder %s24, 1
        %s320 = scalar_select %p319, %s24, 1
        %s321 = scalar_lea.vmem %s4, %s320
        %s322 = smul.u32 %s24, 2
        %s323 = sadd.s32 %s322, %s25
        %s324 = smul.u32 16, %s323
        %p325 = scmp.lt.s32.totalorder %s324, 63
        %s326 = scalar_select %p325, %s324, 63
        %s327 = smul.addr %s326, 8
        %s328 = scalar_lea.vmem %s5, %s327
        %s329 = smul.u32 %s24, 2
        %s330 = sadd.s32 %s329, %s25
        %s331 = smul.u32 16, %s330
        %s332 = smul.u32 %s24, 2
        %s333 = sadd.s32 %s332, %s25
        %s334 = smul.u32 16, %s333
        %v336 = vld [vmem:[%s315] sm:$0xf]
        %v337 = vld [vmem:[%s315 + $0x4] sm:$0xf]
        %v338 = vld [vmem:[%s315 + $0x8] sm:$0xf]
        %v339 = vld [vmem:[%s315 + $0xc] sm:$0xf]
        %v340 = vld [vmem:[%s315 + $0x10] sm:$0xf]
        %v341 = vld [vmem:[%s315 + $0x14] sm:$0xf]
        %v342 = vld [vmem:[%s315 + $0x18] sm:$0xf]
        %v343 = vld [vmem:[%s315 + $0x1c] sm:$0xf]
        %v344 = vld [vmem:[%s315 + $0x20] sm:$0xf]
        %v345 = vld [vmem:[%s315 + $0x24] sm:$0xf]
        %v346 = vld [vmem:[%s315 + $0x28] sm:$0xf]
        %v347 = vld [vmem:[%s315 + $0x2c] sm:$0xf]
        %v348 = vld [vmem:[%s315 + $0x30] sm:$0xf]
        %v349 = vld [vmem:[%s315 + $0x34] sm:$0xf]
        %v350 = vld [vmem:[%s315 + $0x38] sm:$0xf]
        %v351 = vld [vmem:[%s315 + $0x3c] sm:$0xf]
        %v352 = vld [vmem:[%s1] sm:$0xf]
        %v369 = vunpack.c.l.b16 %v336
        %v370 = vunpack.c.l.b16 %v337
        %v371 = vunpack.c.l.b16 %v338
        %v372 = vunpack.c.l.b16 %v339
        %v373 = vunpack.c.l.b16 %v340
        %v374 = vunpack.c.l.b16 %v341
        %v375 = vunpack.c.l.b16 %v342
        %v376 = vunpack.c.l.b16 %v343
        %v377 = vunpack.c.l.b16 %v344
        %v378 = vunpack.c.l.b16 %v345
        %v379 = vunpack.c.l.b16 %v346
        %v380 = vunpack.c.l.b16 %v347
        %v381 = vunpack.c.l.b16 %v348
        %v382 = vunpack.c.l.b16 %v349
        %v383 = vunpack.c.l.b16 %v350
        %v384 = vunpack.c.l.b16 %v351
        %v385 = vpack.c.b16 %v370, %v369
        %v386 = vpack.c.b16 %v372, %v371
        %v387 = vpack.c.b16 %v374, %v373
        %v388 = vpack.c.b16 %v376, %v375
        %v389 = vpack.c.b16 %v378, %v377
        %v390 = vpack.c.b16 %v380, %v379
        %v391 = vpack.c.b16 %v382, %v381
        %v392 = vpack.c.b16 %v384, %v383
        %vm393 = vcmask 64512
        %v395 = vsel %vm393, %v385, 0
        %v398 = vsel %vm393, %v386, 0
        %v401 = vsel %vm393, %v387, 0
        %v404 = vsel %vm393, %v388, 0
        %v407 = vsel %vm393, %v389, 0
        %v410 = vsel %vm393, %v390, 0
        %v413 = vsel %vm393, %v391, 0
        %v416 = vsel %vm393, %v392, 0
        %vm418 = vcmask 1043456
        %v420 = vsel %vm418, %v352, 0
        %422 = vmatpush.bf16.msra.mxu0 0
        %423 = vmatpush.bf16.msra.mxu0 0
        %424 = vmatpush.bf16.msra.mxu0 0
        %425 = vmatpush.bf16.msra.mxu0 0
        %426 = vmatpush.bf16.msra.mxu0 0
        %427 = vmatpush.bf16.msra.mxu0 0
        %428 = vmatpush.bf16.msra.mxu0 0
        %429 = vmatpush.bf16.msra.mxu0 %v420
        %430 = vmatmul.bf16.gmra.mxu0 %v395
        %v431 = vpop.f32.mrf.mxu0
        %v432 = vadd.f32 0.0, %v431
        %v433 = vpop.f32.mrf.mxu0
        %v434 = vadd.f32 0.0, %v433
        %435 = vmatmul.bf16.gmra.mxu0 %v398
        %v436 = vpop.f32.mrf.mxu0
        %v437 = vadd.f32 0.0, %v436
        %v438 = vpop.f32.mrf.mxu0
        %v439 = vadd.f32 0.0, %v438
        %440 = vmatmul.bf16.gmra.mxu0 %v401
        %v441 = vpop.f32.mrf.mxu0
        %v442 = vadd.f32 0.0, %v441
        %v443 = vpop.f32.mrf.mxu0
        %v444 = vadd.f32 0.0, %v443
        %445 = vmatmul.bf16.gmra.mxu0 %v404
        %v446 = vpop.f32.mrf.mxu0
        %v447 = vadd.f32 0.0, %v446
        %v448 = vpop.f32.mrf.mxu0
        %v449 = vadd.f32 0.0, %v448
        %450 = vmatmul.bf16.gmra.mxu0 %v407
        %v451 = vpop.f32.mrf.mxu0
        %v452 = vadd.f32 0.0, %v451
        %v453 = vpop.f32.mrf.mxu0
        %v454 = vadd.f32 0.0, %v453
        %455 = vmatmul.bf16.gmra.mxu0 %v410
        %v456 = vpop.f32.mrf.mxu0
        %v457 = vadd.f32 0.0, %v456
        %v458 = vpop.f32.mrf.mxu0
        %v459 = vadd.f32 0.0, %v458
        %460 = vmatmul.bf16.gmra.mxu0 %v413
        %v461 = vpop.f32.mrf.mxu0
        %v462 = vadd.f32 0.0, %v461
        %v463 = vpop.f32.mrf.mxu0
        %v464 = vadd.f32 0.0, %v463
        %465 = vmatmul.bf16.gmra.mxu0 %v416
        %v466 = vpop.f32.mrf.mxu0
        %v467 = vadd.f32 0.0, %v466
        %v468 = vpop.f32.mrf.mxu0
        %v469 = vadd.f32 0.0, %v468
        %470 = vdwg.mxu0
        %v471 = vld [vmem:[%s2] sm:$0x1]
        %v473 = vperm.slane %v471, 0
        %v475 = vmul.f32 %v432, %v473
        %v476 = vmul.f32 %v434, %v473
        %v477 = vmul.f32 %v437, %v473
        %v478 = vmul.f32 %v439, %v473
        %v479 = vmul.f32 %v442, %v473
        %v480 = vmul.f32 %v444, %v473
        %v481 = vmul.f32 %v447, %v473
        %v482 = vmul.f32 %v449, %v473
        %v483 = vmul.f32 %v452, %v473
        %v484 = vmul.f32 %v454, %v473
        %v485 = vmul.f32 %v457, %v473
        %v486 = vmul.f32 %v459, %v473
        %v487 = vmul.f32 %v462, %v473
        %v488 = vmul.f32 %v464, %v473
        %v489 = vmul.f32 %v467, %v473
        %v490 = vmul.f32 %v469, %v473
        %v491 = vld [vmem:[%s3] sm:$0x1]
        %v493 = vperm.slane %v491, 0
        %v495 = vadd.f32 %v475, %v493
        %v496 = vadd.f32 %v476, %v493
        %v497 = vadd.f32 %v477, %v493
        %v498 = vadd.f32 %v478, %v493
        %v499 = vadd.f32 %v479, %v493
        %v500 = vadd.f32 %v480, %v493
        %v501 = vadd.f32 %v481, %v493
        %v502 = vadd.f32 %v482, %v493
        %v503 = vadd.f32 %v483, %v493
        %v504 = vadd.f32 %v484, %v493
        %v505 = vadd.f32 %v485, %v493
        %v506 = vadd.f32 %v486, %v493
        %v507 = vadd.f32 %v487, %v493
        %v508 = vadd.f32 %v488, %v493
        %v509 = vadd.f32 %v489, %v493
        %v510 = vadd.f32 %v490, %v493
        %v511 = vld [vmem:[%s321] sm:$0x1]
        %v513 = vperm.slane %v511, 0
        %v515 = vmul.f32 %v495, %v513
        %v516 = vmul.f32 %v496, %v513
        %v517 = vmul.f32 %v497, %v513
        %v518 = vmul.f32 %v498, %v513
        %v519 = vmul.f32 %v499, %v513
        %v520 = vmul.f32 %v500, %v513
        %v521 = vmul.f32 %v501, %v513
        %v522 = vmul.f32 %v502, %v513
        %v523 = vmul.f32 %v503, %v513
        %v524 = vmul.f32 %v504, %v513
        %v525 = vmul.f32 %v505, %v513
        %v526 = vmul.f32 %v506, %v513
        %v527 = vmul.f32 %v507, %v513
        %v528 = vmul.f32 %v508, %v513
        %v529 = vmul.f32 %v509, %v513
        %v530 = vmul.f32 %v510, %v513
        %v531 = vld [vmem:[%s328] sm:$0xff]
        %v532 = vld [vmem:[%s328 + $0x8] sm:$0xff]
        %v533 = vld [vmem:[%s328 + $0x10] sm:$0xff]
        %v534 = vld [vmem:[%s328 + $0x18] sm:$0xff]
        %v535 = vld [vmem:[%s328 + $0x20] sm:$0xff]
        %v536 = vld [vmem:[%s328 + $0x28] sm:$0xff]
        %v537 = vld [vmem:[%s328 + $0x30] sm:$0xff]
        %v538 = vld [vmem:[%s328 + $0x38] sm:$0xff]
        %v539 = vld [vmem:[%s328 + $0x40] sm:$0xff]
        %v540 = vld [vmem:[%s328 + $0x48] sm:$0xff]
        %v541 = vld [vmem:[%s328 + $0x50] sm:$0xff]
        %v542 = vld [vmem:[%s328 + $0x58] sm:$0xff]
        %v543 = vld [vmem:[%s328 + $0x60] sm:$0xff]
        %v544 = vld [vmem:[%s328 + $0x68] sm:$0xff]
        %v545 = vld [vmem:[%s328 + $0x70] sm:$0xff]
        %v546 = vld [vmem:[%s328 + $0x78] sm:$0xff]
        %v547 = vadd.f32 %v515, %v531
        %v548 = vadd.f32 %v516, %v532
        %v549 = vadd.f32 %v517, %v533
        %v550 = vadd.f32 %v518, %v534
        %v551 = vadd.f32 %v519, %v535
        %v552 = vadd.f32 %v520, %v536
        %v553 = vadd.f32 %v521, %v537
        %v554 = vadd.f32 %v522, %v538
        %v555 = vadd.f32 %v523, %v539
        %v556 = vadd.f32 %v524, %v540
        %v557 = vadd.f32 %v525, %v541
        %v558 = vadd.f32 %v526, %v542
        %v559 = vadd.f32 %v527, %v543
        %v560 = vadd.f32 %v528, %v544
        %v561 = vadd.f32 %v529, %v545
        %v562 = vadd.f32 %v530, %v546
        %v563 = vmax.f32 %v547, 0.0
        %v564 = vmax.f32 %v548, 0.0
        %v565 = vmax.f32 %v549, 0.0
        %v566 = vmax.f32 %v550, 0.0
        %v567 = vmax.f32 %v551, 0.0
        %v568 = vmax.f32 %v552, 0.0
        %v569 = vmax.f32 %v553, 0.0
        %v570 = vmax.f32 %v554, 0.0
        %v571 = vmax.f32 %v555, 0.0
        %v572 = vmax.f32 %v556, 0.0
        %v573 = vmax.f32 %v557, 0.0
        %v574 = vmax.f32 %v558, 0.0
        %v575 = vmax.f32 %v559, 0.0
        %v576 = vmax.f32 %v560, 0.0
        %v577 = vmax.f32 %v561, 0.0
        %v578 = vmax.f32 %v562, 0.0
        %vm579 = vcmask 261120
        %580 = vst.msk [vmem:[%s308] sm:$0xff] %vm579, %v563
        %581 = vst.msk [vmem:[%s308 + $0x8] sm:$0xff] %vm579, %v564
        %582 = vst.msk [vmem:[%s308 + $0x10] sm:$0xff] %vm579, %v565
        %583 = vst.msk [vmem:[%s308 + $0x18] sm:$0xff] %vm579, %v566
        %584 = vst.msk [vmem:[%s308 + $0x20] sm:$0xff] %vm579, %v567
        %585 = vst.msk [vmem:[%s308 + $0x28] sm:$0xff] %vm579, %v568
        %586 = vst.msk [vmem:[%s308 + $0x30] sm:$0xff] %vm579, %v569
        %587 = vst.msk [vmem:[%s308 + $0x38] sm:$0xff] %vm579, %v570
        %588 = vst.msk [vmem:[%s308 + $0x40] sm:$0xff] %vm579, %v571
        %589 = vst.msk [vmem:[%s308 + $0x48] sm:$0xff] %vm579, %v572
        %590 = vst.msk [vmem:[%s308 + $0x50] sm:$0xff] %vm579, %v573
        %591 = vst.msk [vmem:[%s308 + $0x58] sm:$0xff] %vm579, %v574
        %592 = vst.msk [vmem:[%s308 + $0x60] sm:$0xff] %vm579, %v575
        %593 = vst.msk [vmem:[%s308 + $0x68] sm:$0xff] %vm579, %v576
        %594 = vst.msk [vmem:[%s308 + $0x70] sm:$0xff] %vm579, %v577
        %595 = vst.msk [vmem:[%s308 + $0x78] sm:$0xff] %vm579, %v578
        %s596 = sand.u32 %s193, 1
        %s597 = scalar_lea.sflag [#allocation3], %s596
        %s598 = sand.u32 %s193, 1
        %s599 = smul.addr %s598, 128
        %s600 = scalar_lea.vmem [#allocation2], %s599
        // Predicated region
        $region45: #{bottleneck_forward.3} parent=43 // pred_check
          %p601 = pneg %p203
        $region46: #{bottleneck_forward.3} parent=43 // pred_check_branch
          %603 = sbr.rel (%p601) target = $region48
        $region47: #{bottleneck_forward.3} parent=43 // pred_region
          %s604 = smul.u32 %s24, 2
          %s605 = sadd.s32 %s604, %s25
          %s606 = smul.u32 16, %s605
          %608 = vsyncadd %s597, 0
          %s609 = smul.addr %s606, 8
          %s610 = scalar_lea.hbm %s6, %s609
          %s611 = sshll.u32 %s600, 4
          %s612 = int_to_ptr.vmem [resolvable:$true] %s611
          %s613 = sshll.u32 %s610, 4
          %s614 = int_to_ptr.hbm [resolvable:$true] %s613
          %619 = dma.vmem_to_hbm [thread:$0]  %s612, 2048, %s614, %s597, 128, 128, 8
        $region48: #{bottleneck_forward.3} parent=43 // pred_fallthru
          _
      $region44: #{bottleneck_forward.3} parent=5 // pred_fallthru
        _
      %p620 = scmp.le.s32.totalorder 2, %s15
      // Predicated region
      $region49: #{bottleneck_forward.3} parent=5 // pred_check
        %p621 = pneg %p620
      $region50: #{bottleneck_forward.3} parent=5 // pred_check_branch
        %623 = sbr.rel (%p621) target = $region52
      $region51: #{bottleneck_forward.3} parent=5 // pred_region
        %s624 = ssub.s32 %s15, 2
        // Predicated region
        $region53: #{bottleneck_forward.3} parent=51 // pred_check
          %p625 = pneg %p209
        $region54: #{bottleneck_forward.3} parent=51 // pred_check_branch
          %627 = sbr.rel (%p625) target = $region56
        $region55: #{bottleneck_forward.3} parent=51 // pred_region
          %s628 = sand.u32 %s194, 1
          %s629 = scalar_lea.sflag [#allocation3], %s628
          %s630 = sand.u32 %s194, 1
          %s631 = smul.addr %s630, 128
          %s632 = scalar_lea.vmem [#allocation2], %s631
          %634 = dma.done %s629, 2048
        $region56: #{bottleneck_forward.3} parent=51 // pred_fallthru
          _
      $region52: #{bottleneck_forward.3} parent=5 // pred_fallthru
        _
    $region6: #{bottleneck_forward.3} parent=1 // loop_footer
      %s19 = sadd.s32 1, %s15
    $region7: #{bottleneck_forward.3} parent=1 // loop_footer_branch
      %14 = sbr.rel target = $region3
    $region8: #{bottleneck_forward.3} parent=1 // loop_exit
      _
    %635 = vsyncpa [#allocation3], 1
    %s636 = scalar_lea.sflag [#allocation3], 1
    %637 = vsyncpa %s636, 1

// kernel: bottleneck_forward.2
$region0: #{bottleneck_forward.2}
  #allocation0 [shape = 'u32[]', space=smem, size = 0x4, offset = 0x4, fixed_abs, tag = 'smem constant byte address 0x4 - core index']
  #allocation1 [shape = 'u32[72,128]{1,0:T(1,128)}', space=vmem, size = 0x9000, scoped, tag = 'internal scratch']
  #allocation2 [shape = 'bf16[304,8]{1,0:T(8,128)(2,1)}', space=vmem, size = 0x13000, scoped, tag = 'scratch operand']
  %s0 = inlined_call_operand.vmem [shape: bf16[2,256,32], index: 0, kind: input, shape index: {}]
  %s1 = inlined_call_operand.vmem [shape: bf16[32,8], index: 1, kind: input, shape index: {}]
  %s2 = inlined_call_operand.vmem [shape: f32[1,8], index: 2, kind: input, shape index: {}]
  %s3 = inlined_call_operand.vmem [shape: f32[1,8], index: 3, kind: input, shape index: {}]
  %s4 = inlined_call_operand.vmem [shape: bf16[9,8,8], index: 4, kind: input, shape index: {}]
  %s5 = inlined_call_operand.vmem [shape: f32[1,8], index: 5, kind: input, shape index: {}]
  %s6 = inlined_call_operand.vmem [shape: f32[1,8], index: 6, kind: input, shape index: {}]
  %s7 = inlined_call_operand.vmem [shape: bf16[2,256,8], index: 7, kind: output, shape index: {0}]
  %s8 = inlined_call_operand.vmem [shape: f32[2,1,8], index: 8, kind: output, shape index: {1}]
  %9 = xla_tuple %s7, %s8
  %s10 = sld [smem:[#allocation0]]
  $region69: #{bottleneck_forward.2} parent=0
    _
  %s12 = ssub.s32 1, %s10
  %s13 = scalar_select 0, %s12, %s10
  loop: start=0, step=1, limit=4
  $region2: #{bottleneck_forward.2} parent=0 // loop_pre_header
    _
  $region3: #{bottleneck_forward.2} parent=0 // loop_header
    %s15 = sphi 0, %s19
    %p16 = scmp.ge.s32.totalorder %s15, 4
    %s25 = sphi 0, %s27
    %s28 = sphi 0, %s25
    %s29 = sphi 0, %s28
    %s45 = sphi 0, %s29
    %s49 = sphi 0, %s49
    %s51 = sphi 0, %s49
    %s52 = sphi 0, %s51
    %s66 = sphi 0, %s52
    %s70 = sphi 0, %s70
    %s72 = sphi 0, %s70
    %s73 = sphi 0, %s72
    %s87 = sphi 0, %s73
    %s91 = sphi 0, %s91
    %s93 = sphi 0, %s91
    %s94 = sphi 0, %s93
    %s108 = sphi 0, %s94
    %s112 = sphi 0, %s112
    %s114 = sphi 0, %s112
    %s115 = sphi 0, %s114
    %s129 = sphi 0, %s115
    %s133 = sphi 0, %s133
    %s135 = sphi 0, %s133
    %s136 = sphi 0, %s135
    %s150 = sphi 0, %s136
    %s154 = sphi 0, %s154
    %s156 = sphi 0, %s154
    %s157 = sphi 0, %s156
    %s171 = sphi 0, %s157
    %s177 = sphi 0, %s179
    %s180 = sphi 0, %s177
    %s181 = sphi 0, %s180
    %s197 = sphi 0, %s181
    %s203 = sphi 0, %s205
    %s206 = sphi 0, %s203
    %s207 = sphi 0, %s206
    %s223 = sphi 0, %s207
  $region4: #{bottleneck_forward.2} parent=0 // loop_header_branch
    %18 = sbr.rel (%p16) target = $region8
  $region5: #{bottleneck_forward.2} parent=0 // loop_body
    %s20 = ssub.s32 %s15, 1
    %s21 = ssub.s32 %s15, 2
    %s22 = sadd.s32 %s15, 1
    %s23 = ssub.s32 %s15, %s22
    %p24 = scmp.eq.s32.totalorder %s23, 0
    %s26 = sadd.s32 %s25, 1
    %s27 = scalar_select %p24, %s25, %s26
    %p30 = pneg %p24
    %p31 = scmp.eq.s32.totalorder %s15, 1
    %p32 = por %p30, %p31
    %p33 = scmp.ne.s32.totalorder %s25, %s28
    %p34 = scmp.eq.s32.totalorder %s15, 0
    %p35 = por %p33, %p34
    %p36 = scmp.ne.s32.totalorder %s25, %s28
    %p37 = scmp.eq.s32.totalorder %s20, 1
    %p38 = por %p36, %p37
    %p39 = scmp.ne.s32.totalorder %s28, %s29
    %p40 = scmp.eq.s32.totalorder %s20, 0
    %p41 = por %p39, %p40
    %p42 = scmp.ne.s32.totalorder %s28, %s29
    %p43 = scmp.eq.s32.totalorder %s21, 1
    %p44 = por %p42, %p43
    %p46 = scmp.ne.s32.totalorder %s29, %s45
    %p47 = scmp.eq.s32.totalorder %s21, 0
    %p48 = por %p46, %p47
    %s50 = sadd.s32 %s49, 1
    %p53 = scmp.eq.s32.totalorder %s15, 1
    %p54 = scmp.ne.s32.totalorder %s49, %s51
    %p55 = scmp.eq.s32.totalorder %s15, 0
    %p56 = por %p54, %p55
    %p57 = scmp.ne.s32.totalorder %s49, %s51
    %p58 = scmp.eq.s32.totalorder %s20, 1
    %p59 = por %p57, %p58
    %p60 = scmp.ne.s32.totalorder %s51, %s52
    %p61 = scmp.eq.s32.totalorder %s20, 0
    %p62 = por %p60, %p61
    %p63 = scmp.ne.s32.totalorder %s51, %s52
    %p64 = scmp.eq.s32.totalorder %s21, 1
    %p65 = por %p63, %p64
    %p67 = scmp.ne.s32.totalorder %s52, %s66
    %p68 = scmp.eq.s32.totalorder %s21, 0
    %p69 = por %p67, %p68
    %s71 = sadd.s32 %s70, 1
    %p74 = scmp.eq.s32.totalorder %s15, 1
    %p75 = scmp.ne.s32.totalorder %s70, %s72
    %p76 = scmp.eq.s32.totalorder %s15, 0
    %p77 = por %p75, %p76
    %p78 = scmp.ne.s32.totalorder %s70, %s72
    %p79 = scmp.eq.s32.totalorder %s20, 1
    %p80 = por %p78, %p79
    %p81 = scmp.ne.s32.totalorder %s72, %s73
    %p82 = scmp.eq.s32.totalorder %s20, 0
    %p83 = por %p81, %p82
    %p84 = scmp.ne.s32.totalorder %s72, %s73
    %p85 = scmp.eq.s32.totalorder %s21, 1
    %p86 = por %p84, %p85
    %p88 = scmp.ne.s32.totalorder %s73, %s87
    %p89 = scmp.eq.s32.totalorder %s21, 0
    %p90 = por %p88, %p89
    %s92 = sadd.s32 %s91, 1
    %p95 = scmp.eq.s32.totalorder %s15, 1
    %p96 = scmp.ne.s32.totalorder %s91, %s93
    %p97 = scmp.eq.s32.totalorder %s15, 0
    %p98 = por %p96, %p97
    %p99 = scmp.ne.s32.totalorder %s91, %s93
    %p100 = scmp.eq.s32.totalorder %s20, 1
    %p101 = por %p99, %p100
    %p102 = scmp.ne.s32.totalorder %s93, %s94
    %p103 = scmp.eq.s32.totalorder %s20, 0
    %p104 = por %p102, %p103
    %p105 = scmp.ne.s32.totalorder %s93, %s94
    %p106 = scmp.eq.s32.totalorder %s21, 1
    %p107 = por %p105, %p106
    %p109 = scmp.ne.s32.totalorder %s94, %s108
    %p110 = scmp.eq.s32.totalorder %s21, 0
    %p111 = por %p109, %p110
    %s113 = sadd.s32 %s112, 1
    %p116 = scmp.eq.s32.totalorder %s15, 1
    %p117 = scmp.ne.s32.totalorder %s112, %s114
    %p118 = scmp.eq.s32.totalorder %s15, 0
    %p119 = por %p117, %p118
    %p120 = scmp.ne.s32.totalorder %s112, %s114
    %p121 = scmp.eq.s32.totalorder %s20, 1
    %p122 = por %p120, %p121
    %p123 = scmp.ne.s32.totalorder %s114, %s115
    %p124 = scmp.eq.s32.totalorder %s20, 0
    %p125 = por %p123, %p124
    %p126 = scmp.ne.s32.totalorder %s114, %s115
    %p127 = scmp.eq.s32.totalorder %s21, 1
    %p128 = por %p126, %p127
    %p130 = scmp.ne.s32.totalorder %s115, %s129
    %p131 = scmp.eq.s32.totalorder %s21, 0
    %p132 = por %p130, %p131
    %s134 = sadd.s32 %s133, 1
    %p137 = scmp.eq.s32.totalorder %s15, 1
    %p138 = scmp.ne.s32.totalorder %s133, %s135
    %p139 = scmp.eq.s32.totalorder %s15, 0
    %p140 = por %p138, %p139
    %p141 = scmp.ne.s32.totalorder %s133, %s135
    %p142 = scmp.eq.s32.totalorder %s20, 1
    %p143 = por %p141, %p142
    %p144 = scmp.ne.s32.totalorder %s135, %s136
    %p145 = scmp.eq.s32.totalorder %s20, 0
    %p146 = por %p144, %p145
    %p147 = scmp.ne.s32.totalorder %s135, %s136
    %p148 = scmp.eq.s32.totalorder %s21, 1
    %p149 = por %p147, %p148
    %p151 = scmp.ne.s32.totalorder %s136, %s150
    %p152 = scmp.eq.s32.totalorder %s21, 0
    %p153 = por %p151, %p152
    %s155 = sadd.s32 %s154, 1
    %p158 = scmp.eq.s32.totalorder %s15, 1
    %p159 = scmp.ne.s32.totalorder %s154, %s156
    %p160 = scmp.eq.s32.totalorder %s15, 0
    %p161 = por %p159, %p160
    %p162 = scmp.ne.s32.totalorder %s154, %s156
    %p163 = scmp.eq.s32.totalorder %s20, 1
    %p164 = por %p162, %p163
    %p165 = scmp.ne.s32.totalorder %s156, %s157
    %p166 = scmp.eq.s32.totalorder %s20, 0
    %p167 = por %p165, %p166
    %p168 = scmp.ne.s32.totalorder %s156, %s157
    %p169 = scmp.eq.s32.totalorder %s21, 1
    %p170 = por %p168, %p169
    %p172 = scmp.ne.s32.totalorder %s157, %s171
    %p173 = scmp.eq.s32.totalorder %s21, 0
    %p174 = por %p172, %p173
    %s175 = ssub.s32 %s15, %s22
    %p176 = scmp.eq.s32.totalorder %s175, 0
    %s178 = sadd.s32 %s177, 1
    %s179 = scalar_select %p176, %s177, %s178
    %p182 = pneg %p176
    %p183 = scmp.eq.s32.totalorder %s15, 1
    %p184 = por %p182, %p183
    %p185 = scmp.ne.s32.totalorder %s177, %s180
    %p186 = scmp.eq.s32.totalorder %s15, 0
    %p187 = por %p185, %p186
    %p188 = scmp.ne.s32.totalorder %s177, %s180
    %p189 = scmp.eq.s32.totalorder %s20, 1
    %p190 = por %p188, %p189
    %p191 = scmp.ne.s32.totalorder %s180, %s181
    %p192 = scmp.eq.s32.totalorder %s20, 0
    %p193 = por %p191, %p192
    %p194 = scmp.ne.s32.totalorder %s180, %s181
    %p195 = scmp.eq.s32.totalorder %s21, 1
    %p196 = por %p194, %p195
    %p198 = scmp.ne.s32.totalorder %s181, %s197
    %p199 = scmp.eq.s32.totalorder %s21, 0
    %p200 = por %p198, %p199
    %s201 = ssub.s32 %s15, %s22
    %p202 = scmp.eq.s32.totalorder %s201, 0
    %s204 = sadd.s32 %s203, 1
    %s205 = scalar_select %p202, %s203, %s204
    %p208 = pneg %p202
    %p209 = scmp.eq.s32.totalorder %s15, 1
    %p210 = por %p208, %p209
    %p211 = scmp.ne.s32.totalorder %s203, %s206
    %p212 = scmp.eq.s32.totalorder %s15, 0
    %p213 = por %p211, %p212
    %p214 = scmp.ne.s32.totalorder %s203, %s206
    %p215 = scmp.eq.s32.totalorder %s20, 1
    %p216 = por %p214, %p215
    %p217 = scmp.ne.s32.totalorder %s206, %s207
    %p218 = scmp.eq.s32.totalorder %s20, 0
    %p219 = por %p217, %p218
    %p220 = scmp.ne.s32.totalorder %s206, %s207
    %p221 = scmp.eq.s32.totalorder %s21, 1
    %p222 = por %p220, %p221
    %p224 = scmp.ne.s32.totalorder %s207, %s223
    %p225 = scmp.eq.s32.totalorder %s21, 0
    %p226 = por %p224, %p225
    %p227 = scmp.le.s32.totalorder 1, %s15
    %p228 = scmp.lt.s32.totalorder %s15, 3
    %p229 = pnand %p227, %p228
    %p230 = pneg %p229
    // Predicated region
    $region9: #{bottleneck_forward.2} parent=5 // pred_check
      _
    $region10: #{bottleneck_forward.2} parent=5 // pred_check_branch
      %232 = sbr.rel (%p229) target = $region12
    $region11: #{bottleneck_forward.2} parent=5 // pred_region
      %s233 = ssub.s32 %s15, 1
      // Predicated region
      $region13: #{bottleneck_forward.2} parent=11 // pred_check
        %p234 = pneg %p62
      $region14: #{bottleneck_forward.2} parent=11 // pred_check_branch
        %236 = sbr.rel (%p234) target = $region16
      $region15: #{bottleneck_forward.2} parent=11 // pred_region
        _
      $region16: #{bottleneck_forward.2} parent=11 // pred_fallthru
        _
      // Predicated region
      $region17: #{bottleneck_forward.2} parent=11 // pred_check
        %p237 = pneg %p83
      $region18: #{bottleneck_forward.2} parent=11 // pred_check_branch
        %239 = sbr.rel (%p237) target = $region20
      $region19: #{bottleneck_forward.2} parent=11 // pred_region
        _
      $region20: #{bottleneck_forward.2} parent=11 // pred_fallthru
        _
      // Predicated region
      $region21: #{bottleneck_forward.2} parent=11 // pred_check
        %p240 = pneg %p104
      $region22: #{bottleneck_forward.2} parent=11 // pred_check_branch
        %242 = sbr.rel (%p240) target = $region24
      $region23: #{bottleneck_forward.2} parent=11 // pred_region
        _
      $region24: #{bottleneck_forward.2} parent=11 // pred_fallthru
        _
      // Predicated region
      $region25: #{bottleneck_forward.2} parent=11 // pred_check
        %p243 = pneg %p125
      $region26: #{bottleneck_forward.2} parent=11 // pred_check_branch
        %245 = sbr.rel (%p243) target = $region28
      $region27: #{bottleneck_forward.2} parent=11 // pred_region
        _
      $region28: #{bottleneck_forward.2} parent=11 // pred_fallthru
        _
      // Predicated region
      $region29: #{bottleneck_forward.2} parent=11 // pred_check
        %p246 = pneg %p146
      $region30: #{bottleneck_forward.2} parent=11 // pred_check_branch
        %248 = sbr.rel (%p246) target = $region32
      $region31: #{bottleneck_forward.2} parent=11 // pred_region
        _
      $region32: #{bottleneck_forward.2} parent=11 // pred_fallthru
        _
      // Predicated region
      $region33: #{bottleneck_forward.2} parent=11 // pred_check
        %p249 = pneg %p167
      $region34: #{bottleneck_forward.2} parent=11 // pred_check_branch
        %251 = sbr.rel (%p249) target = $region36
      $region35: #{bottleneck_forward.2} parent=11 // pred_region
        _
      $region36: #{bottleneck_forward.2} parent=11 // pred_fallthru
        _
    $region12: #{bottleneck_forward.2} parent=5 // pred_fallthru
      _
    %p252 = scmp.lt.s32.totalorder %s15, 2
    // Predicated region
    $region37: #{bottleneck_forward.2} parent=5 // pred_check
      %p253 = pneg %p252
    $region38: #{bottleneck_forward.2} parent=5 // pred_check_branch
      %255 = sbr.rel (%p253) target = $region40
    $region39: #{bottleneck_forward.2} parent=5 // pred_region
      // Predicated region
      $region41: #{bottleneck_forward.2} parent=39 // pred_check
        %p256 = pneg %p35
      $region42: #{bottleneck_forward.2} parent=39 // pred_check_branch
        %258 = sbr.rel (%p256) target = $region44
      $region43: #{bottleneck_forward.2} parent=39 // pred_region
        %p259 = scmp.lt.s32.totalorder %s15, 1
        %s260 = scalar_select %p259, %s15, 1
        %s261 = smul.addr %s260, 32
        %s262 = smul.addr %s261, 4
        %s263 = scalar_lea.vmem %s0, %s262
      $region44: #{bottleneck_forward.2} parent=39 // pred_fallthru
        _
    $region40: #{bottleneck_forward.2} parent=5 // pred_fallthru
      _
    %p264 = scmp.le.s32.totalorder 1, %s15
    %p265 = scmp.lt.s32.totalorder %s15, 3
    %p266 = pnand %p264, %p265
    %p267 = pneg %p266
    // Predicated region
    $region45: #{bottleneck_forward.2} parent=5 // pred_check
      _
    $region46: #{bottleneck_forward.2} parent=5 // pred_check_branch
      %269 = sbr.rel (%p266) target = $region48
    $region47: #{bottleneck_forward.2} parent=5 // pred_region
      %s270 = ssub.s32 %s15, 1
      %p271 = scmp.lt.s32.totalorder %s20, 1
      %s272 = scalar_select %p271, %s20, 1
      %s273 = smul.addr %s272, 32
      %s274 = smul.addr %s273, 4
      %s275 = scalar_lea.vmem %s0, %s274
      %p276 = pneg %p41
      %p277 = pneg %p38
      %p278 = pneg %p62
      %p279 = pneg %p59
      %p280 = pneg %p83
      %p281 = pneg %p80
      %p282 = pneg %p104
      %p283 = pneg %p101
      %p284 = pneg %p125
      %p285 = pneg %p122
      %p286 = pneg %p146
      %p287 = pneg %p143
      %p288 = pneg %p167
      %p289 = pneg %p164
      %p290 = pneg %p193
      %p291 = pneg %p190
      %p292 = scmp.lt.s32.totalorder %s20, 1
      %s293 = scalar_select %p292, %s20, 1
      %s294 = smul.addr %s293, 32
      %s295 = smul.addr %s294, 4
      %s296 = scalar_lea.vmem %s7, %s295
      %p297 = pneg %p219
      %p298 = pneg %p216
      %p299 = scmp.lt.s32.totalorder %s20, 1
      %s300 = scalar_select %p299, %s20, 1
      %s301 = scalar_lea.vmem %s8, %s300
      %p302 = scmp.lt.s32.totalorder %s20, 1
      %s303 = scalar_select %p302, %s20, 1
      %s304 = smul.addr %s303, 32
      %s305 = smul.addr %s304, 4
      %s306 = scalar_lea.vmem %s0, %s305
      %p307 = scmp.lt.s32.totalorder %s20, 1
      %s308 = scalar_select %p307, %s20, 1
      %s309 = smul.addr %s308, 32
      %s310 = smul.addr %s309, 4
      %s311 = scalar_lea.vmem %s7, %s310
      %p312 = scmp.lt.s32.totalorder %s20, 1
      %s313 = scalar_select %p312, %s20, 1
      %s314 = scalar_lea.vmem %s8, %s313
      %v318 = vld [vmem:[%s306] sm:$0xf]
      %v319 = vld [vmem:[%s306 + $0x4] sm:$0xf]
      %v320 = vld [vmem:[%s306 + $0x8] sm:$0xf]
      %v321 = vld [vmem:[%s306 + $0xc] sm:$0xf]
      %v322 = vld [vmem:[%s306 + $0x10] sm:$0xf]
      %v323 = vld [vmem:[%s306 + $0x14] sm:$0xf]
      %v324 = vld [vmem:[%s306 + $0x18] sm:$0xf]
      %v325 = vld [vmem:[%s306 + $0x1c] sm:$0xf]
      %v326 = vld [vmem:[%s306 + $0x20] sm:$0xf]
      %v327 = vld [vmem:[%s306 + $0x24] sm:$0xf]
      %v328 = vld [vmem:[%s306 + $0x28] sm:$0xf]
      %v329 = vld [vmem:[%s306 + $0x2c] sm:$0xf]
      %v330 = vld [vmem:[%s306 + $0x30] sm:$0xf]
      %v331 = vld [vmem:[%s306 + $0x34] sm:$0xf]
      %v332 = vld [vmem:[%s306 + $0x38] sm:$0xf]
      %v333 = vld [vmem:[%s306 + $0x3c] sm:$0xf]
      %v334 = vld [vmem:[%s306 + $0x40] sm:$0xf]
      %v335 = vld [vmem:[%s306 + $0x44] sm:$0xf]
      %v336 = vld [vmem:[%s306 + $0x48] sm:$0xf]
      %v337 = vld [vmem:[%s306 + $0x4c] sm:$0xf]
      %v338 = vld [vmem:[%s306 + $0x50] sm:$0xf]
      %v339 = vld [vmem:[%s306 + $0x54] sm:$0xf]
      %v340 = vld [vmem:[%s306 + $0x58] sm:$0xf]
      %v341 = vld [vmem:[%s306 + $0x5c] sm:$0xf]
      %v342 = vld [vmem:[%s306 + $0x60] sm:$0xf]
      %v343 = vld [vmem:[%s306 + $0x64] sm:$0xf]
      %v344 = vld [vmem:[%s306 + $0x68] sm:$0xf]
      %v345 = vld [vmem:[%s306 + $0x6c] sm:$0xf]
      %v346 = vld [vmem:[%s306 + $0x70] sm:$0xf]
      %v347 = vld [vmem:[%s306 + $0x74] sm:$0xf]
      %v348 = vld [vmem:[%s306 + $0x78] sm:$0xf]
      %v349 = vld [vmem:[%s306 + $0x7c] sm:$0xf]
      %v350 = vld [vmem:[%s1] sm:$0xf]
      %v351 = vld [vmem:[%s1 + $0x4] sm:$0xf]
      %v352 = vld [vmem:[%s1 + $0x8] sm:$0xf]
      %v353 = vld [vmem:[%s1 + $0xc] sm:$0xf]
      %v386 = vunpack.c.l.b16 %v318
      %v387 = vunpack.c.l.b16 %v319
      %v388 = vunpack.c.l.b16 %v320
      %v389 = vunpack.c.l.b16 %v321
      %v390 = vunpack.c.l.b16 %v322
      %v391 = vunpack.c.l.b16 %v323
      %v392 = vunpack.c.l.b16 %v324
      %v393 = vunpack.c.l.b16 %v325
      %v394 = vunpack.c.l.b16 %v326
      %v395 = vunpack.c.l.b16 %v327
      %v396 = vunpack.c.l.b16 %v328
      %v397 = vunpack.c.l.b16 %v329
      %v398 = vunpack.c.l.b16 %v330
      %v399 = vunpack.c.l.b16 %v331
      %v400 = vunpack.c.l.b16 %v332
      %v401 = vunpack.c.l.b16 %v333
      %v402 = vunpack.c.l.b16 %v334
      %v403 = vunpack.c.l.b16 %v335
      %v404 = vunpack.c.l.b16 %v336
      %v405 = vunpack.c.l.b16 %v337
      %v406 = vunpack.c.l.b16 %v338
      %v407 = vunpack.c.l.b16 %v339
      %v408 = vunpack.c.l.b16 %v340
      %v409 = vunpack.c.l.b16 %v341
      %v410 = vunpack.c.l.b16 %v342
      %v411 = vunpack.c.l.b16 %v343
      %v412 = vunpack.c.l.b16 %v344
      %v413 = vunpack.c.l.b16 %v345
      %v414 = vunpack.c.l.b16 %v346
      %v415 = vunpack.c.l.b16 %v347
      %v416 = vunpack.c.l.b16 %v348
      %v417 = vunpack.c.l.b16 %v349
      %v418 = vpack.c.b16 %v387, %v386
      %v419 = vpack.c.b16 %v389, %v388
      %v420 = vpack.c.b16 %v391, %v390
      %v421 = vpack.c.b16 %v393, %v392
      %v422 = vpack.c.b16 %v395, %v394
      %v423 = vpack.c.b16 %v397, %v396
      %v424 = vpack.c.b16 %v399, %v398
      %v425 = vpack.c.b16 %v401, %v400
      %v426 = vpack.c.b16 %v403, %v402
      %v427 = vpack.c.b16 %v405, %v404
      %v428 = vpack.c.b16 %v407, %v406
      %v429 = vpack.c.b16 %v409, %v408
      %v430 = vpack.c.b16 %v411, %v410
      %v431 = vpack.c.b16 %v413, %v412
      %v432 = vpack.c.b16 %v415, %v414
      %v433 = vpack.c.b16 %v417, %v416
      %v438 = vunpack.c.l.b16 %v350
      %v439 = vunpack.c.l.b16 %v351
      %v440 = vunpack.c.l.b16 %v352
      %v441 = vunpack.c.l.b16 %v353
      %v442 = vpack.c.b16 %v439, %v438
      %v443 = vpack.c.b16 %v441, %v440
      %vm446 = vcmask 261120
      %v448 = vsel %vm446, %v418, 0
      %v451 = vsel %vm446, %v419, 0
      %v454 = vsel %vm446, %v420, 0
      %v457 = vsel %vm446, %v421, 0
      %v460 = vsel %vm446, %v422, 0
      %v463 = vsel %vm446, %v423, 0
      %v466 = vsel %vm446, %v424, 0
      %v469 = vsel %vm446, %v425, 0
      %v472 = vsel %vm446, %v426, 0
      %v475 = vsel %vm446, %v427, 0
      %v478 = vsel %vm446, %v428, 0
      %v481 = vsel %vm446, %v429, 0
      %v484 = vsel %vm446, %v430, 0
      %v487 = vsel %vm446, %v431, 0
      %v490 = vsel %vm446, %v432, 0
      %v493 = vsel %vm446, %v433, 0
      %495 = vmatpush.bf16.msra.mxu0 0
      %496 = vmatpush.bf16.msra.mxu0 0
      %497 = vmatpush.bf16.msra.mxu0 0
      %498 = vmatpush.bf16.msra.mxu0 0
      %499 = vmatpush.bf16.msra.mxu0 0
      %500 = vmatpush.bf16.msra.mxu0 0
      %501 = vmatpush.bf16.msra.mxu0 %v443
      %502 = vmatpush.bf16.msra.mxu0 %v442
      %503 = vmatmul.bf16.gmra.mxu0 %v448
      %v504 = vpop.f32.mrf.mxu0
      %v505 = vadd.f32 0.0, %v504
      %v506 = vpop.f32.mrf.mxu0
      %v507 = vadd.f32 0.0, %v506
      %508 = vmatmul.bf16.gmra.mxu0 %v451
      %v509 = vpop.f32.mrf.mxu0
      %v510 = vadd.f32 0.0, %v509
      %v511 = vpop.f32.mrf.mxu0
      %v512 = vadd.f32 0.0, %v511
      %513 = vmatmul.bf16.gmra.mxu0 %v454
      %v514 = vpop.f32.mrf.mxu0
      %v515 = vadd.f32 0.0, %v514
      %v516 = vpop.f32.mrf.mxu0
      %v517 = vadd.f32 0.0, %v516
      %518 = vmatmul.bf16.gmra.mxu0 %v457
      %v519 = vpop.f32.mrf.mxu0
      %v520 = vadd.f32 0.0, %v519
      %v521 = vpop.f32.mrf.mxu0
      %v522 = vadd.f32 0.0, %v521
      %523 = vmatmul.bf16.gmra.mxu0 %v460
      %v524 = vpop.f32.mrf.mxu0
      %v525 = vadd.f32 0.0, %v524
      %v526 = vpop.f32.mrf.mxu0
      %v527 = vadd.f32 0.0, %v526
      %528 = vmatmul.bf16.gmra.mxu0 %v463
      %v529 = vpop.f32.mrf.mxu0
      %v530 = vadd.f32 0.0, %v529
      %v531 = vpop.f32.mrf.mxu0
      %v532 = vadd.f32 0.0, %v531
      %533 = vmatmul.bf16.gmra.mxu0 %v466
      %v534 = vpop.f32.mrf.mxu0
      %v535 = vadd.f32 0.0, %v534
      %v536 = vpop.f32.mrf.mxu0
      %v537 = vadd.f32 0.0, %v536
      %538 = vmatmul.bf16.gmra.mxu0 %v469
      %v539 = vpop.f32.mrf.mxu0
      %v540 = vadd.f32 0.0, %v539
      %v541 = vpop.f32.mrf.mxu0
      %v542 = vadd.f32 0.0, %v541
      %543 = vmatmul.bf16.gmra.mxu0 %v472
      %v544 = vpop.f32.mrf.mxu0
      %v545 = vadd.f32 0.0, %v544
      %v546 = vpop.f32.mrf.mxu0
      %v547 = vadd.f32 0.0, %v546
      %548 = vmatmul.bf16.gmra.mxu0 %v475
      %v549 = vpop.f32.mrf.mxu0
      %v550 = vadd.f32 0.0, %v549
      %v551 = vpop.f32.mrf.mxu0
      %v552 = vadd.f32 0.0, %v551
      %553 = vmatmul.bf16.gmra.mxu0 %v478
      %v554 = vpop.f32.mrf.mxu0
      %v555 = vadd.f32 0.0, %v554
      %v556 = vpop.f32.mrf.mxu0
      %v557 = vadd.f32 0.0, %v556
      %558 = vmatmul.bf16.gmra.mxu0 %v481
      %v559 = vpop.f32.mrf.mxu0
      %v560 = vadd.f32 0.0, %v559
      %v561 = vpop.f32.mrf.mxu0
      %v562 = vadd.f32 0.0, %v561
      %563 = vmatmul.bf16.gmra.mxu0 %v484
      %v564 = vpop.f32.mrf.mxu0
      %v565 = vadd.f32 0.0, %v564
      %v566 = vpop.f32.mrf.mxu0
      %v567 = vadd.f32 0.0, %v566
      %568 = vmatmul.bf16.gmra.mxu0 %v487
      %v569 = vpop.f32.mrf.mxu0
      %v570 = vadd.f32 0.0, %v569
      %v571 = vpop.f32.mrf.mxu0
      %v572 = vadd.f32 0.0, %v571
      %573 = vmatmul.bf16.gmra.mxu0 %v490
      %v574 = vpop.f32.mrf.mxu0
      %v575 = vadd.f32 0.0, %v574
      %v576 = vpop.f32.mrf.mxu0
      %v577 = vadd.f32 0.0, %v576
      %578 = vmatmul.bf16.gmra.mxu0 %v493
      %v579 = vpop.f32.mrf.mxu0
      %v580 = vadd.f32 0.0, %v579
      %v581 = vpop.f32.mrf.mxu0
      %v582 = vadd.f32 0.0, %v581
      %583 = vdwg.mxu0
      %v584 = vld [vmem:[%s2] sm:$0x1]
      %v586 = vperm.slane %v584, 0
      %v588 = vmul.f32 %v505, %v586
      %v589 = vmul.f32 %v507, %v586
      %v590 = vmul.f32 %v510, %v586
      %v591 = vmul.f32 %v512, %v586
      %v592 = vmul.f32 %v515, %v586
      %v593 = vmul.f32 %v517, %v586
      %v594 = vmul.f32 %v520, %v586
      %v595 = vmul.f32 %v522, %v586
      %v596 = vmul.f32 %v525, %v586
      %v597 = vmul.f32 %v527, %v586
      %v598 = vmul.f32 %v530, %v586
      %v599 = vmul.f32 %v532, %v586
      %v600 = vmul.f32 %v535, %v586
      %v601 = vmul.f32 %v537, %v586
      %v602 = vmul.f32 %v540, %v586
      %v603 = vmul.f32 %v542, %v586
      %v604 = vmul.f32 %v545, %v586
      %v605 = vmul.f32 %v547, %v586
      %v606 = vmul.f32 %v550, %v586
      %v607 = vmul.f32 %v552, %v586
      %v608 = vmul.f32 %v555, %v586
      %v609 = vmul.f32 %v557, %v586
      %v610 = vmul.f32 %v560, %v586
      %v611 = vmul.f32 %v562, %v586
      %v612 = vmul.f32 %v565, %v586
      %v613 = vmul.f32 %v567, %v586
      %v614 = vmul.f32 %v570, %v586
      %v615 = vmul.f32 %v572, %v586
      %v616 = vmul.f32 %v575, %v586
      %v617 = vmul.f32 %v577, %v586
      %v618 = vmul.f32 %v580, %v586
      %v619 = vmul.f32 %v582, %v586
      %v620 = vld [vmem:[%s3] sm:$0x1]
      %v622 = vperm.slane %v620, 0
      %v624 = vadd.f32 %v588, %v622
      %v625 = vadd.f32 %v589, %v622
      %v626 = vadd.f32 %v590, %v622
      %v627 = vadd.f32 %v591, %v622
      %v628 = vadd.f32 %v592, %v622
      %v629 = vadd.f32 %v593, %v622
      %v630 = vadd.f32 %v594, %v622
      %v631 = vadd.f32 %v595, %v622
      %v632 = vadd.f32 %v596, %v622
      %v633 = vadd.f32 %v597, %v622
      %v634 = vadd.f32 %v598, %v622
      %v635 = vadd.f32 %v599, %v622
      %v636 = vadd.f32 %v600, %v622
      %v637 = vadd.f32 %v601, %v622
      %v638 = vadd.f32 %v602, %v622
      %v639 = vadd.f32 %v603, %v622
      %v640 = vadd.f32 %v604, %v622
      %v641 = vadd.f32 %v605, %v622
      %v642 = vadd.f32 %v606, %v622
      %v643 = vadd.f32 %v607, %v622
      %v644 = vadd.f32 %v608, %v622
      %v645 = vadd.f32 %v609, %v622
      %v646 = vadd.f32 %v610, %v622
      %v647 = vadd.f32 %v611, %v622
      %v648 = vadd.f32 %v612, %v622
      %v649 = vadd.f32 %v613, %v622
      %v650 = vadd.f32 %v614, %v622
      %v651 = vadd.f32 %v615, %v622
      %v652 = vadd.f32 %v616, %v622
      %v653 = vadd.f32 %v617, %v622
      %v654 = vadd.f32 %v618, %v622
      %v655 = vadd.f32 %v619, %v622
      %v656 = vmax.f32 %v624, 0.0
      %v657 = vmax.f32 %v625, 0.0
      %v658 = vmax.f32 %v626, 0.0
      %v659 = vmax.f32 %v627, 0.0
      %v660 = vmax.f32 %v628, 0.0
      %v661 = vmax.f32 %v629, 0.0
      %v662 = vmax.f32 %v630, 0.0
      %v663 = vmax.f32 %v631, 0.0
      %v664 = vmax.f32 %v632, 0.0
      %v665 = vmax.f32 %v633, 0.0
      %v666 = vmax.f32 %v634, 0.0
      %v667 = vmax.f32 %v635, 0.0
      %v668 = vmax.f32 %v636, 0.0
      %v669 = vmax.f32 %v637, 0.0
      %v670 = vmax.f32 %v638, 0.0
      %v671 = vmax.f32 %v639, 0.0
      %v672 = vmax.f32 %v640, 0.0
      %v673 = vmax.f32 %v641, 0.0
      %v674 = vmax.f32 %v642, 0.0
      %v675 = vmax.f32 %v643, 0.0
      %v676 = vmax.f32 %v644, 0.0
      %v677 = vmax.f32 %v645, 0.0
      %v678 = vmax.f32 %v646, 0.0
      %v679 = vmax.f32 %v647, 0.0
      %v680 = vmax.f32 %v648, 0.0
      %v681 = vmax.f32 %v649, 0.0
      %v682 = vmax.f32 %v650, 0.0
      %v683 = vmax.f32 %v651, 0.0
      %v684 = vmax.f32 %v652, 0.0
      %v685 = vmax.f32 %v653, 0.0
      %v686 = vmax.f32 %v654, 0.0
      %v687 = vmax.f32 %v655, 0.0
      %vm688 = vcmask 60416
      %689 = vst.msk [vmem:[#allocation2] sm:$0xf] %vm688, 0
      %690 = vst.msk [vmem:[#allocation2 + $0x4] sm:$0xf] %vm688, 0
      %691 = vst.msk [vmem:[#allocation2 + $0x8] sm:$0xf] %vm688, 0
      %692 = vst.msk [vmem:[#allocation2 + $0xc] sm:$0xf] %vm688, 0
      %693 = vst.msk [vmem:[#allocation2 + $0x10] sm:$0xf] %vm688, 0
      %694 = vst.msk [vmem:[#allocation2 + $0x14] sm:$0xf] %vm688, 0
      %695 = vst.msk [vmem:[#allocation2 + $0x18] sm:$0xf] %vm688, 0
      %696 = vst.msk [vmem:[#allocation2 + $0x1c] sm:$0xf] %vm688, 0
      %697 = vst.msk [vmem:[#allocation2 + $0x20] sm:$0xf] %vm688, 0
      %698 = vst.msk [vmem:[#allocation2 + $0x24] sm:$0xf] %vm688, 0
      %699 = vst.msk [vmem:[#allocation2 + $0x28] sm:$0xf] %vm688, 0
      %700 = vst.msk [vmem:[#allocation2 + $0x2c] sm:$0xf] %vm688, 0
      %701 = vst.msk [vmem:[#allocation2 + $0x30] sm:$0xf] %vm688, 0
      %702 = vst.msk [vmem:[#allocation2 + $0x34] sm:$0xf] %vm688, 0
      %703 = vst.msk [vmem:[#allocation2 + $0x38] sm:$0xf] %vm688, 0
      %704 = vst.msk [vmem:[#allocation2 + $0x3c] sm:$0xf] %vm688, 0
      %705 = vst.msk [vmem:[#allocation2 + $0x40] sm:$0xf] %vm688, 0
      %706 = vst.msk [vmem:[#allocation2 + $0x44] sm:$0xf] %vm688, 0
      %707 = vst.msk [vmem:[#allocation2 + $0x48] sm:$0xf] %vm688, 0
      %708 = vst.msk [vmem:[#allocation2 + $0x4c] sm:$0xf] %vm688, 0
      %709 = vst.msk [vmem:[#allocation2 + $0x50] sm:$0xf] %vm688, 0
      %710 = vst.msk [vmem:[#allocation2 + $0x54] sm:$0xf] %vm688, 0
      %711 = vst.msk [vmem:[#allocation2 + $0x58] sm:$0xf] %vm688, 0
      %712 = vst.msk [vmem:[#allocation2 + $0x5c] sm:$0xf] %vm688, 0
      %713 = vst.msk [vmem:[#allocation2 + $0x60] sm:$0xf] %vm688, 0
      %714 = vst.msk [vmem:[#allocation2 + $0x64] sm:$0xf] %vm688, 0
      %715 = vst.msk [vmem:[#allocation2 + $0x68] sm:$0xf] %vm688, 0
      %716 = vst.msk [vmem:[#allocation2 + $0x6c] sm:$0xf] %vm688, 0
      %717 = vst.msk [vmem:[#allocation2 + $0x70] sm:$0xf] %vm688, 0
      %718 = vst.msk [vmem:[#allocation2 + $0x74] sm:$0xf] %vm688, 0
      %719 = vst.msk [vmem:[#allocation2 + $0x78] sm:$0xf] %vm688, 0
      %720 = vst.msk [vmem:[#allocation2 + $0x7c] sm:$0xf] %vm688, 0
      %721 = vst.msk [vmem:[#allocation2 + $0x80] sm:$0xf] %vm688, 0
      %722 = vst.msk [vmem:[#allocation2 + $0x84] sm:$0xf] %vm688, 0
      %723 = vst.msk [vmem:[#allocation2 + $0x88] sm:$0xf] %vm688, 0
      %724 = vst.msk [vmem:[#allocation2 + $0x8c] sm:$0xf] %vm688, 0
      %725 = vst.msk [vmem:[#allocation2 + $0x90] sm:$0xf] %vm688, 0
      %726 = vst.msk [vmem:[#allocation2 + $0x94] sm:$0xf] %vm688, 0
      %v727 = vpack.c.bf16 %v656, %v656
      %v728 = vpack.c.bf16 %v657, %v657
      %v729 = vpack.c.bf16 %v658, %v658
      %v730 = vpack.c.bf16 %v659, %v659
      %v731 = vpack.c.bf16 %v660, %v660
      %v732 = vpack.c.bf16 %v661, %v661
      %v733 = vpack.c.bf16 %v662, %v662
      %v734 = vpack.c.bf16 %v663, %v663
      %v735 = vpack.c.bf16 %v664, %v664
      %v736 = vpack.c.bf16 %v665, %v665
      %v737 = vpack.c.bf16 %v666, %v666
      %v738 = vpack.c.bf16 %v667, %v667
      %v739 = vpack.c.bf16 %v668, %v668
      %v740 = vpack.c.bf16 %v669, %v669
      %v741 = vpack.c.bf16 %v670, %v670
      %v742 = vpack.c.bf16 %v671, %v671
      %v743 = vpack.c.bf16 %v672, %v672
      %v744 = vpack.c.bf16 %v673, %v673
      %v745 = vpack.c.bf16 %v674, %v674
      %v746 = vpack.c.bf16 %v675, %v675
      %v747 = vpack.c.bf16 %v676, %v676
      %v748 = vpack.c.bf16 %v677, %v677
      %v749 = vpack.c.bf16 %v678, %v678
      %v750 = vpack.c.bf16 %v679, %v679
      %v751 = vpack.c.bf16 %v680, %v680
      %v752 = vpack.c.bf16 %v681, %v681
      %v753 = vpack.c.bf16 %v682, %v682
      %v754 = vpack.c.bf16 %v683, %v683
      %v755 = vpack.c.bf16 %v684, %v684
      %v756 = vpack.c.bf16 %v685, %v685
      %v757 = vpack.c.bf16 %v686, %v686
      %v758 = vpack.c.bf16 %v687, %v687
      %759 = vst.msk [vmem:[#allocation2 + $0xc] sm:$0xf] %vm688, %v727
      %760 = vst.msk [vmem:[#allocation2 + $0x10] sm:$0xf] %vm688, %v728
      %761 = vst.msk [vmem:[#allocation2 + $0x14] sm:$0xf] %vm688, %v729
      %762 = vst.msk [vmem:[#allocation2 + $0x18] sm:$0xf] %vm688, %v730
      %763 = vst.msk [vmem:[#allocation2 + $0x1c] sm:$0xf] %vm688, %v731
      %764 = vst.msk [vmem:[#allocation2 + $0x20] sm:$0xf] %vm688, %v732
      %765 = vst.msk [vmem:[#allocation2 + $0x24] sm:$0xf] %vm688, %v733
      %766 = vst.msk [vmem:[#allocation2 + $0x28] sm:$0xf] %vm688, %v734
      %767 = vst.msk [vmem:[#allocation2 + $0x2c] sm:$0xf] %vm688, %v735
      %768 = vst.msk [vmem:[#allocation2 + $0x30] sm:$0xf] %vm688, %v736
      %769 = vst.msk [vmem:[#allocation2 + $0x34] sm:$0xf] %vm688, %v737
      %770 = vst.msk [vmem:[#allocation2 + $0x38] sm:$0xf] %vm688, %v738
      %771 = vst.msk [vmem:[#allocation2 + $0x3c] sm:$0xf] %vm688, %v739
      %772 = vst.msk [vmem:[#allocation2 + $0x40] sm:$0xf] %vm688, %v740
      %773 = vst.msk [vmem:[#allocation2 + $0x44] sm:$0xf] %vm688, %v741
      %774 = vst.msk [vmem:[#allocation2 + $0x48] sm:$0xf] %vm688, %v742
      %775 = vst.msk [vmem:[#allocation2 + $0x4c] sm:$0xf] %vm688, %v743
      %776 = vst.msk [vmem:[#allocation2 + $0x50] sm:$0xf] %vm688, %v744
      %777 = vst.msk [vmem:[#allocation2 + $0x54] sm:$0xf] %vm688, %v745
      %778 = vst.msk [vmem:[#allocation2 + $0x58] sm:$0xf] %vm688, %v746
      %779 = vst.msk [vmem:[#allocation2 + $0x5c] sm:$0xf] %vm688, %v747
      %780 = vst.msk [vmem:[#allocation2 + $0x60] sm:$0xf] %vm688, %v748
      %781 = vst.msk [vmem:[#allocation2 + $0x64] sm:$0xf] %vm688, %v749
      %782 = vst.msk [vmem:[#allocation2 + $0x68] sm:$0xf] %vm688, %v750
      %783 = vst.msk [vmem:[#allocation2 + $0x6c] sm:$0xf] %vm688, %v751
      %784 = vst.msk [vmem:[#allocation2 + $0x70] sm:$0xf] %vm688, %v752
      %785 = vst.msk [vmem:[#allocation2 + $0x74] sm:$0xf] %vm688, %v753
      %786 = vst.msk [vmem:[#allocation2 + $0x78] sm:$0xf] %vm688, %v754
      %787 = vst.msk [vmem:[#allocation2 + $0x7c] sm:$0xf] %vm688, %v755
      %788 = vst.msk [vmem:[#allocation2 + $0x80] sm:$0xf] %vm688, %v756
      %789 = vst.msk [vmem:[#allocation2 + $0x84] sm:$0xf] %vm688, %v757
      %790 = vst.msk [vmem:[#allocation2 + $0x88] sm:$0xf] %vm688, %v758
      %v791 = vlaneseq
      %v792 = vshrl.u32 %v791, 7
      %v793 = vadd.s32 %v792, 8
      %v794 = vadd.s32 %v792, 16
      %v795 = vadd.s32 %v792, 24
      %v796 = vadd.s32 %v792, 32
      %v797 = vadd.s32 %v792, 40
      %v798 = vadd.s32 %v792, 48
      %v799 = vadd.s32 %v792, 56
      %v800 = vadd.s32 %v792, 64
      %v801 = vadd.s32 %v792, 72
      %v802 = vadd.s32 %v792, 80
      %v803 = vadd.s32 %v792, 88
      %v804 = vadd.s32 %v792, 96
      %v805 = vadd.s32 %v792, 104
      %v806 = vadd.s32 %v792, 112
      %v807 = vadd.s32 %v792, 120
      %v808 = vadd.s32 %v792, 128
      %v809 = vadd.s32 %v792, 136
      %v810 = vadd.s32 %v792, 144
      %v811 = vadd.s32 %v792, 152
      %v812 = vadd.s32 %v792, 160
      %v813 = vadd.s32 %v792, 168
      %v814 = vadd.s32 %v792, 176
      %v815 = vadd.s32 %v792, 184
      %v816 = vadd.s32 %v792, 192
      %v817 = vadd.s32 %v792, 200
      %v818 = vadd.s32 %v792, 208
      %v819 = vadd.s32 %v792, 216
      %v820 = vadd.s32 %v792, 224
      %v821 = vadd.s32 %v792, 232
      %v822 = vadd.s32 %v792, 240
      %v823 = vadd.s32 %v792, 248
      %vm824 = vcmp.lt.s32.totalorder %v792, 0
      %v825 = vsub.s32 0, %v792
      %v826 = vsel %vm824, %v825, %v792
      %v827 = vshrl.u32 %v826, 4
      %v828 = vand.u32 %v826, 15
      %v829 = vsub.s32 0, %v828
      %v830 = vsel %vm824, %v829, %v828
      %vm831 = vcmp.lt.s32.totalorder %v793, 0
      %v832 = vsub.s32 0, %v793
      %v833 = vsel %vm831, %v832, %v793
      %v834 = vshrl.u32 %v833, 4
      %v835 = vand.u32 %v833, 15
      %v836 = vsub.s32 0, %v835
      %v837 = vsel %vm831, %v836, %v835
      %vm838 = vcmp.lt.s32.totalorder %v794, 0
      %v839 = vsub.s32 0, %v794
      %v840 = vsel %vm838, %v839, %v794
      %v841 = vshrl.u32 %v840, 4
      %v842 = vand.u32 %v840, 15
      %v843 = vsub.s32 0, %v842
      %v844 = vsel %vm838, %v843, %v842
      %vm845 = vcmp.lt.s32.totalorder %v795, 0
      %v846 = vsub.s32 0, %v795
      %v847 = vsel %vm845, %v846, %v795
      %v848 = vshrl.u32 %v847, 4
      %v849 = vand.u32 %v847, 15
      %v850 = vsub.s32 0, %v849
      %v851 = vsel %vm845, %v850, %v849
      %vm852 = vcmp.lt.s32.totalorder %v796, 0
      %v853 = vsub.s32 0, %v796
      %v854 = vsel %vm852, %v853, %v796
      %v855 = vshrl.u32 %v854, 4
      %v856 = vand.u32 %v854, 15
      %v857 = vsub.s32 0, %v856
      %v858 = vsel %vm852, %v857, %v856
      %vm859 = vcmp.lt.s32.totalorder %v797, 0
      %v860 = vsub.s32 0, %v797
      %v861 = vsel %vm859, %v860, %v797
      %v862 = vshrl.u32 %v861, 4
      %v863 = vand.u32 %v861, 15
      %v864 = vsub.s32 0, %v863
      %v865 = vsel %vm859, %v864, %v863
      %vm866 = vcmp.lt.s32.totalorder %v798, 0
      %v867 = vsub.s32 0, %v798
      %v868 = vsel %vm866, %v867, %v798
      %v869 = vshrl.u32 %v868, 4
      %v870 = vand.u32 %v868, 15
      %v871 = vsub.s32 0, %v870
      %v872 = vsel %vm866, %v871, %v870
      %vm873 = vcmp.lt.s32.totalorder %v799, 0
      %v874 = vsub.s32 0, %v799
      %v875 = vsel %vm873, %v874, %v799
      %v876 = vshrl.u32 %v875, 4
      %v877 = vand.u32 %v875, 15
      %v878 = vsub.s32 0, %v877
      %v879 = vsel %vm873, %v878, %v877
      %vm880 = vcmp.lt.s32.totalorder %v800, 0
      %v881 = vsub.s32 0, %v800
      %v882 = vsel %vm880, %v881, %v800
      %v883 = vshrl.u32 %v882, 4
      %v884 = vand.u32 %v882, 15
      %v885 = vsub.s32 0, %v884
      %v886 = vsel %vm880, %v885, %v884
      %vm887 = vcmp.lt.s32.totalorder %v801, 0
      %v888 = vsub.s32 0, %v801
      %v889 = vsel %vm887, %v888, %v801
      %v890 = vshrl.u32 %v889, 4
      %v891 = vand.u32 %v889, 15
      %v892 = vsub.s32 0, %v891
      %v893 = vsel %vm887, %v892, %v891
      %vm894 = vcmp.lt.s32.totalorder %v802, 0
      %v895 = vsub.s32 0, %v802
      %v896 = vsel %vm894, %v895, %v802
      %v897 = vshrl.u32 %v896, 4
      %v898 = vand.u32 %v896, 15
      %v899 = vsub.s32 0, %v898
      %v900 = vsel %vm894, %v899, %v898
      %vm901 = vcmp.lt.s32.totalorder %v803, 0
      %v902 = vsub.s32 0, %v803
      %v903 = vsel %vm901, %v902, %v803
      %v904 = vshrl.u32 %v903, 4
      %v905 = vand.u32 %v903, 15
      %v906 = vsub.s32 0, %v905
      %v907 = vsel %vm901, %v906, %v905
      %vm908 = vcmp.lt.s32.totalorder %v804, 0
      %v909 = vsub.s32 0, %v804
      %v910 = vsel %vm908, %v909, %v804
      %v911 = vshrl.u32 %v910, 4
      %v912 = vand.u32 %v910, 15
      %v913 = vsub.s32 0, %v912
      %v914 = vsel %vm908, %v913, %v912
      %vm915 = vcmp.lt.s32.totalorder %v805, 0
      %v916 = vsub.s32 0, %v805
      %v917 = vsel %vm915, %v916, %v805
      %v918 = vshrl.u32 %v917, 4
      %v919 = vand.u32 %v917, 15
      %v920 = vsub.s32 0, %v919
      %v921 = vsel %vm915, %v920, %v919
      %vm922 = vcmp.lt.s32.totalorder %v806, 0
      %v923 = vsub.s32 0, %v806
      %v924 = vsel %vm922, %v923, %v806
      %v925 = vshrl.u32 %v924, 4
      %v926 = vand.u32 %v924, 15
      %v927 = vsub.s32 0, %v926
      %v928 = vsel %vm922, %v927, %v926
      %vm929 = vcmp.lt.s32.totalorder %v807, 0
      %v930 = vsub.s32 0, %v807
      %v931 = vsel %vm929, %v930, %v807
      %v932 = vshrl.u32 %v931, 4
      %v933 = vand.u32 %v931, 15
      %v934 = vsub.s32 0, %v933
      %v935 = vsel %vm929, %v934, %v933
      %vm936 = vcmp.lt.s32.totalorder %v808, 0
      %v937 = vsub.s32 0, %v808
      %v938 = vsel %vm936, %v937, %v808
      %v939 = vshrl.u32 %v938, 4
      %v940 = vand.u32 %v938, 15
      %v941 = vsub.s32 0, %v940
      %v942 = vsel %vm936, %v941, %v940
      %vm943 = vcmp.lt.s32.totalorder %v809, 0
      %v944 = vsub.s32 0, %v809
      %v945 = vsel %vm943, %v944, %v809
      %v946 = vshrl.u32 %v945, 4
      %v947 = vand.u32 %v945, 15
      %v948 = vsub.s32 0, %v947
      %v949 = vsel %vm943, %v948, %v947
      %vm950 = vcmp.lt.s32.totalorder %v810, 0
      %v951 = vsub.s32 0, %v810
      %v952 = vsel %vm950, %v951, %v810
      %v953 = vshrl.u32 %v952, 4
      %v954 = vand.u32 %v952, 15
      %v955 = vsub.s32 0, %v954
      %v956 = vsel %vm950, %v955, %v954
      %vm957 = vcmp.lt.s32.totalorder %v811, 0
      %v958 = vsub.s32 0, %v811
      %v959 = vsel %vm957, %v958, %v811
      %v960 = vshrl.u32 %v959, 4
      %v961 = vand.u32 %v959, 15
      %v962 = vsub.s32 0, %v961
      %v963 = vsel %vm957, %v962, %v961
      %vm964 = vcmp.lt.s32.totalorder %v812, 0
      %v965 = vsub.s32 0, %v812
      %v966 = vsel %vm964, %v965, %v812
      %v967 = vshrl.u32 %v966, 4
      %v968 = vand.u32 %v966, 15
      %v969 = vsub.s32 0, %v968
      %v970 = vsel %vm964, %v969, %v968
      %vm971 = vcmp.lt.s32.totalorder %v813, 0
      %v972 = vsub.s32 0, %v813
      %v973 = vsel %vm971, %v972, %v813
      %v974 = vshrl.u32 %v973, 4
      %v975 = vand.u32 %v973, 15
      %v976 = vsub.s32 0, %v975
      %v977 = vsel %vm971, %v976, %v975
      %vm978 = vcmp.lt.s32.totalorder %v814, 0
      %v979 = vsub.s32 0, %v814
      %v980 = vsel %vm978, %v979, %v814
      %v981 = vshrl.u32 %v980, 4
      %v982 = vand.u32 %v980, 15
      %v983 = vsub.s32 0, %v982
      %v984 = vsel %vm978, %v983, %v982
      %vm985 = vcmp.lt.s32.totalorder %v815, 0
      %v986 = vsub.s32 0, %v815
      %v987 = vsel %vm985, %v986, %v815
      %v988 = vshrl.u32 %v987, 4
      %v989 = vand.u32 %v987, 15
      %v990 = vsub.s32 0, %v989
      %v991 = vsel %vm985, %v990, %v989
      %vm992 = vcmp.lt.s32.totalorder %v816, 0
      %v993 = vsub.s32 0, %v816
      %v994 = vsel %vm992, %v993, %v816
      %v995 = vshrl.u32 %v994, 4
      %v996 = vand.u32 %v994, 15
      %v997 = vsub.s32 0, %v996
      %v998 = vsel %vm992, %v997, %v996
      %vm999 = vcmp.lt.s32.totalorder %v817, 0
      %v1000 = vsub.s32 0, %v817
      %v1001 = vsel %vm999, %v1000, %v817
      %v1002 = vshrl.u32 %v1001, 4
      %v1003 = vand.u32 %v1001, 15
      %v1004 = vsub.s32 0, %v1003
      %v1005 = vsel %vm999, %v1004, %v1003
      %vm1006 = vcmp.lt.s32.totalorder %v818, 0
      %v1007 = vsub.s32 0, %v818
      %v1008 = vsel %vm1006, %v1007, %v818
      %v1009 = vshrl.u32 %v1008, 4
      %v1010 = vand.u32 %v1008, 15
      %v1011 = vsub.s32 0, %v1010
      %v1012 = vsel %vm1006, %v1011, %v1010
      %vm1013 = vcmp.lt.s32.totalorder %v819, 0
      %v1014 = vsub.s32 0, %v819
      %v1015 = vsel %vm1013, %v1014, %v819
      %v1016 = vshrl.u32 %v1015, 4
      %v1017 = vand.u32 %v1015, 15
      %v1018 = vsub.s32 0, %v1017
      %v1019 = vsel %vm1013, %v1018, %v1017
      %vm1020 = vcmp.lt.s32.totalorder %v820, 0
      %v1021 = vsub.s32 0, %v820
      %v1022 = vsel %vm1020, %v1021, %v820
      %v1023 = vshrl.u32 %v1022, 4
      %v1024 = vand.u32 %v1022, 15
      %v1025 = vsub.s32 0, %v1024
      %v1026 = vsel %vm1020, %v1025, %v1024
      %vm1027 = vcmp.lt.s32.totalorder %v821, 0
      %v1028 = vsub.s32 0, %v821
      %v1029 = vsel %vm1027, %v1028, %v821
      %v1030 = vshrl.u32 %v1029, 4
      %v1031 = vand.u32 %v1029, 15
      %v1032 = vsub.s32 0, %v1031
      %v1033 = vsel %vm1027, %v1032, %v1031
      %vm1034 = vcmp.lt.s32.totalorder %v822, 0
      %v1035 = vsub.s32 0, %v822
      %v1036 = vsel %vm1034, %v1035, %v822
      %v1037 = vshrl.u32 %v1036, 4
      %v1038 = vand.u32 %v1036, 15
      %v1039 = vsub.s32 0, %v1038
      %v1040 = vsel %vm1034, %v1039, %v1038
      %vm1041 = vcmp.lt.s32.totalorder %v823, 0
      %v1042 = vsub.s32 0, %v823
      %v1043 = vsel %vm1041, %v1042, %v823
      %v1044 = vshrl.u32 %v1043, 4
      %v1045 = vand.u32 %v1043, 15
      %v1046 = vsub.s32 0, %v1045
      %v1047 = vsel %vm1041, %v1046, %v1045
      %vm1048 = vcmp.ne.s32.totalorder %v830, 0
      %vm1049 = vcmp.ne.s32.totalorder %v837, 0
      %vm1050 = vcmp.ne.s32.totalorder %v844, 0
      %vm1051 = vcmp.ne.s32.totalorder %v851, 0
      %vm1052 = vcmp.ne.s32.totalorder %v858, 0
      %vm1053 = vcmp.ne.s32.totalorder %v865, 0
      %vm1054 = vcmp.ne.s32.totalorder %v872, 0
      %vm1055 = vcmp.ne.s32.totalorder %v879, 0
      %vm1056 = vcmp.ne.s32.totalorder %v886, 0
      %vm1057 = vcmp.ne.s32.totalorder %v893, 0
      %vm1058 = vcmp.ne.s32.totalorder %v900, 0
      %vm1059 = vcmp.ne.s32.totalorder %v907, 0
      %vm1060 = vcmp.ne.s32.totalorder %v914, 0
      %vm1061 = vcmp.ne.s32.totalorder %v921, 0
      %vm1062 = vcmp.ne.s32.totalorder %v928, 0
      %vm1063 = vcmp.ne.s32.totalorder %v935, 0
      %vm1064 = vcmp.ne.s32.totalorder %v942, 0
      %vm1065 = vcmp.ne.s32.totalorder %v949, 0
      %vm1066 = vcmp.ne.s32.totalorder %v956, 0
      %vm1067 = vcmp.ne.s32.totalorder %v963, 0
      %vm1068 = vcmp.ne.s32.totalorder %v970, 0
      %vm1069 = vcmp.ne.s32.totalorder %v977, 0
      %vm1070 = vcmp.ne.s32.totalorder %v984, 0
      %vm1071 = vcmp.ne.s32.totalorder %v991, 0
      %vm1072 = vcmp.ne.s32.totalorder %v998, 0
      %vm1073 = vcmp.ne.s32.totalorder %v1005, 0
      %vm1074 = vcmp.ne.s32.totalorder %v1012, 0
      %vm1075 = vcmp.ne.s32.totalorder %v1019, 0
      %vm1076 = vcmp.ne.s32.totalorder %v1026, 0
      %vm1077 = vcmp.ne.s32.totalorder %v1033, 0
      %vm1078 = vcmp.ne.s32.totalorder %v1040, 0
      %vm1079 = vcmp.ne.s32.totalorder %v1047, 0
      %vm1080 = vcmp.lt.s32.totalorder %v830, 0
      %vm1081 = vcmp.lt.s32.totalorder %v837, 0
      %vm1082 = vcmp.lt.s32.totalorder %v844, 0
      %vm1083 = vcmp.lt.s32.totalorder %v851, 0
      %vm1084 = vcmp.lt.s32.totalorder %v858, 0
      %vm1085 = vcmp.lt.s32.totalorder %v865, 0
      %vm1086 = vcmp.lt.s32.totalorder %v872, 0
      %vm1087 = vcmp.lt.s32.totalorder %v879, 0
      %vm1088 = vcmp.lt.s32.totalorder %v886, 0
      %vm1089 = vcmp.lt.s32.totalorder %v893, 0
      %vm1090 = vcmp.lt.s32.totalorder %v900, 0
      %vm1091 = vcmp.lt.s32.totalorder %v907, 0
      %vm1092 = vcmp.lt.s32.totalorder %v914, 0
      %vm1093 = vcmp.lt.s32.totalorder %v921, 0
      %vm1094 = vcmp.lt.s32.totalorder %v928, 0
      %vm1095 = vcmp.lt.s32.totalorder %v935, 0
      %vm1096 = vcmp.lt.s32.totalorder %v942, 0
      %vm1097 = vcmp.lt.s32.totalorder %v949, 0
      %vm1098 = vcmp.lt.s32.totalorder %v956, 0
      %vm1099 = vcmp.lt.s32.totalorder %v963, 0
      %vm1100 = vcmp.lt.s32.totalorder %v970, 0
      %vm1101 = vcmp.lt.s32.totalorder %v977, 0
      %vm1102 = vcmp.lt.s32.totalorder %v984, 0
      %vm1103 = vcmp.lt.s32.totalorder %v991, 0
      %vm1104 = vcmp.lt.s32.totalorder %v998, 0
      %vm1105 = vcmp.lt.s32.totalorder %v1005, 0
      %vm1106 = vcmp.lt.s32.totalorder %v1012, 0
      %vm1107 = vcmp.lt.s32.totalorder %v1019, 0
      %vm1108 = vcmp.lt.s32.totalorder %v1026, 0
      %vm1109 = vcmp.lt.s32.totalorder %v1033, 0
      %vm1110 = vcmp.lt.s32.totalorder %v1040, 0
      %vm1111 = vcmp.lt.s32.totalorder %v1047, 0
      %vm1112 = vmand %vm1080, %vm1048
      %vm1113 = vmand %vm1081, %vm1049
      %vm1114 = vmand %vm1082, %vm1050
      %vm1115 = vmand %vm1083, %vm1051
      %vm1116 = vmand %vm1084, %vm1052
      %vm1117 = vmand %vm1085, %vm1053
      %vm1118 = vmand %vm1086, %vm1054
      %vm1119 = vmand %vm1087, %vm1055
      %vm1120 = vmand %vm1088, %vm1056
      %vm1121 = vmand %vm1089, %vm1057
      %vm1122 = vmand %vm1090, %vm1058
      %vm1123 = vmand %vm1091, %vm1059
      %vm1124 = vmand %vm1092, %vm1060
      %vm1125 = vmand %vm1093, %vm1061
      %vm1126 = vmand %vm1094, %vm1062
      %vm1127 = vmand %vm1095, %vm1063
      %vm1128 = vmand %vm1096, %vm1064
      %vm1129 = vmand %vm1097, %vm1065
      %vm1130 = vmand %vm1098, %vm1066
      %vm1131 = vmand %vm1099, %vm1067
      %vm1132 = vmand %vm1100, %vm1068
      %vm1133 = vmand %vm1101, %vm1069
      %vm1134 = vmand %vm1102, %vm1070
      %vm1135 = vmand %vm1103, %vm1071
      %vm1136 = vmand %vm1104, %vm1072
      %vm1137 = vmand %vm1105, %vm1073
      %vm1138 = vmand %vm1106, %vm1074
      %vm1139 = vmand %vm1107, %vm1075
      %vm1140 = vmand %vm1108, %vm1076
      %vm1141 = vmand %vm1109, %vm1077
      %vm1142 = vmand %vm1110, %vm1078
      %vm1143 = vmand %vm1111, %vm1079
      %v1144 = vadd.s32 %v830, 16
      %v1145 = vadd.s32 %v837, 16
      %v1146 = vadd.s32 %v844, 16
      %v1147 = vadd.s32 %v851, 16
      %v1148 = vadd.s32 %v858, 16
      %v1149 = vadd.s32 %v865, 16
      %v1150 = vadd.s32 %v872, 16
      %v1151 = vadd.s32 %v879, 16
      %v1152 = vadd.s32 %v886, 16
      %v1153 = vadd.s32 %v893, 16
      %v1154 = vadd.s32 %v900, 16
      %v1155 = vadd.s32 %v907, 16
      %v1156 = vadd.s32 %v914, 16
      %v1157 = vadd.s32 %v921, 16
      %v1158 = vadd.s32 %v928, 16
      %v1159 = vadd.s32 %v935, 16
      %v1160 = vadd.s32 %v942, 16
      %v1161 = vadd.s32 %v949, 16
      %v1162 = vadd.s32 %v956, 16
      %v1163 = vadd.s32 %v963, 16
      %v1164 = vadd.s32 %v970, 16
      %v1165 = vadd.s32 %v977, 16
      %v1166 = vadd.s32 %v984, 16
      %v1167 = vadd.s32 %v991, 16
      %v1168 = vadd.s32 %v998, 16
      %v1169 = vadd.s32 %v1005, 16
      %v1170 = vadd.s32 %v1012, 16
      %v1171 = vadd.s32 %v1019, 16
      %v1172 = vadd.s32 %v1026, 16
      %v1173 = vadd.s32 %v1033, 16
      %v1174 = vadd.s32 %v1040, 16
      %v1175 = vadd.s32 %v1047, 16
      %v1176 = vsel %vm1112, %v1144, %v830
      %v1177 = vsel %vm1113, %v1145, %v837
      %v1178 = vsel %vm1114, %v1146, %v844
      %v1179 = vsel %vm1115, %v1147, %v851
      %v1180 = vsel %vm1116, %v1148, %v858
      %v1181 = vsel %vm1117, %v1149, %v865
      %v1182 = vsel %vm1118, %v1150, %v872
      %v1183 = vsel %vm1119, %v1151, %v879
      %v1184 = vsel %vm1120, %v1152, %v886
      %v1185 = vsel %vm1121, %v1153, %v893
      %v1186 = vsel %vm1122, %v1154, %v900
      %v1187 = vsel %vm1123, %v1155, %v907
      %v1188 = vsel %vm1124, %v1156, %v914
      %v1189 = vsel %vm1125, %v1157, %v921
      %v1190 = vsel %vm1126, %v1158, %v928
      %v1191 = vsel %vm1127, %v1159, %v935
      %v1192 = vsel %vm1128, %v1160, %v942
      %v1193 = vsel %vm1129, %v1161, %v949
      %v1194 = vsel %vm1130, %v1162, %v956
      %v1195 = vsel %vm1131, %v1163, %v963
      %v1196 = vsel %vm1132, %v1164, %v970
      %v1197 = vsel %vm1133, %v1165, %v977
      %v1198 = vsel %vm1134, %v1166, %v984
      %v1199 = vsel %vm1135, %v1167, %v991
      %v1200 = vsel %vm1136, %v1168, %v998
      %v1201 = vsel %vm1137, %v1169, %v1005
      %v1202 = vsel %vm1138, %v1170, %v1012
      %v1203 = vsel %vm1139, %v1171, %v1019
      %v1204 = vsel %vm1140, %v1172, %v1026
      %v1205 = vsel %vm1141, %v1173, %v1033
      %v1206 = vsel %vm1142, %v1174, %v1040
      %v1207 = vsel %vm1143, %v1175, %v1047
      %v1208 = vld [vmem:[#allocation2] sm:$0x8]
      %v1209 = vld [vmem:[#allocation2 + $0x4] sm:$0xf]
      %v1210 = vld [vmem:[#allocation2 + $0x8] sm:$0xf]
      %v1211 = vld [vmem:[#allocation2 + $0xc] sm:$0xf]
      %v1212 = vld [vmem:[#allocation2 + $0x10] sm:$0xf]
      %v1213 = vld [vmem:[#allocation2 + $0x14] sm:$0xf]
      %v1214 = vld [vmem:[#allocation2 + $0x18] sm:$0xf]
      %v1215 = vld [vmem:[#allocation2 + $0x1c] sm:$0xf]
      %v1216 = vld [vmem:[#allocation2 + $0x20] sm:$0xf]
      %v1217 = vld [vmem:[#allocation2 + $0x24] sm:$0xf]
      %v1218 = vld [vmem:[#allocation2 + $0x28] sm:$0xf]
      %v1219 = vld [vmem:[#allocation2 + $0x2c] sm:$0xf]
      %v1220 = vld [vmem:[#allocation2 + $0x30] sm:$0xf]
      %v1221 = vld [vmem:[#allocation2 + $0x34] sm:$0xf]
      %v1222 = vld [vmem:[#allocation2 + $0x38] sm:$0xf]
      %v1223 = vld [vmem:[#allocation2 + $0x3c] sm:$0xf]
      %v1224 = vld [vmem:[#allocation2 + $0x40] sm:$0xf]
      %v1225 = vld [vmem:[#allocation2 + $0x44] sm:$0xf]
      %v1226 = vld [vmem:[#allocation2 + $0x48] sm:$0xf]
      %v1227 = vld [vmem:[#allocation2 + $0x4c] sm:$0xf]
      %v1228 = vld [vmem:[#allocation2 + $0x50] sm:$0xf]
      %v1229 = vld [vmem:[#allocation2 + $0x54] sm:$0xf]
      %v1230 = vld [vmem:[#allocation2 + $0x58] sm:$0xf]
      %v1231 = vld [vmem:[#allocation2 + $0x5c] sm:$0xf]
      %v1232 = vld [vmem:[#allocation2 + $0x60] sm:$0xf]
      %v1233 = vld [vmem:[#allocation2 + $0x64] sm:$0xf]
      %v1234 = vld [vmem:[#allocation2 + $0x68] sm:$0xf]
      %v1235 = vld [vmem:[#allocation2 + $0x6c] sm:$0xf]
      %v1236 = vld [vmem:[#allocation2 + $0x70] sm:$0xf]
      %v1237 = vld [vmem:[#allocation2 + $0x74] sm:$0xf]
      %v1238 = vld [vmem:[#allocation2 + $0x78] sm:$0xf]
      %v1239 = vld [vmem:[#allocation2 + $0x7c] sm:$0xf]
      %v1240 = vld [vmem:[#allocation2 + $0x80] sm:$0xf]
      %vm1241 = vcmp.gt.s32.totalorder %v1176, 0
      %vm1242 = vcmp.gt.s32.totalorder %v1177, 0
      %vm1243 = vcmp.gt.s32.totalorder %v1178, 0
      %vm1244 = vcmp.gt.s32.totalorder %v1179, 0
      %vm1245 = vcmp.gt.s32.totalorder %v1180, 0
      %vm1246 = vcmp.gt.s32.totalorder %v1181, 0
      %vm1247 = vcmp.gt.s32.totalorder %v1182, 0
      %vm1248 = vcmp.gt.s32.totalorder %v1183, 0
      %vm1249 = vcmp.gt.s32.totalorder %v1184, 0
      %vm1250 = vcmp.gt.s32.totalorder %v1185, 0
      %vm1251 = vcmp.gt.s32.totalorder %v1186, 0
      %vm1252 = vcmp.gt.s32.totalorder %v1187, 0
      %vm1253 = vcmp.gt.s32.totalorder %v1188, 0
      %vm1254 = vcmp.gt.s32.totalorder %v1189, 0
      %vm1255 = vcmp.gt.s32.totalorder %v1190, 0
      %vm1256 = vcmp.gt.s32.totalorder %v1191, 0
      %vm1257 = vcmp.gt.s32.totalorder %v1192, 0
      %vm1258 = vcmp.gt.s32.totalorder %v1193, 0
      %vm1259 = vcmp.gt.s32.totalorder %v1194, 0
      %vm1260 = vcmp.gt.s32.totalorder %v1195, 0
      %vm1261 = vcmp.gt.s32.totalorder %v1196, 0
      %vm1262 = vcmp.gt.s32.totalorder %v1197, 0
      %vm1263 = vcmp.gt.s32.totalorder %v1198, 0
      %vm1264 = vcmp.gt.s32.totalorder %v1199, 0
      %vm1265 = vcmp.gt.s32.totalorder %v1200, 0
      %vm1266 = vcmp.gt.s32.totalorder %v1201, 0
      %vm1267 = vcmp.gt.s32.totalorder %v1202, 0
      %vm1268 = vcmp.gt.s32.totalorder %v1203, 0
      %vm1269 = vcmp.gt.s32.totalorder %v1204, 0
      %vm1270 = vcmp.gt.s32.totalorder %v1205, 0
      %vm1271 = vcmp.gt.s32.totalorder %v1206, 0
      %vm1272 = vcmp.gt.s32.totalorder %v1207, 0
      %v1273 = vsel %vm1241, 1, 0
      %v1274 = vsel %vm1242, 1, 0
      %v1275 = vsel %vm1243, 1, 0
      %v1276 = vsel %vm1244, 1, 0
      %v1277 = vsel %vm1245, 1, 0
      %v1278 = vsel %vm1246, 1, 0
      %v1279 = vsel %vm1247, 1, 0
      %v1280 = vsel %vm1248, 1, 0
      %v1281 = vsel %vm1249, 1, 0
      %v1282 = vsel %vm1250, 1, 0
      %v1283 = vsel %vm1251, 1, 0
      %v1284 = vsel %vm1252, 1, 0
      %v1285 = vsel %vm1253, 1, 0
      %v1286 = vsel %vm1254, 1, 0
      %v1287 = vsel %vm1255, 1, 0
      %v1288 = vsel %vm1256, 1, 0
      %v1289 = vsel %vm1257, 1, 0
      %v1290 = vsel %vm1258, 1, 0
      %v1291 = vsel %vm1259, 1, 0
      %v1292 = vsel %vm1260, 1, 0
      %v1293 = vsel %vm1261, 1, 0
      %v1294 = vsel %vm1262, 1, 0
      %v1295 = vsel %vm1263, 1, 0
      %v1296 = vsel %vm1264, 1, 0
      %v1297 = vsel %vm1265, 1, 0
      %v1298 = vsel %vm1266, 1, 0
      %v1299 = vsel %vm1267, 1, 0
      %v1300 = vsel %vm1268, 1, 0
      %v1301 = vsel %vm1269, 1, 0
      %v1302 = vsel %vm1270, 1, 0
      %v1303 = vsel %vm1271, 1, 0
      %v1304 = vsel %vm1272, 1, 0
      %vm1305 = vcmp.eq.s32.totalorder %v1273, 1
      %vm1306 = vcmp.eq.s32.totalorder %v1274, 1
      %vm1307 = vcmp.eq.s32.totalorder %v1275, 1
      %vm1308 = vcmp.eq.s32.totalorder %v1276, 1
      %vm1309 = vcmp.eq.s32.totalorder %v1277, 1
      %vm1310 = vcmp.eq.s32.totalorder %v1278, 1
      %vm1311 = vcmp.eq.s32.totalorder %v1279, 1
      %vm1312 = vcmp.eq.s32.totalorder %v1280, 1
      %vm1313 = vcmp.eq.s32.totalorder %v1281, 1
      %vm1314 = vcmp.eq.s32.totalorder %v1282, 1
      %vm1315 = vcmp.eq.s32.totalorder %v1283, 1
      %vm1316 = vcmp.eq.s32.totalorder %v1284, 1
      %vm1317 = vcmp.eq.s32.totalorder %v1285, 1
      %vm1318 = vcmp.eq.s32.totalorder %v1286, 1
      %vm1319 = vcmp.eq.s32.totalorder %v1287, 1
      %vm1320 = vcmp.eq.s32.totalorder %v1288, 1
      %vm1321 = vcmp.eq.s32.totalorder %v1289, 1
      %vm1322 = vcmp.eq.s32.totalorder %v1290, 1
      %vm1323 = vcmp.eq.s32.totalorder %v1291, 1
      %vm1324 = vcmp.eq.s32.totalorder %v1292, 1
      %vm1325 = vcmp.eq.s32.totalorder %v1293, 1
      %vm1326 = vcmp.eq.s32.totalorder %v1294, 1
      %vm1327 = vcmp.eq.s32.totalorder %v1295, 1
      %vm1328 = vcmp.eq.s32.totalorder %v1296, 1
      %vm1329 = vcmp.eq.s32.totalorder %v1297, 1
      %vm1330 = vcmp.eq.s32.totalorder %v1298, 1
      %vm1331 = vcmp.eq.s32.totalorder %v1299, 1
      %vm1332 = vcmp.eq.s32.totalorder %v1300, 1
      %vm1333 = vcmp.eq.s32.totalorder %v1301, 1
      %vm1334 = vcmp.eq.s32.totalorder %v1302, 1
      %vm1335 = vcmp.eq.s32.totalorder %v1303, 1
      %vm1336 = vcmp.eq.s32.totalorder %v1304, 1
      %vm1337 = vmpackc.low %vm1305, %vm1305
      %vm1338 = vmpackc.low %vm1306, %vm1306
      %vm1339 = vmpackc.low %vm1307, %vm1307
      %vm1340 = vmpackc.low %vm1308, %vm1308
      %vm1341 = vmpackc.low %vm1309, %vm1309
      %vm1342 = vmpackc.low %vm1310, %vm1310
      %vm1343 = vmpackc.low %vm1311, %vm1311
      %vm1344 = vmpackc.low %vm1312, %vm1312
      %vm1345 = vmpackc.low %vm1313, %vm1313
      %vm1346 = vmpackc.low %vm1314, %vm1314
      %vm1347 = vmpackc.low %vm1315, %vm1315
      %vm1348 = vmpackc.low %vm1316, %vm1316
      %vm1349 = vmpackc.low %vm1317, %vm1317
      %vm1350 = vmpackc.low %vm1318, %vm1318
      %vm1351 = vmpackc.low %vm1319, %vm1319
      %vm1352 = vmpackc.low %vm1320, %vm1320
      %vm1353 = vmpackc.low %vm1321, %vm1321
      %vm1354 = vmpackc.low %vm1322, %vm1322
      %vm1355 = vmpackc.low %vm1323, %vm1323
      %vm1356 = vmpackc.low %vm1324, %vm1324
      %vm1357 = vmpackc.low %vm1325, %vm1325
      %vm1358 = vmpackc.low %vm1326, %vm1326
      %vm1359 = vmpackc.low %vm1327, %vm1327
      %vm1360 = vmpackc.low %vm1328, %vm1328
      %vm1361 = vmpackc.low %vm1329, %vm1329
      %vm1362 = vmpackc.low %vm1330, %vm1330
      %vm1363 = vmpackc.low %vm1331, %vm1331
      %vm1364 = vmpackc.low %vm1332, %vm1332
      %vm1365 = vmpackc.low %vm1333, %vm1333
      %vm1366 = vmpackc.low %vm1334, %vm1334
      %vm1367 = vmpackc.low %vm1335, %vm1335
      %vm1368 = vmpackc.low %vm1336, %vm1336
      %v1369 = vsel %vm1337, 65537, 0
      %v1370 = vsel %vm1338, 65537, 0
      %v1371 = vsel %vm1339, 65537, 0
      %v1372 = vsel %vm1340, 65537, 0
      %v1373 = vsel %vm1341, 65537, 0
      %v1374 = vsel %vm1342, 65537, 0
      %v1375 = vsel %vm1343, 65537, 0
      %v1376 = vsel %vm1344, 65537, 0
      %v1377 = vsel %vm1345, 65537, 0
      %v1378 = vsel %vm1346, 65537, 0
      %v1379 = vsel %vm1347, 65537, 0
      %v1380 = vsel %vm1348, 65537, 0
      %v1381 = vsel %vm1349, 65537, 0
      %v1382 = vsel %vm1350, 65537, 0
      %v1383 = vsel %vm1351, 65537, 0
      %v1384 = vsel %vm1352, 65537, 0
      %v1385 = vsel %vm1353, 65537, 0
      %v1386 = vsel %vm1354, 65537, 0
      %v1387 = vsel %vm1355, 65537, 0
      %v1388 = vsel %vm1356, 65537, 0
      %v1389 = vsel %vm1357, 65537, 0
      %v1390 = vsel %vm1358, 65537, 0
      %v1391 = vsel %vm1359, 65537, 0
      %v1392 = vsel %vm1360, 65537, 0
      %v1393 = vsel %vm1361, 65537, 0
      %v1394 = vsel %vm1362, 65537, 0
      %v1395 = vsel %vm1363, 65537, 0
      %v1396 = vsel %vm1364, 65537, 0
      %v1397 = vsel %vm1365, 65537, 0
      %v1398 = vsel %vm1366, 65537, 0
      %v1399 = vsel %vm1367, 65537, 0
      %v1400 = vsel %vm1368, 65537, 0
      %vm1401 = vsmask.f32 3328
      %vm1402 = vsmask.f32 7440
      %vm1403 = vmor %vm1401, %vm1402
      %v1405 = vshll.u32 %v1369, 16
      %v1407 = vrot.slane %v1405, 5
      %v1408 = vshrl.u32 %v1369, 16
      %v1410 = vrot.slane %v1408, 4
      %v1411 = vor.u32 %v1410, %v1407
      %v1412 = vrot.slane %v1411, 4
      %v1414 = vshll.u32 %v1370, 16
      %v1416 = vrot.slane %v1414, 5
      %v1417 = vsel %vm1403, %v1412, %v1416
      %v1418 = vshrl.u32 %v1370, 16
      %v1420 = vrot.slane %v1418, 4
      %v1421 = vor.u32 %v1420, %v1416
      %v1422 = vrot.slane %v1421, 4
      %v1424 = vshll.u32 %v1371, 16
      %v1426 = vrot.slane %v1424, 5
      %v1427 = vsel %vm1403, %v1422, %v1426
      %v1428 = vshrl.u32 %v1371, 16
      %v1430 = vrot.slane %v1428, 4
      %v1431 = vor.u32 %v1430, %v1426
      %v1432 = vrot.slane %v1431, 4
      %v1434 = vshll.u32 %v1372, 16
      %v1436 = vrot.slane %v1434, 5
      %v1437 = vsel %vm1403, %v1432, %v1436
      %v1438 = vshrl.u32 %v1372, 16
      %v1440 = vrot.slane %v1438, 4
      %v1441 = vor.u32 %v1440, %v1436
      %v1442 = vrot.slane %v1441, 4
      %v1444 = vshll.u32 %v1373, 16
      %v1446 = vrot.slane %v1444, 5
      %v1447 = vsel %vm1403, %v1442, %v1446
      %v1448 = vshrl.u32 %v1373, 16
      %v1450 = vrot.slane %v1448, 4
      %v1451 = vor.u32 %v1450, %v1446
      %v1452 = vrot.slane %v1451, 4
      %v1454 = vshll.u32 %v1374, 16
      %v1456 = vrot.slane %v1454, 5
      %v1457 = vsel %vm1403, %v1452, %v1456
      %v1458 = vshrl.u32 %v1374, 16
      %v1460 = vrot.slane %v1458, 4
      %v1461 = vor.u32 %v1460, %v1456
      %v1462 = vrot.slane %v1461, 4
      %v1464 = vshll.u32 %v1375, 16
      %v1466 = vrot.slane %v1464, 5
      %v1467 = vsel %vm1403, %v1462, %v1466
      %v1468 = vshrl.u32 %v1375, 16
      %v1470 = vrot.slane %v1468, 4
      %v1471 = vor.u32 %v1470, %v1466
      %v1472 = vrot.slane %v1471, 4
      %v1474 = vshll.u32 %v1376, 16
      %v1476 = vrot.slane %v1474, 5
      %v1477 = vsel %vm1403, %v1472, %v1476
      %v1478 = vshrl.u32 %v1376, 16
      %v1480 = vrot.slane %v1478, 4
      %v1481 = vor.u32 %v1480, %v1476
      %v1482 = vrot.slane %v1481, 4
      %v1484 = vshll.u32 %v1377, 16
      %v1486 = vrot.slane %v1484, 5
      %v1487 = vsel %vm1403, %v1482, %v1486
      %v1488 = vshrl.u32 %v1377, 16
      %v1490 = vrot.slane %v1488, 4
      %v1491 = vor.u32 %v1490, %v1486
      %v1492 = vrot.slane %v1491, 4
      %v1494 = vshll.u32 %v1378, 16
      %v1496 = vrot.slane %v1494, 5
      %v1497 = vsel %vm1403, %v1492, %v1496
      %v1498 = vshrl.u32 %v1378, 16
      %v1500 = vrot.slane %v1498, 4
      %v1501 = vor.u32 %v1500, %v1496
      %v1502 = vrot.slane %v1501, 4
      %v1504 = vshll.u32 %v1379, 16
      %v1506 = vrot.slane %v1504, 5
      %v1507 = vsel %vm1403, %v1502, %v1506
      %v1508 = vshrl.u32 %v1379, 16
      %v1510 = vrot.slane %v1508, 4
      %v1511 = vor.u32 %v1510, %v1506
      %v1512 = vrot.slane %v1511, 4
      %v1514 = vshll.u32 %v1380, 16
      %v1516 = vrot.slane %v1514, 5
      %v1517 = vsel %vm1403, %v1512, %v1516
      %v1518 = vshrl.u32 %v1380, 16
      %v1520 = vrot.slane %v1518, 4
      %v1521 = vor.u32 %v1520, %v1516
      %v1522 = vrot.slane %v1521, 4
      %v1524 = vshll.u32 %v1381, 16
      %v1526 = vrot.slane %v1524, 5
      %v1527 = vsel %vm1403, %v1522, %v1526
      %v1528 = vshrl.u32 %v1381, 16
      %v1530 = vrot.slane %v1528, 4
      %v1531 = vor.u32 %v1530, %v1526
      %v1532 = vrot.slane %v1531, 4
      %v1534 = vshll.u32 %v1382, 16
      %v1536 = vrot.slane %v1534, 5
      %v1537 = vsel %vm1403, %v1532, %v1536
      %v1538 = vshrl.u32 %v1382, 16
      %v1540 = vrot.slane %v1538, 4
      %v1541 = vor.u32 %v1540, %v1536
      %v1542 = vrot.slane %v1541, 4
      %v1544 = vshll.u32 %v1383, 16
      %v1546 = vrot.slane %v1544, 5
      %v1547 = vsel %vm1403, %v1542, %v1546
      %v1548 = vshrl.u32 %v1383, 16
      %v1550 = vrot.slane %v1548, 4
      %v1551 = vor.u32 %v1550, %v1546
      %v1552 = vrot.slane %v1551, 4
      %v1554 = vshll.u32 %v1384, 16
      %v1556 = vrot.slane %v1554, 5
      %v1557 = vsel %vm1403, %v1552, %v1556
      %v1558 = vshrl.u32 %v1384, 16
      %v1560 = vrot.slane %v1558, 4
      %v1561 = vor.u32 %v1560, %v1556
      %v1562 = vrot.slane %v1561, 4
      %v1564 = vshll.u32 %v1385, 16
      %v1566 = vrot.slane %v1564, 5
      %v1567 = vsel %vm1403, %v1562, %v1566
      %v1568 = vshrl.u32 %v1385, 16
      %v1570 = vrot.slane %v1568, 4
      %v1571 = vor.u32 %v1570, %v1566
      %v1572 = vrot.slane %v1571, 4
      %v1574 = vshll.u32 %v1386, 16
      %v1576 = vrot.slane %v1574, 5
      %v1577 = vsel %vm1403, %v1572, %v1576
      %v1578 = vshrl.u32 %v1386, 16
      %v1580 = vrot.slane %v1578, 4
      %v1581 = vor.u32 %v1580, %v1576
      %v1582 = vrot.slane %v1581, 4
      %v1584 = vshll.u32 %v1387, 16
      %v1586 = vrot.slane %v1584, 5
      %v1587 = vsel %vm1403, %v1582, %v1586
      %v1588 = vshrl.u32 %v1387, 16
      %v1590 = vrot.slane %v1588, 4
      %v1591 = vor.u32 %v1590, %v1586
      %v1592 = vrot.slane %v1591, 4
      %v1594 = vshll.u32 %v1388, 16
      %v1596 = vrot.slane %v1594, 5
      %v1597 = vsel %vm1403, %v1592, %v1596
      %v1598 = vshrl.u32 %v1388, 16
      %v1600 = vrot.slane %v1598, 4
      %v1601 = vor.u32 %v1600, %v1596
      %v1602 = vrot.slane %v1601, 4
      %v1604 = vshll.u32 %v1389, 16
      %v1606 = vrot.slane %v1604, 5
      %v1607 = vsel %vm1403, %v1602, %v1606
      %v1608 = vshrl.u32 %v1389, 16
      %v1610 = vrot.slane %v1608, 4
      %v1611 = vor.u32 %v1610, %v1606
      %v1612 = vrot.slane %v1611, 4
      %v1614 = vshll.u32 %v1390, 16
      %v1616 = vrot.slane %v1614, 5
      %v1617 = vsel %vm1403, %v1612, %v1616
      %v1618 = vshrl.u32 %v1390, 16
      %v1620 = vrot.slane %v1618, 4
      %v1621 = vor.u32 %v1620, %v1616
      %v1622 = vrot.slane %v1621, 4
      %v1624 = vshll.u32 %v1391, 16
      %v1626 = vrot.slane %v1624, 5
      %v1627 = vsel %vm1403, %v1622, %v1626
      %v1628 = vshrl.u32 %v1391, 16
      %v1630 = vrot.slane %v1628, 4
      %v1631 = vor.u32 %v1630, %v1626
      %v1632 = vrot.slane %v1631, 4
      %v1634 = vshll.u32 %v1392, 16
      %v1636 = vrot.slane %v1634, 5
      %v1637 = vsel %vm1403, %v1632, %v1636
      %v1638 = vshrl.u32 %v1392, 16
      %v1640 = vrot.slane %v1638, 4
      %v1641 = vor.u32 %v1640, %v1636
      %v1642 = vrot.slane %v1641, 4
      %v1644 = vshll.u32 %v1393, 16
      %v1646 = vrot.slane %v1644, 5
      %v1647 = vsel %vm1403, %v1642, %v1646
      %v1648 = vshrl.u32 %v1393, 16
      %v1650 = vrot.slane %v1648, 4
      %v1651 = vor.u32 %v1650, %v1646
      %v1652 = vrot.slane %v1651, 4
      %v1654 = vshll.u32 %v1394, 16
      %v1656 = vrot.slane %v1654, 5
      %v1657 = vsel %vm1403, %v1652, %v1656
      %v1658 = vshrl.u32 %v1394, 16
      %v1660 = vrot.slane %v1658, 4
      %v1661 = vor.u32 %v1660, %v1656
      %v1662 = vrot.slane %v1661, 4
      %v1664 = vshll.u32 %v1395, 16
      %v1666 = vrot.slane %v1664, 5
      %v1667 = vsel %vm1403, %v1662, %v1666
      %v1668 = vshrl.u32 %v1395, 16
      %v1670 = vrot.slane %v1668, 4
      %v1671 = vor.u32 %v1670, %v1666
      %v1672 = vrot.slane %v1671, 4
      %v1674 = vshll.u32 %v1396, 16
      %v1676 = vrot.slane %v1674, 5
      %v1677 = vsel %vm1403, %v1672, %v1676
      %v1678 = vshrl.u32 %v1396, 16
      %v1680 = vrot.slane %v1678, 4
      %v1681 = vor.u32 %v1680, %v1676
      %v1682 = vrot.slane %v1681, 4
      %v1684 = vshll.u32 %v1397, 16
      %v1686 = vrot.slane %v1684, 5
      %v1687 = vsel %vm1403, %v1682, %v1686
      %v1688 = vshrl.u32 %v1397, 16
      %v1690 = vrot.slane %v1688, 4
      %v1691 = vor.u32 %v1690, %v1686
      %v1692 = vrot.slane %v1691, 4
      %v1694 = vshll.u32 %v1398, 16
      %v1696 = vrot.slane %v1694, 5
      %v1697 = vsel %vm1403, %v1692, %v1696
      %v1698 = vshrl.u32 %v1398, 16
      %v1700 = vrot.slane %v1698, 4
      %v1701 = vor.u32 %v1700, %v1696
      %v1702 = vrot.slane %v1701, 4
      %v1704 = vshll.u32 %v1399, 16
      %v1706 = vrot.slane %v1704, 5
      %v1707 = vsel %vm1403, %v1702, %v1706
      %v1708 = vshrl.u32 %v1399, 16
      %v1710 = vrot.slane %v1708, 4
      %v1711 = vor.u32 %v1710, %v1706
      %v1712 = vrot.slane %v1711, 4
      %v1714 = vshll.u32 %v1400, 16
      %v1716 = vrot.slane %v1714, 5
      %v1717 = vsel %vm1403, %v1712, %v1716
      %v1718 = vshrl.u32 %v1400, 16
      %v1720 = vrot.slane %v1718, 4
      %v1721 = vor.u32 %v1720, %v1716
      %v1722 = vrot.slane %v1721, 4
      %v1723 = vunpack.c.l.b16 %v1407
      %v1724 = vunpack.c.h.b16 %v1407
      %v1725 = vunpack.c.l.b16 0
      %v1726 = vunpack.c.h.b16 0
      %vm1727 = vcmp.ne.s32.totalorder %v1723, %v1725
      %vm1728 = vcmp.ne.s32.totalorder %v1724, %v1726
      %vm1729 = vmpackc.low %vm1728, %vm1727
      %v1730 = vunpack.c.l.b16 %v1417
      %v1731 = vunpack.c.h.b16 %v1417
      %v1732 = vunpack.c.l.b16 0
      %v1733 = vunpack.c.h.b16 0
      %vm1734 = vcmp.ne.s32.totalorder %v1730, %v1732
      %vm1735 = vcmp.ne.s32.totalorder %v1731, %v1733
      %vm1736 = vmpackc.low %vm1735, %vm1734
      %v1737 = vunpack.c.l.b16 %v1427
      %v1738 = vunpack.c.h.b16 %v1427
      %v1739 = vunpack.c.l.b16 0
      %v1740 = vunpack.c.h.b16 0
      %vm1741 = vcmp.ne.s32.totalorder %v1737, %v1739
      %vm1742 = vcmp.ne.s32.totalorder %v1738, %v1740
      %vm1743 = vmpackc.low %vm1742, %vm1741
      %v1744 = vunpack.c.l.b16 %v1437
      %v1745 = vunpack.c.h.b16 %v1437
      %v1746 = vunpack.c.l.b16 0
      %v1747 = vunpack.c.h.b16 0
      %vm1748 = vcmp.ne.s32.totalorder %v1744, %v1746
      %vm1749 = vcmp.ne.s32.totalorder %v1745, %v1747
      %vm1750 = vmpackc.low %vm1749, %vm1748
      %v1751 = vunpack.c.l.b16 %v1447
      %v1752 = vunpack.c.h.b16 %v1447
      %v1753 = vunpack.c.l.b16 0
      %v1754 = vunpack.c.h.b16 0
      %vm1755 = vcmp.ne.s32.totalorder %v1751, %v1753
      %vm1756 = vcmp.ne.s32.totalorder %v1752, %v1754
      %vm1757 = vmpackc.low %vm1756, %vm1755
      %v1758 = vunpack.c.l.b16 %v1457
      %v1759 = vunpack.c.h.b16 %v1457
      %v1760 = vunpack.c.l.b16 0
      %v1761 = vunpack.c.h.b16 0
      %vm1762 = vcmp.ne.s32.totalorder %v1758, %v1760
      %vm1763 = vcmp.ne.s32.totalorder %v1759, %v1761
      %vm1764 = vmpackc.low %vm1763, %vm1762
      %v1765 = vunpack.c.l.b16 %v1467
      %v1766 = vunpack.c.h.b16 %v1467
      %v1767 = vunpack.c.l.b16 0
      %v1768 = vunpack.c.h.b16 0
      %vm1769 = vcmp.ne.s32.totalorder %v1765, %v1767
      %vm1770 = vcmp.ne.s32.totalorder %v1766, %v1768
      %vm1771 = vmpackc.low %vm1770, %vm1769
      %v1772 = vunpack.c.l.b16 %v1477
      %v1773 = vunpack.c.h.b16 %v1477
      %v1774 = vunpack.c.l.b16 0
      %v1775 = vunpack.c.h.b16 0
      %vm1776 = vcmp.ne.s32.totalorder %v1772, %v1774
      %vm1777 = vcmp.ne.s32.totalorder %v1773, %v1775
      %vm1778 = vmpackc.low %vm1777, %vm1776
      %v1779 = vunpack.c.l.b16 %v1487
      %v1780 = vunpack.c.h.b16 %v1487
      %v1781 = vunpack.c.l.b16 0
      %v1782 = vunpack.c.h.b16 0
      %vm1783 = vcmp.ne.s32.totalorder %v1779, %v1781
      %vm1784 = vcmp.ne.s32.totalorder %v1780, %v1782
      %vm1785 = vmpackc.low %vm1784, %vm1783
      %v1786 = vunpack.c.l.b16 %v1497
      %v1787 = vunpack.c.h.b16 %v1497
      %v1788 = vunpack.c.l.b16 0
      %v1789 = vunpack.c.h.b16 0
      %vm1790 = vcmp.ne.s32.totalorder %v1786, %v1788
      %vm1791 = vcmp.ne.s32.totalorder %v1787, %v1789
      %vm1792 = vmpackc.low %vm1791, %vm1790
      %v1793 = vunpack.c.l.b16 %v1507
      %v1794 = vunpack.c.h.b16 %v1507
      %v1795 = vunpack.c.l.b16 0
      %v1796 = vunpack.c.h.b16 0
      %vm1797 = vcmp.ne.s32.totalorder %v1793, %v1795
      %vm1798 = vcmp.ne.s32.totalorder %v1794, %v1796
      %vm1799 = vmpackc.low %vm1798, %vm1797
      %v1800 = vunpack.c.l.b16 %v1517
      %v1801 = vunpack.c.h.b16 %v1517
      %v1802 = vunpack.c.l.b16 0
      %v1803 = vunpack.c.h.b16 0
      %vm1804 = vcmp.ne.s32.totalorder %v1800, %v1802
      %vm1805 = vcmp.ne.s32.totalorder %v1801, %v1803
      %vm1806 = vmpackc.low %vm1805, %vm1804
      %v1807 = vunpack.c.l.b16 %v1527
      %v1808 = vunpack.c.h.b16 %v1527
      %v1809 = vunpack.c.l.b16 0
      %v1810 = vunpack.c.h.b16 0
      %vm1811 = vcmp.ne.s32.totalorder %v1807, %v1809
      %vm1812 = vcmp.ne.s32.totalorder %v1808, %v1810
      %vm1813 = vmpackc.low %vm1812, %vm1811
      %v1814 = vunpack.c.l.b16 %v1537
      %v1815 = vunpack.c.h.b16 %v1537
      %v1816 = vunpack.c.l.b16 0
      %v1817 = vunpack.c.h.b16 0
      %vm1818 = vcmp.ne.s32.totalorder %v1814, %v1816
      %vm1819 = vcmp.ne.s32.totalorder %v1815, %v1817
      %vm1820 = vmpackc.low %vm1819, %vm1818
      %v1821 = vunpack.c.l.b16 %v1547
      %v1822 = vunpack.c.h.b16 %v1547
      %v1823 = vunpack.c.l.b16 0
      %v1824 = vunpack.c.h.b16 0
      %vm1825 = vcmp.ne.s32.totalorder %v1821, %v1823
      %vm1826 = vcmp.ne.s32.totalorder %v1822, %v1824
      %vm1827 = vmpackc.low %vm1826, %vm1825
      %v1828 = vunpack.c.l.b16 %v1557
      %v1829 = vunpack.c.h.b16 %v1557
      %v1830 = vunpack.c.l.b16 0
      %v1831 = vunpack.c.h.b16 0
      %vm1832 = vcmp.ne.s32.totalorder %v1828, %v1830
      %vm1833 = vcmp.ne.s32.totalorder %v1829, %v1831
      %vm1834 = vmpackc.low %vm1833, %vm1832
      %v1835 = vunpack.c.l.b16 %v1567
      %v1836 = vunpack.c.h.b16 %v1567
      %v1837 = vunpack.c.l.b16 0
      %v1838 = vunpack.c.h.b16 0
      %vm1839 = vcmp.ne.s32.totalorder %v1835, %v1837
      %vm1840 = vcmp.ne.s32.totalorder %v1836, %v1838
      %vm1841 = vmpackc.low %vm1840, %vm1839
      %v1842 = vunpack.c.l.b16 %v1577
      %v1843 = vunpack.c.h.b16 %v1577
      %v1844 = vunpack.c.l.b16 0
      %v1845 = vunpack.c.h.b16 0
      %vm1846 = vcmp.ne.s32.totalorder %v1842, %v1844
      %vm1847 = vcmp.ne.s32.totalorder %v1843, %v1845
      %vm1848 = vmpackc.low %vm1847, %vm1846
      %v1849 = vunpack.c.l.b16 %v1587
      %v1850 = vunpack.c.h.b16 %v1587
      %v1851 = vunpack.c.l.b16 0
      %v1852 = vunpack.c.h.b16 0
      %vm1853 = vcmp.ne.s32.totalorder %v1849, %v1851
      %vm1854 = vcmp.ne.s32.totalorder %v1850, %v1852
      %vm1855 = vmpackc.low %vm1854, %vm1853
      %v1856 = vunpack.c.l.b16 %v1597
      %v1857 = vunpack.c.h.b16 %v1597
      %v1858 = vunpack.c.l.b16 0
      %v1859 = vunpack.c.h.b16 0
      %vm1860 = vcmp.ne.s32.totalorder %v1856, %v1858
      %vm1861 = vcmp.ne.s32.totalorder %v1857, %v1859
      %vm1862 = vmpackc.low %vm1861, %vm1860
      %v1863 = vunpack.c.l.b16 %v1607
      %v1864 = vunpack.c.h.b16 %v1607
      %v1865 = vunpack.c.l.b16 0
      %v1866 = vunpack.c.h.b16 0
      %vm1867 = vcmp.ne.s32.totalorder %v1863, %v1865
      %vm1868 = vcmp.ne.s32.totalorder %v1864, %v1866
      %vm1869 = vmpackc.low %vm1868, %vm1867
      %v1870 = vunpack.c.l.b16 %v1617
      %v1871 = vunpack.c.h.b16 %v1617
      %v1872 = vunpack.c.l.b16 0
      %v1873 = vunpack.c.h.b16 0
      %vm1874 = vcmp.ne.s32.totalorder %v1870, %v1872
      %vm1875 = vcmp.ne.s32.totalorder %v1871, %v1873
      %vm1876 = vmpackc.low %vm1875, %vm1874
      %v1877 = vunpack.c.l.b16 %v1627
      %v1878 = vunpack.c.h.b16 %v1627
      %v1879 = vunpack.c.l.b16 0
      %v1880 = vunpack.c.h.b16 0
      %vm1881 = vcmp.ne.s32.totalorder %v1877, %v1879
      %vm1882 = vcmp.ne.s32.totalorder %v1878, %v1880
      %vm1883 = vmpackc.low %vm1882, %vm1881
      %v1884 = vunpack.c.l.b16 %v1637
      %v1885 = vunpack.c.h.b16 %v1637
      %v1886 = vunpack.c.l.b16 0
      %v1887 = vunpack.c.h.b16 0
      %vm1888 = vcmp.ne.s32.totalorder %v1884, %v1886
      %vm1889 = vcmp.ne.s32.totalorder %v1885, %v1887
      %vm1890 = vmpackc.low %vm1889, %vm1888
      %v1891 = vunpack.c.l.b16 %v1647
      %v1892 = vunpack.c.h.b16 %v1647
      %v1893 = vunpack.c.l.b16 0
      %v1894 = vunpack.c.h.b16 0
      %vm1895 = vcmp.ne.s32.totalorder %v1891, %v1893
      %vm1896 = vcmp.ne.s32.totalorder %v1892, %v1894
      %vm1897 = vmpackc.low %vm1896, %vm1895
      %v1898 = vunpack.c.l.b16 %v1657
      %v1899 = vunpack.c.h.b16 %v1657
      %v1900 = vunpack.c.l.b16 0
      %v1901 = vunpack.c.h.b16 0
      %vm1902 = vcmp.ne.s32.totalorder %v1898, %v1900
      %vm1903 = vcmp.ne.s32.totalorder %v1899, %v1901
      %vm1904 = vmpackc.low %vm1903, %vm1902
      %v1905 = vunpack.c.l.b16 %v1667
      %v1906 = vunpack.c.h.b16 %v1667
      %v1907 = vunpack.c.l.b16 0
      %v1908 = vunpack.c.h.b16 0
      %vm1909 = vcmp.ne.s32.totalorder %v1905, %v1907
      %vm1910 = vcmp.ne.s32.totalorder %v1906, %v1908
      %vm1911 = vmpackc.low %vm1910, %vm1909
      %v1912 = vunpack.c.l.b16 %v1677
      %v1913 = vunpack.c.h.b16 %v1677
      %v1914 = vunpack.c.l.b16 0
      %v1915 = vunpack.c.h.b16 0
      %vm1916 = vcmp.ne.s32.totalorder %v1912, %v1914
      %vm1917 = vcmp.ne.s32.totalorder %v1913, %v1915
      %vm1918 = vmpackc.low %vm1917, %vm1916
      %v1919 = vunpack.c.l.b16 %v1687
      %v1920 = vunpack.c.h.b16 %v1687
      %v1921 = vunpack.c.l.b16 0
      %v1922 = vunpack.c.h.b16 0
      %vm1923 = vcmp.ne.s32.totalorder %v1919, %v1921
      %vm1924 = vcmp.ne.s32.totalorder %v1920, %v1922
      %vm1925 = vmpackc.low %vm1924, %vm1923
      %v1926 = vunpack.c.l.b16 %v1697
      %v1927 = vunpack.c.h.b16 %v1697
      %v1928 = vunpack.c.l.b16 0
      %v1929 = vunpack.c.h.b16 0
      %vm1930 = vcmp.ne.s32.totalorder %v1926, %v1928
      %vm1931 = vcmp.ne.s32.totalorder %v1927, %v1929
      %vm1932 = vmpackc.low %vm1931, %vm1930
      %v1933 = vunpack.c.l.b16 %v1707
      %v1934 = vunpack.c.h.b16 %v1707
      %v1935 = vunpack.c.l.b16 0
      %v1936 = vunpack.c.h.b16 0
      %vm1937 = vcmp.ne.s32.totalorder %v1933, %v1935
      %vm1938 = vcmp.ne.s32.totalorder %v1934, %v1936
      %vm1939 = vmpackc.low %vm1938, %vm1937
      %v1940 = vunpack.c.l.b16 %v1717
      %v1941 = vunpack.c.h.b16 %v1717
      %v1942 = vunpack.c.l.b16 0
      %v1943 = vunpack.c.h.b16 0
      %vm1944 = vcmp.ne.s32.totalorder %v1940, %v1942
      %vm1945 = vcmp.ne.s32.totalorder %v1941, %v1943
      %vm1946 = vmpackc.low %vm1945, %vm1944
      %v1947 = vunpack.c.l.b16 %v1722
      %v1948 = vunpack.c.h.b16 %v1722
      %v1949 = vunpack.c.l.b16 0
      %v1950 = vunpack.c.h.b16 0
      %vm1951 = vcmp.ne.s32.totalorder %v1947, %v1949
      %vm1952 = vcmp.ne.s32.totalorder %v1948, %v1950
      %vm1953 = vmpackc.low %vm1952, %vm1951
      %v1954 = vsel %vm1729, %v1208, 0
      %v1955 = vsel %vm1736, %v1209, 0
      %v1956 = vsel %vm1743, %v1210, 0
      %v1957 = vsel %vm1750, %v1211, 0
      %v1958 = vsel %vm1757, %v1212, 0
      %v1959 = vsel %vm1764, %v1213, 0
      %v1960 = vsel %vm1771, %v1214, 0
      %v1961 = vsel %vm1778, %v1215, 0
      %v1962 = vsel %vm1785, %v1216, 0
      %v1963 = vsel %vm1792, %v1217, 0
      %v1964 = vsel %vm1799, %v1218, 0
      %v1965 = vsel %vm1806, %v1219, 0
      %v1966 = vsel %vm1813, %v1220, 0
      %v1967 = vsel %vm1820, %v1221, 0
      %v1968 = vsel %vm1827, %v1222, 0
      %v1969 = vsel %vm1834, %v1223, 0
      %v1970 = vsel %vm1841, %v1224, 0
      %v1971 = vsel %vm1848, %v1225, 0
      %v1972 = vsel %vm1855, %v1226, 0
      %v1973 = vsel %vm1862, %v1227, 0
      %v1974 = vsel %vm1869, %v1228, 0
      %v1975 = vsel %vm1876, %v1229, 0
      %v1976 = vsel %vm1883, %v1230, 0
      %v1977 = vsel %vm1890, %v1231, 0
      %v1978 = vsel %vm1897, %v1232, 0
      %v1979 = vsel %vm1904, %v1233, 0
      %v1980 = vsel %vm1911, %v1234, 0
      %v1981 = vsel %vm1918, %v1235, 0
      %v1982 = vsel %vm1925, %v1236, 0
      %v1983 = vsel %vm1932, %v1237, 0
      %v1984 = vsel %vm1939, %v1238, 0
      %v1985 = vsel %vm1946, %v1239, 0
      %v1986 = vsel %vm1953, %v1240, 0
      %v1987 = vld [vmem:[%s4] sm:$0xf]
      %s1988 = scalar_lea.vmem %s4, 4
      %v1989 = vld [vmem:[%s1988] sm:$0xf]
      %v2022 = vunpack.c.l.b16 %v1209
      %v2023 = vunpack.c.l.b16 %v1210
      %v2024 = vunpack.c.l.b16 %v1211
      %v2025 = vunpack.c.l.b16 %v1212
      %v2026 = vunpack.c.l.b16 %v1213
      %v2027 = vunpack.c.l.b16 %v1214
      %v2028 = vunpack.c.l.b16 %v1215
      %v2029 = vunpack.c.l.b16 %v1216
      %v2030 = vunpack.c.l.b16 %v1217
      %v2031 = vunpack.c.l.b16 %v1218
      %v2032 = vunpack.c.l.b16 %v1219
      %v2033 = vunpack.c.l.b16 %v1220
      %v2034 = vunpack.c.l.b16 %v1221
      %v2035 = vunpack.c.l.b16 %v1222
      %v2036 = vunpack.c.l.b16 %v1223
      %v2037 = vunpack.c.l.b16 %v1224
      %v2038 = vunpack.c.l.b16 %v1225
      %v2039 = vunpack.c.l.b16 %v1226
      %v2040 = vunpack.c.l.b16 %v1227
      %v2041 = vunpack.c.l.b16 %v1228
      %v2042 = vunpack.c.l.b16 %v1229
      %v2043 = vunpack.c.l.b16 %v1230
      %v2044 = vunpack.c.l.b16 %v1231
      %v2045 = vunpack.c.l.b16 %v1232
      %v2046 = vunpack.c.l.b16 %v1233
      %v2047 = vunpack.c.l.b16 %v1234
      %v2048 = vunpack.c.l.b16 %v1235
      %v2049 = vunpack.c.l.b16 %v1236
      %v2050 = vunpack.c.l.b16 %v1237
      %v2051 = vunpack.c.l.b16 %v1238
      %v2052 = vunpack.c.l.b16 %v1239
      %v2053 = vunpack.c.l.b16 %v1240
      %v2054 = vpack.c.b16 %v2023, %v2022
      %v2055 = vpack.c.b16 %v2025, %v2024
      %v2056 = vpack.c.b16 %v2027, %v2026
      %v2057 = vpack.c.b16 %v2029, %v2028
      %v2058 = vpack.c.b16 %v2031, %v2030
      %v2059 = vpack.c.b16 %v2033, %v2032
      %v2060 = vpack.c.b16 %v2035, %v2034
      %v2061 = vpack.c.b16 %v2037, %v2036
      %v2062 = vpack.c.b16 %v2039, %v2038
      %v2063 = vpack.c.b16 %v2041, %v2040
      %v2064 = vpack.c.b16 %v2043, %v2042
      %v2065 = vpack.c.b16 %v2045, %v2044
      %v2066 = vpack.c.b16 %v2047, %v2046
      %v2067 = vpack.c.b16 %v2049, %v2048
      %v2068 = vpack.c.b16 %v2051, %v2050
      %v2069 = vpack.c.b16 %v2053, %v2052
      %vm2070 = vcmask 64512
      %v2072 = vsel %vm2070, %v2054, 0
      %v2075 = vsel %vm2070, %v2055, 0
      %v2078 = vsel %vm2070, %v2056, 0
      %v2081 = vsel %vm2070, %v2057, 0
      %v2084 = vsel %vm2070, %v2058, 0
      %v2087 = vsel %vm2070, %v2059, 0
      %v2090 = vsel %vm2070, %v2060, 0
      %v2093 = vsel %vm2070, %v2061, 0
      %v2096 = vsel %vm2070, %v2062, 0
      %v2099 = vsel %vm2070, %v2063, 0
      %v2102 = vsel %vm2070, %v2064, 0
      %v2105 = vsel %vm2070, %v2065, 0
      %v2108 = vsel %vm2070, %v2066, 0
      %v2111 = vsel %vm2070, %v2067, 0
      %v2114 = vsel %vm2070, %v2068, 0
      %v2117 = vsel %vm2070, %v2069, 0
      %vm2119 = vcmask 1043456
      %v2121 = vsel %vm2119, %v1989, 0
      %2123 = vmatpush.bf16.msra.mxu0 0
      %2124 = vmatpush.bf16.msra.mxu0 0
      %2125 = vmatpush.bf16.msra.mxu0 0
      %2126 = vmatpush.bf16.msra.mxu0 0
      %2127 = vmatpush.bf16.msra.mxu0 0
      %2128 = vmatpush.bf16.msra.mxu0 0
      %2129 = vmatpush.bf16.msra.mxu0 0
      %2130 = vmatpush.bf16.msra.mxu0 %v2121
      %2131 = vmatmul.bf16.gmra.mxu0 %v2072
      %v2132 = vpop.f32.mrf.mxu0
      %v2133 = vadd.f32 0.0, %v2132
      %v2134 = vpop.f32.mrf.mxu0
      %v2135 = vadd.f32 0.0, %v2134
      %2136 = vmatmul.bf16.gmra.mxu0 %v2075
      %v2137 = vpop.f32.mrf.mxu0
      %v2138 = vadd.f32 0.0, %v2137
      %v2139 = vpop.f32.mrf.mxu0
      %v2140 = vadd.f32 0.0, %v2139
      %2141 = vmatmul.bf16.gmra.mxu0 %v2078
      %v2142 = vpop.f32.mrf.mxu0
      %v2143 = vadd.f32 0.0, %v2142
      %v2144 = vpop.f32.mrf.mxu0
      %v2145 = vadd.f32 0.0, %v2144
      %2146 = vmatmul.bf16.gmra.mxu0 %v2081
      %v2147 = vpop.f32.mrf.mxu0
      %v2148 = vadd.f32 0.0, %v2147
      %v2149 = vpop.f32.mrf.mxu0
      %v2150 = vadd.f32 0.0, %v2149
      %2151 = vmatmul.bf16.gmra.mxu0 %v2084
      %v2152 = vpop.f32.mrf.mxu0
      %v2153 = vadd.f32 0.0, %v2152
      %v2154 = vpop.f32.mrf.mxu0
      %v2155 = vadd.f32 0.0, %v2154
      %2156 = vmatmul.bf16.gmra.mxu0 %v2087
      %v2157 = vpop.f32.mrf.mxu0
      %v2158 = vadd.f32 0.0, %v2157
      %v2159 = vpop.f32.mrf.mxu0
      %v2160 = vadd.f32 0.0, %v2159
      %2161 = vmatmul.bf16.gmra.mxu0 %v2090
      %v2162 = vpop.f32.mrf.mxu0
      %v2163 = vadd.f32 0.0, %v2162
      %v2164 = vpop.f32.mrf.mxu0
      %v2165 = vadd.f32 0.0, %v2164
      %2166 = vmatmul.bf16.gmra.mxu0 %v2093
      %v2167 = vpop.f32.mrf.mxu0
      %v2168 = vadd.f32 0.0, %v2167
      %v2169 = vpop.f32.mrf.mxu0
      %v2170 = vadd.f32 0.0, %v2169
      %2171 = vmatmul.bf16.gmra.mxu0 %v2096
      %v2172 = vpop.f32.mrf.mxu0
      %v2173 = vadd.f32 0.0, %v2172
      %v2174 = vpop.f32.mrf.mxu0
      %v2175 = vadd.f32 0.0, %v2174
      %2176 = vmatmul.bf16.gmra.mxu0 %v2099
      %v2177 = vpop.f32.mrf.mxu0
      %v2178 = vadd.f32 0.0, %v2177
      %v2179 = vpop.f32.mrf.mxu0
      %v2180 = vadd.f32 0.0, %v2179
      %2181 = vmatmul.bf16.gmra.mxu0 %v2102
      %v2182 = vpop.f32.mrf.mxu0
      %v2183 = vadd.f32 0.0, %v2182
      %v2184 = vpop.f32.mrf.mxu0
      %v2185 = vadd.f32 0.0, %v2184
      %2186 = vmatmul.bf16.gmra.mxu0 %v2105
      %v2187 = vpop.f32.mrf.mxu0
      %v2188 = vadd.f32 0.0, %v2187
      %v2189 = vpop.f32.mrf.mxu0
      %v2190 = vadd.f32 0.0, %v2189
      %2191 = vmatmul.bf16.gmra.mxu0 %v2108
      %v2192 = vpop.f32.mrf.mxu0
      %v2193 = vadd.f32 0.0, %v2192
      %v2194 = vpop.f32.mrf.mxu0
      %v2195 = vadd.f32 0.0, %v2194
      %2196 = vmatmul.bf16.gmra.mxu0 %v2111
      %v2197 = vpop.f32.mrf.mxu0
      %v2198 = vadd.f32 0.0, %v2197
      %v2199 = vpop.f32.mrf.mxu0
      %v2200 = vadd.f32 0.0, %v2199
      %2201 = vmatmul.bf16.gmra.mxu0 %v2114
      %v2202 = vpop.f32.mrf.mxu0
      %v2203 = vadd.f32 0.0, %v2202
      %v2204 = vpop.f32.mrf.mxu0
      %v2205 = vadd.f32 0.0, %v2204
      %2206 = vmatmul.bf16.gmra.mxu0 %v2117
      %v2207 = vpop.f32.mrf.mxu0
      %v2208 = vadd.f32 0.0, %v2207
      %v2209 = vpop.f32.mrf.mxu0
      %v2210 = vadd.f32 0.0, %v2209
      %2211 = vdwg.mxu0
      %v2245 = vunpack.c.l.b16 %v1954
      %v2246 = vunpack.c.l.b16 %v1955
      %v2247 = vunpack.c.l.b16 %v1956
      %v2248 = vunpack.c.l.b16 %v1957
      %v2249 = vunpack.c.l.b16 %v1958
      %v2250 = vunpack.c.l.b16 %v1959
      %v2251 = vunpack.c.l.b16 %v1960
      %v2252 = vunpack.c.l.b16 %v1961
      %v2253 = vunpack.c.l.b16 %v1962
      %v2254 = vunpack.c.l.b16 %v1963
      %v2255 = vunpack.c.l.b16 %v1964
      %v2256 = vunpack.c.l.b16 %v1965
      %v2257 = vunpack.c.l.b16 %v1966
      %v2258 = vunpack.c.l.b16 %v1967
      %v2259 = vunpack.c.l.b16 %v1968
      %v2260 = vunpack.c.l.b16 %v1969
      %v2261 = vunpack.c.l.b16 %v1970
      %v2262 = vunpack.c.l.b16 %v1971
      %v2263 = vunpack.c.l.b16 %v1972
      %v2264 = vunpack.c.l.b16 %v1973
      %v2265 = vunpack.c.l.b16 %v1974
      %v2266 = vunpack.c.l.b16 %v1975
      %v2267 = vunpack.c.l.b16 %v1976
      %v2268 = vunpack.c.l.b16 %v1977
      %v2269 = vunpack.c.l.b16 %v1978
      %v2270 = vunpack.c.l.b16 %v1979
      %v2271 = vunpack.c.l.b16 %v1980
      %v2272 = vunpack.c.l.b16 %v1981
      %v2273 = vunpack.c.l.b16 %v1982
      %v2274 = vunpack.c.l.b16 %v1983
      %v2275 = vunpack.c.l.b16 %v1984
      %v2276 = vunpack.c.l.b16 %v1985
      %v2277 = vunpack.c.l.b16 %v1986
      %v2278 = vpack.c.b16 %v2246, %v2245
      %v2279 = vpack.c.b16 %v2248, %v2247
      %v2280 = vpack.c.b16 %v2250, %v2249
      %v2281 = vpack.c.b16 %v2252, %v2251
      %v2282 = vpack.c.b16 %v2254, %v2253
      %v2283 = vpack.c.b16 %v2256, %v2255
      %v2284 = vpack.c.b16 %v2258, %v2257
      %v2285 = vpack.c.b16 %v2260, %v2259
      %v2286 = vpack.c.b16 %v2262, %v2261
      %v2287 = vpack.c.b16 %v2264, %v2263
      %v2288 = vpack.c.b16 %v2266, %v2265
      %v2289 = vpack.c.b16 %v2268, %v2267
      %v2290 = vpack.c.b16 %v2270, %v2269
      %v2291 = vpack.c.b16 %v2272, %v2271
      %v2292 = vpack.c.b16 %v2274, %v2273
      %v2293 = vpack.c.b16 %v2276, %v2275
      %v2294 = vpack.c.b16 %v2277, %v2277
      %vm2295 = vsmask.f32 4352
      %v2297 = vshrl.u32 %v2278, 16
      %v2299 = vrot.slane %v2297, 3
      %v2300 = vshll.u32 %v2278, 16
      %v2302 = vrot.slane %v2300, 4
      %v2303 = vor.u32 %v2299, %v2302
      %v2305 = vshrl.u32 %v2279, 16
      %v2307 = vrot.slane %v2305, 3
      %v2308 = vshll.u32 %v2279, 16
      %v2310 = vrot.slane %v2308, 4
      %v2311 = vor.u32 %v2307, %v2310
      %v2312 = vsel %vm2295, %v2303, %v2311
      %v2314 = vshrl.u32 %v2280, 16
      %v2316 = vrot.slane %v2314, 3
      %v2317 = vshll.u32 %v2280, 16
      %v2319 = vrot.slane %v2317, 4
      %v2320 = vor.u32 %v2316, %v2319
      %v2321 = vsel %vm2295, %v2311, %v2320
      %v2323 = vshrl.u32 %v2281, 16
      %v2325 = vrot.slane %v2323, 3
      %v2326 = vshll.u32 %v2281, 16
      %v2328 = vrot.slane %v2326, 4
      %v2329 = vor.u32 %v2325, %v2328
      %v2330 = vsel %vm2295, %v2320, %v2329
      %v2332 = vshrl.u32 %v2282, 16
      %v2334 = vrot.slane %v2332, 3
      %v2335 = vshll.u32 %v2282, 16
      %v2337 = vrot.slane %v2335, 4
      %v2338 = vor.u32 %v2334, %v2337
      %v2339 = vsel %vm2295, %v2329, %v2338
      %v2341 = vshrl.u32 %v2283, 16
      %v2343 = vrot.slane %v2341, 3
      %v2344 = vshll.u32 %v2283, 16
      %v2346 = vrot.slane %v2344, 4
      %v2347 = vor.u32 %v2343, %v2346
      %v2348 = vsel %vm2295, %v2338, %v2347
      %v2350 = vshrl.u32 %v2284, 16
      %v2352 = vrot.slane %v2350, 3
      %v2353 = vshll.u32 %v2284, 16
      %v2355 = vrot.slane %v2353, 4
      %v2356 = vor.u32 %v2352, %v2355
      %v2357 = vsel %vm2295, %v2347, %v2356
      %v2359 = vshrl.u32 %v2285, 16
      %v2361 = vrot.slane %v2359, 3
      %v2362 = vshll.u32 %v2285, 16
      %v2364 = vrot.slane %v2362, 4
      %v2365 = vor.u32 %v2361, %v2364
      %v2366 = vsel %vm2295, %v2356, %v2365
      %v2368 = vshrl.u32 %v2286, 16
      %v2370 = vrot.slane %v2368, 3
      %v2371 = vshll.u32 %v2286, 16
      %v2373 = vrot.slane %v2371, 4
      %v2374 = vor.u32 %v2370, %v2373
      %v2375 = vsel %vm2295, %v2365, %v2374
      %v2377 = vshrl.u32 %v2287, 16
      %v2379 = vrot.slane %v2377, 3
      %v2380 = vshll.u32 %v2287, 16
      %v2382 = vrot.slane %v2380, 4
      %v2383 = vor.u32 %v2379, %v2382
      %v2384 = vsel %vm2295, %v2374, %v2383
      %v2386 = vshrl.u32 %v2288, 16
      %v2388 = vrot.slane %v2386, 3
      %v2389 = vshll.u32 %v2288, 16
      %v2391 = vrot.slane %v2389, 4
      %v2392 = vor.u32 %v2388, %v2391
      %v2393 = vsel %vm2295, %v2383, %v2392
      %v2395 = vshrl.u32 %v2289, 16
      %v2397 = vrot.slane %v2395, 3
      %v2398 = vshll.u32 %v2289, 16
      %v2400 = vrot.slane %v2398, 4
      %v2401 = vor.u32 %v2397, %v2400
      %v2402 = vsel %vm2295, %v2392, %v2401
      %v2404 = vshrl.u32 %v2290, 16
      %v2406 = vrot.slane %v2404, 3
      %v2407 = vshll.u32 %v2290, 16
      %v2409 = vrot.slane %v2407, 4
      %v2410 = vor.u32 %v2406, %v2409
      %v2411 = vsel %vm2295, %v2401, %v2410
      %v2413 = vshrl.u32 %v2291, 16
      %v2415 = vrot.slane %v2413, 3
      %v2416 = vshll.u32 %v2291, 16
      %v2418 = vrot.slane %v2416, 4
      %v2419 = vor.u32 %v2415, %v2418
      %v2420 = vsel %vm2295, %v2410, %v2419
      %v2422 = vshrl.u32 %v2292, 16
      %v2424 = vrot.slane %v2422, 3
      %v2425 = vshll.u32 %v2292, 16
      %v2427 = vrot.slane %v2425, 4
      %v2428 = vor.u32 %v2424, %v2427
      %v2429 = vsel %vm2295, %v2419, %v2428
      %v2431 = vshrl.u32 %v2293, 16
      %v2433 = vrot.slane %v2431, 3
      %v2434 = vshll.u32 %v2293, 16
      %v2436 = vrot.slane %v2434, 4
      %v2437 = vor.u32 %v2433, %v2436
      %v2438 = vsel %vm2295, %v2428, %v2437
      %v2440 = vshrl.u32 %v2294, 16
      %v2442 = vrot.slane %v2440, 3
      %v2443 = vshll.u32 %v2294, 16
      %v2445 = vrot.slane %v2443, 4
      %v2446 = vor.u32 %v2442, %v2445
      %v2447 = vsel %vm2295, %v2437, %v2446
      %v2449 = vsel %vm2070, %v2312, 0
      %v2452 = vsel %vm2070, %v2321, 0
      %v2455 = vsel %vm2070, %v2330, 0
      %v2458 = vsel %vm2070, %v2339, 0
      %v2461 = vsel %vm2070, %v2348, 0
      %v2464 = vsel %vm2070, %v2357, 0
      %v2467 = vsel %vm2070, %v2366, 0
      %v2470 = vsel %vm2070, %v2375, 0
      %v2473 = vsel %vm2070, %v2384, 0
      %v2476 = vsel %vm2070, %v2393, 0
      %v2479 = vsel %vm2070, %v2402, 0
      %v2482 = vsel %vm2070, %v2411, 0
      %v2485 = vsel %vm2070, %v2420, 0
      %v2488 = vsel %vm2070, %v2429, 0
      %v2491 = vsel %vm2070, %v2438, 0
      %v2494 = vsel %vm2070, %v2447, 0
      %v2497 = vsel %vm2119, %v1987, 0
      %2499 = vmatpush.bf16.msra.mxu0 0
      %2500 = vmatpush.bf16.msra.mxu0 0
      %2501 = vmatpush.bf16.msra.mxu0 0
      %2502 = vmatpush.bf16.msra.mxu0 0
      %2503 = vmatpush.bf16.msra.mxu0 0
      %2504 = vmatpush.bf16.msra.mxu0 0
      %2505 = vmatpush.bf16.msra.mxu0 0
      %2506 = vmatpush.bf16.msra.mxu0 %v2497
      %2507 = vmatmul.bf16.gmra.mxu0 %v2449
      %v2508 = vpop.f32.mrf.mxu0
      %v2509 = vadd.f32 %v2133, %v2508
      %v2510 = vpop.f32.mrf.mxu0
      %v2511 = vadd.f32 %v2135, %v2510
      %2512 = vmatmul.bf16.gmra.mxu0 %v2452
      %v2513 = vpop.f32.mrf.mxu0
      %v2514 = vadd.f32 %v2138, %v2513
      %v2515 = vpop.f32.mrf.mxu0
      %v2516 = vadd.f32 %v2140, %v2515
      %2517 = vmatmul.bf16.gmra.mxu0 %v2455
      %v2518 = vpop.f32.mrf.mxu0
      %v2519 = vadd.f32 %v2143, %v2518
      %v2520 = vpop.f32.mrf.mxu0
      %v2521 = vadd.f32 %v2145, %v2520
      %2522 = vmatmul.bf16.gmra.mxu0 %v2458
      %v2523 = vpop.f32.mrf.mxu0
      %v2524 = vadd.f32 %v2148, %v2523
      %v2525 = vpop.f32.mrf.mxu0
      %v2526 = vadd.f32 %v2150, %v2525
      %2527 = vmatmul.bf16.gmra.mxu0 %v2461
      %v2528 = vpop.f32.mrf.mxu0
      %v2529 = vadd.f32 %v2153, %v2528
      %v2530 = vpop.f32.mrf.mxu0
      %v2531 = vadd.f32 %v2155, %v2530
      %2532 = vmatmul.bf16.gmra.mxu0 %v2464
      %v2533 = vpop.f32.mrf.mxu0
      %v2534 = vadd.f32 %v2158, %v2533
      %v2535 = vpop.f32.mrf.mxu0
      %v2536 = vadd.f32 %v2160, %v2535
      %2537 = vmatmul.bf16.gmra.mxu0 %v2467
      %v2538 = vpop.f32.mrf.mxu0
      %v2539 = vadd.f32 %v2163, %v2538
      %v2540 = vpop.f32.mrf.mxu0
      %v2541 = vadd.f32 %v2165, %v2540
      %2542 = vmatmul.bf16.gmra.mxu0 %v2470
      %v2543 = vpop.f32.mrf.mxu0
      %v2544 = vadd.f32 %v2168, %v2543
      %v2545 = vpop.f32.mrf.mxu0
      %v2546 = vadd.f32 %v2170, %v2545
      %2547 = vmatmul.bf16.gmra.mxu0 %v2473
      %v2548 = vpop.f32.mrf.mxu0
      %v2549 = vadd.f32 %v2173, %v2548
      %v2550 = vpop.f32.mrf.mxu0
      %v2551 = vadd.f32 %v2175, %v2550
      %2552 = vmatmul.bf16.gmra.mxu0 %v2476
      %v2553 = vpop.f32.mrf.mxu0
      %v2554 = vadd.f32 %v2178, %v2553
      %v2555 = vpop.f32.mrf.mxu0
      %v2556 = vadd.f32 %v2180, %v2555
      %2557 = vmatmul.bf16.gmra.mxu0 %v2479
      %v2558 = vpop.f32.mrf.mxu0
      %v2559 = vadd.f32 %v2183, %v2558
      %v2560 = vpop.f32.mrf.mxu0
      %v2561 = vadd.f32 %v2185, %v2560
      %2562 = vmatmul.bf16.gmra.mxu0 %v2482
      %v2563 = vpop.f32.mrf.mxu0
      %v2564 = vadd.f32 %v2188, %v2563
      %v2565 = vpop.f32.mrf.mxu0
      %v2566 = vadd.f32 %v2190, %v2565
      %2567 = vmatmul.bf16.gmra.mxu0 %v2485
      %v2568 = vpop.f32.mrf.mxu0
      %v2569 = vadd.f32 %v2193, %v2568
      %v2570 = vpop.f32.mrf.mxu0
      %v2571 = vadd.f32 %v2195, %v2570
      %2572 = vmatmul.bf16.gmra.mxu0 %v2488
      %v2573 = vpop.f32.mrf.mxu0
      %v2574 = vadd.f32 %v2198, %v2573
      %v2575 = vpop.f32.mrf.mxu0
      %v2576 = vadd.f32 %v2200, %v2575
      %2577 = vmatmul.bf16.gmra.mxu0 %v2491
      %v2578 = vpop.f32.mrf.mxu0
      %v2579 = vadd.f32 %v2203, %v2578
      %v2580 = vpop.f32.mrf.mxu0
      %v2581 = vadd.f32 %v2205, %v2580
      %2582 = vmatmul.bf16.gmra.mxu0 %v2494
      %v2583 = vpop.f32.mrf.mxu0
      %v2584 = vadd.f32 %v2208, %v2583
      %v2585 = vpop.f32.mrf.mxu0
      %v2586 = vadd.f32 %v2210, %v2585
      %2587 = vdwg.mxu0
      %v2588 = vld [vmem:[#allocation2 + $0x4] sm:$0xf]
      %v2589 = vld [vmem:[#allocation2 + $0x8] sm:$0xf]
      %v2590 = vld [vmem:[#allocation2 + $0xc] sm:$0xf]
      %v2591 = vld [vmem:[#allocation2 + $0x10] sm:$0xf]
      %v2592 = vld [vmem:[#allocation2 + $0x14] sm:$0xf]
      %v2593 = vld [vmem:[#allocation2 + $0x18] sm:$0xf]
      %v2594 = vld [vmem:[#allocation2 + $0x1c] sm:$0xf]
      %v2595 = vld [vmem:[#allocation2 + $0x20] sm:$0xf]
      %v2596 = vld [vmem:[#allocation2 + $0x24] sm:$0xf]
      %v2597 = vld [vmem:[#allocation2 + $0x28] sm:$0xf]
      %v2598 = vld [vmem:[#allocation2 + $0x2c] sm:$0xf]
      %v2599 = vld [vmem:[#allocation2 + $0x30] sm:$0xf]
      %v2600 = vld [vmem:[#allocation2 + $0x34] sm:$0xf]
      %v2601 = vld [vmem:[#allocation2 + $0x38] sm:$0xf]
      %v2602 = vld [vmem:[#allocation2 + $0x3c] sm:$0xf]
      %v2603 = vld [vmem:[#allocation2 + $0x40] sm:$0xf]
      %v2604 = vld [vmem:[#allocation2 + $0x44] sm:$0xf]
      %v2605 = vld [vmem:[#allocation2 + $0x48] sm:$0xf]
      %v2606 = vld [vmem:[#allocation2 + $0x4c] sm:$0xf]
      %v2607 = vld [vmem:[#allocation2 + $0x50] sm:$0xf]
      %v2608 = vld [vmem:[#allocation2 + $0x54] sm:$0xf]
      %v2609 = vld [vmem:[#allocation2 + $0x58] sm:$0xf]
      %v2610 = vld [vmem:[#allocation2 + $0x5c] sm:$0xf]
      %v2611 = vld [vmem:[#allocation2 + $0x60] sm:$0xf]
      %v2612 = vld [vmem:[#allocation2 + $0x64] sm:$0xf]
      %v2613 = vld [vmem:[#allocation2 + $0x68] sm:$0xf]
      %v2614 = vld [vmem:[#allocation2 + $0x6c] sm:$0xf]
      %v2615 = vld [vmem:[#allocation2 + $0x70] sm:$0xf]
      %v2616 = vld [vmem:[#allocation2 + $0x74] sm:$0xf]
      %v2617 = vld [vmem:[#allocation2 + $0x78] sm:$0xf]
      %v2618 = vld [vmem:[#allocation2 + $0x7c] sm:$0xf]
      %v2619 = vld [vmem:[#allocation2 + $0x80] sm:$0xf]
      %v2620 = vld [vmem:[#allocation2 + $0x84] sm:$0x1]
      %vm2621 = vcmp.lt.s32.totalorder %v1176, 15
      %vm2622 = vcmp.lt.s32.totalorder %v1177, 15
      %vm2623 = vcmp.lt.s32.totalorder %v1178, 15
      %vm2624 = vcmp.lt.s32.totalorder %v1179, 15
      %vm2625 = vcmp.lt.s32.totalorder %v1180, 15
      %vm2626 = vcmp.lt.s32.totalorder %v1181, 15
      %vm2627 = vcmp.lt.s32.totalorder %v1182, 15
      %vm2628 = vcmp.lt.s32.totalorder %v1183, 15
      %vm2629 = vcmp.lt.s32.totalorder %v1184, 15
      %vm2630 = vcmp.lt.s32.totalorder %v1185, 15
      %vm2631 = vcmp.lt.s32.totalorder %v1186, 15
      %vm2632 = vcmp.lt.s32.totalorder %v1187, 15
      %vm2633 = vcmp.lt.s32.totalorder %v1188, 15
      %vm2634 = vcmp.lt.s32.totalorder %v1189, 15
      %vm2635 = vcmp.lt.s32.totalorder %v1190, 15
      %vm2636 = vcmp.lt.s32.totalorder %v1191, 15
      %vm2637 = vcmp.lt.s32.totalorder %v1192, 15
      %vm2638 = vcmp.lt.s32.totalorder %v1193, 15
      %vm2639 = vcmp.lt.s32.totalorder %v1194, 15
      %vm2640 = vcmp.lt.s32.totalorder %v1195, 15
      %vm2641 = vcmp.lt.s32.totalorder %v1196, 15
      %vm2642 = vcmp.lt.s32.totalorder %v1197, 15
      %vm2643 = vcmp.lt.s32.totalorder %v1198, 15
      %vm2644 = vcmp.lt.s32.totalorder %v1199, 15
      %vm2645 = vcmp.lt.s32.totalorder %v1200, 15
      %vm2646 = vcmp.lt.s32.totalorder %v1201, 15
      %vm2647 = vcmp.lt.s32.totalorder %v1202, 15
      %vm2648 = vcmp.lt.s32.totalorder %v1203, 15
      %vm2649 = vcmp.lt.s32.totalorder %v1204, 15
      %vm2650 = vcmp.lt.s32.totalorder %v1205, 15
      %vm2651 = vcmp.lt.s32.totalorder %v1206, 15
      %vm2652 = vcmp.lt.s32.totalorder %v1207, 15
      %v2653 = vsel %vm2621, 1, 0
      %v2654 = vsel %vm2622, 1, 0
      %v2655 = vsel %vm2623, 1, 0
      %v2656 = vsel %vm2624, 1, 0
      %v2657 = vsel %vm2625, 1, 0
      %v2658 = vsel %vm2626, 1, 0
      %v2659 = vsel %vm2627, 1, 0
      %v2660 = vsel %vm2628, 1, 0
      %v2661 = vsel %vm2629, 1, 0
      %v2662 = vsel %vm2630, 1, 0
      %v2663 = vsel %vm2631, 1, 0
      %v2664 = vsel %vm2632, 1, 0
      %v2665 = vsel %vm2633, 1, 0
      %v2666 = vsel %vm2634, 1, 0
      %v2667 = vsel %vm2635, 1, 0
      %v2668 = vsel %vm2636, 1, 0
      %v2669 = vsel %vm2637, 1, 0
      %v2670 = vsel %vm2638, 1, 0
      %v2671 = vsel %vm2639, 1, 0
      %v2672 = vsel %vm2640, 1, 0
      %v2673 = vsel %vm2641, 1, 0
      %v2674 = vsel %vm2642, 1, 0
      %v2675 = vsel %vm2643, 1, 0
      %v2676 = vsel %vm2644, 1, 0
      %v2677 = vsel %vm2645, 1, 0
      %v2678 = vsel %vm2646, 1, 0
      %v2679 = vsel %vm2647, 1, 0
      %v2680 = vsel %vm2648, 1, 0
      %v2681 = vsel %vm2649, 1, 0
      %v2682 = vsel %vm2650, 1, 0
      %v2683 = vsel %vm2651, 1, 0
      %v2684 = vsel %vm2652, 1, 0
      %vm2685 = vcmp.eq.s32.totalorder %v2653, 1
      %vm2686 = vcmp.eq.s32.totalorder %v2654, 1
      %vm2687 = vcmp.eq.s32.totalorder %v2655, 1
      %vm2688 = vcmp.eq.s32.totalorder %v2656, 1
      %vm2689 = vcmp.eq.s32.totalorder %v2657, 1
      %vm2690 = vcmp.eq.s32.totalorder %v2658, 1
      %vm2691 = vcmp.eq.s32.totalorder %v2659, 1
      %vm2692 = vcmp.eq.s32.totalorder %v2660, 1
      %vm2693 = vcmp.eq.s32.totalorder %v2661, 1
      %vm2694 = vcmp.eq.s32.totalorder %v2662, 1
      %vm2695 = vcmp.eq.s32.totalorder %v2663, 1
      %vm2696 = vcmp.eq.s32.totalorder %v2664, 1
      %vm2697 = vcmp.eq.s32.totalorder %v2665, 1
      %vm2698 = vcmp.eq.s32.totalorder %v2666, 1
      %vm2699 = vcmp.eq.s32.totalorder %v2667, 1
      %vm2700 = vcmp.eq.s32.totalorder %v2668, 1
      %vm2701 = vcmp.eq.s32.totalorder %v2669, 1
      %vm2702 = vcmp.eq.s32.totalorder %v2670, 1
      %vm2703 = vcmp.eq.s32.totalorder %v2671, 1
      %vm2704 = vcmp.eq.s32.totalorder %v2672, 1
      %vm2705 = vcmp.eq.s32.totalorder %v2673, 1
      %vm2706 = vcmp.eq.s32.totalorder %v2674, 1
      %vm2707 = vcmp.eq.s32.totalorder %v2675, 1
      %vm2708 = vcmp.eq.s32.totalorder %v2676, 1
      %vm2709 = vcmp.eq.s32.totalorder %v2677, 1
      %vm2710 = vcmp.eq.s32.totalorder %v2678, 1
      %vm2711 = vcmp.eq.s32.totalorder %v2679, 1
      %vm2712 = vcmp.eq.s32.totalorder %v2680, 1
      %vm2713 = vcmp.eq.s32.totalorder %v2681, 1
      %vm2714 = vcmp.eq.s32.totalorder %v2682, 1
      %vm2715 = vcmp.eq.s32.totalorder %v2683, 1
      %vm2716 = vcmp.eq.s32.totalorder %v2684, 1
      %vm2717 = vmpackc.low %vm2685, %vm2685
      %vm2718 = vmpackc.low %vm2686, %vm2686
      %vm2719 = vmpackc.low %vm2687, %vm2687
      %vm2720 = vmpackc.low %vm2688, %vm2688
      %vm2721 = vmpackc.low %vm2689, %vm2689
      %vm2722 = vmpackc.low %vm2690, %vm2690
      %vm2723 = vmpackc.low %vm2691, %vm2691
      %vm2724 = vmpackc.low %vm2692, %vm2692
      %vm2725 = vmpackc.low %vm2693, %vm2693
      %vm2726 = vmpackc.low %vm2694, %vm2694
      %vm2727 = vmpackc.low %vm2695, %vm2695
      %vm2728 = vmpackc.low %vm2696, %vm2696
      %vm2729 = vmpackc.low %vm2697, %vm2697
      %vm2730 = vmpackc.low %vm2698, %vm2698
      %vm2731 = vmpackc.low %vm2699, %vm2699
      %vm2732 = vmpackc.low %vm2700, %vm2700
      %vm2733 = vmpackc.low %vm2701, %vm2701
      %vm2734 = vmpackc.low %vm2702, %vm2702
      %vm2735 = vmpackc.low %vm2703, %vm2703
      %vm2736 = vmpackc.low %vm2704, %vm2704
      %vm2737 = vmpackc.low %vm2705, %vm2705
      %vm2738 = vmpackc.low %vm2706, %vm2706
      %vm2739 = vmpackc.low %vm2707, %vm2707
      %vm2740 = vmpackc.low %vm2708, %vm2708
      %vm2741 = vmpackc.low %vm2709, %vm2709
      %vm2742 = vmpackc.low %vm2710, %vm2710
      %vm2743 = vmpackc.low %vm2711, %vm2711
      %vm2744 = vmpackc.low %vm2712, %vm2712
      %vm2745 = vmpackc.low %vm2713, %vm2713
      %vm2746 = vmpackc.low %vm2714, %vm2714
      %vm2747 = vmpackc.low %vm2715, %vm2715
      %vm2748 = vmpackc.low %vm2716, %vm2716
      %v2749 = vsel %vm2717, 65537, 0
      %v2750 = vsel %vm2718, 65537, 0
      %v2751 = vsel %vm2719, 65537, 0
      %v2752 = vsel %vm2720, 65537, 0
      %v2753 = vsel %vm2721, 65537, 0
      %v2754 = vsel %vm2722, 65537, 0
      %v2755 = vsel %vm2723, 65537, 0
      %v2756 = vsel %vm2724, 65537, 0
      %v2757 = vsel %vm2725, 65537, 0
      %v2758 = vsel %vm2726, 65537, 0
      %v2759 = vsel %vm2727, 65537, 0
      %v2760 = vsel %vm2728, 65537, 0
      %v2761 = vsel %vm2729, 65537, 0
      %v2762 = vsel %vm2730, 65537, 0
      %v2763 = vsel %vm2731, 65537, 0
      %v2764 = vsel %vm2732, 65537, 0
      %v2765 = vsel %vm2733, 65537, 0
      %v2766 = vsel %vm2734, 65537, 0
      %v2767 = vsel %vm2735, 65537, 0
      %v2768 = vsel %vm2736, 65537, 0
      %v2769 = vsel %vm2737, 65537, 0
      %v2770 = vsel %vm2738, 65537, 0
      %v2771 = vsel %vm2739, 65537, 0
      %v2772 = vsel %vm2740, 65537, 0
      %v2773 = vsel %vm2741, 65537, 0
      %v2774 = vsel %vm2742, 65537, 0
      %v2775 = vsel %vm2743, 65537, 0
      %v2776 = vsel %vm2744, 65537, 0
      %v2777 = vsel %vm2745, 65537, 0
      %v2778 = vsel %vm2746, 65537, 0
      %v2779 = vsel %vm2747, 65537, 0
      %v2780 = vsel %vm2748, 65537, 0
      %vm2781 = vsmask.f32 256
      %vm2782 = vsmask.f32 4368
      %vm2783 = vmor %vm2781, %vm2782
      %v2785 = vshrl.u32 %v2749, 16
      %v2787 = vrot.slane %v2785, 7
      %v2788 = vshll.u32 %v2749, 16
      %v2790 = vor.u32 %v2787, %v2788
      %v2791 = vrot.slane %v2787, 4
      %v2793 = vshrl.u32 %v2750, 16
      %v2795 = vrot.slane %v2793, 7
      %v2796 = vshll.u32 %v2750, 16
      %v2798 = vor.u32 %v2795, %v2796
      %v2799 = vsel %vm2783, %v2791, %v2798
      %v2800 = vrot.slane %v2795, 4
      %v2802 = vshrl.u32 %v2751, 16
      %v2804 = vrot.slane %v2802, 7
      %v2805 = vshll.u32 %v2751, 16
      %v2807 = vor.u32 %v2804, %v2805
      %v2808 = vsel %vm2783, %v2800, %v2807
      %v2809 = vrot.slane %v2804, 4
      %v2811 = vshrl.u32 %v2752, 16
      %v2813 = vrot.slane %v2811, 7
      %v2814 = vshll.u32 %v2752, 16
      %v2816 = vor.u32 %v2813, %v2814
      %v2817 = vsel %vm2783, %v2809, %v2816
      %v2818 = vrot.slane %v2813, 4
      %v2820 = vshrl.u32 %v2753, 16
      %v2822 = vrot.slane %v2820, 7
      %v2823 = vshll.u32 %v2753, 16
      %v2825 = vor.u32 %v2822, %v2823
      %v2826 = vsel %vm2783, %v2818, %v2825
      %v2827 = vrot.slane %v2822, 4
      %v2829 = vshrl.u32 %v2754, 16
      %v2831 = vrot.slane %v2829, 7
      %v2832 = vshll.u32 %v2754, 16
      %v2834 = vor.u32 %v2831, %v2832
      %v2835 = vsel %vm2783, %v2827, %v2834
      %v2836 = vrot.slane %v2831, 4
      %v2838 = vshrl.u32 %v2755, 16
      %v2840 = vrot.slane %v2838, 7
      %v2841 = vshll.u32 %v2755, 16
      %v2843 = vor.u32 %v2840, %v2841
      %v2844 = vsel %vm2783, %v2836, %v2843
      %v2845 = vrot.slane %v2840, 4
      %v2847 = vshrl.u32 %v2756, 16
      %v2849 = vrot.slane %v2847, 7
      %v2850 = vshll.u32 %v2756, 16
      %v2852 = vor.u32 %v2849, %v2850
      %v2853 = vsel %vm2783, %v2845, %v2852
      %v2854 = vrot.slane %v2849, 4
      %v2856 = vshrl.u32 %v2757, 16
      %v2858 = vrot.slane %v2856, 7
      %v2859 = vshll.u32 %v2757, 16
      %v2861 = vor.u32 %v2858, %v2859
      %v2862 = vsel %vm2783, %v2854, %v2861
      %v2863 = vrot.slane %v2858, 4
      %v2865 = vshrl.u32 %v2758, 16
      %v2867 = vrot.slane %v2865, 7
      %v2868 = vshll.u32 %v2758, 16
      %v2870 = vor.u32 %v2867, %v2868
      %v2871 = vsel %vm2783, %v2863, %v2870
      %v2872 = vrot.slane %v2867, 4
      %v2874 = vshrl.u32 %v2759, 16
      %v2876 = vrot.slane %v2874, 7
      %v2877 = vshll.u32 %v2759, 16
      %v2879 = vor.u32 %v2876, %v2877
      %v2880 = vsel %vm2783, %v2872, %v2879
      %v2881 = vrot.slane %v2876, 4
      %v2883 = vshrl.u32 %v2760, 16
      %v2885 = vrot.slane %v2883, 7
      %v2886 = vshll.u32 %v2760, 16
      %v2888 = vor.u32 %v2885, %v2886
      %v2889 = vsel %vm2783, %v2881, %v2888
      %v2890 = vrot.slane %v2885, 4
      %v2892 = vshrl.u32 %v2761, 16
      %v2894 = vrot.slane %v2892, 7
      %v2895 = vshll.u32 %v2761, 16
      %v2897 = vor.u32 %v2894, %v2895
      %v2898 = vsel %vm2783, %v2890, %v2897
      %v2899 = vrot.slane %v2894, 4
      %v2901 = vshrl.u32 %v2762, 16
      %v2903 = vrot.slane %v2901, 7
      %v2904 = vshll.u32 %v2762, 16
      %v2906 = vor.u32 %v2903, %v2904
      %v2907 = vsel %vm2783, %v2899, %v2906
      %v2908 = vrot.slane %v2903, 4
      %v2910 = vshrl.u32 %v2763, 16
      %v2912 = vrot.slane %v2910, 7
      %v2913 = vshll.u32 %v2763, 16
      %v2915 = vor.u32 %v2912, %v2913
      %v2916 = vsel %vm2783, %v2908, %v2915
      %v2917 = vrot.slane %v2912, 4
      %v2919 = vshrl.u32 %v2764, 16
      %v2921 = vrot.slane %v2919, 7
      %v2922 = vshll.u32 %v2764, 16
      %v2924 = vor.u32 %v2921, %v2922
      %v2925 = vsel %vm2783, %v2917, %v2924
      %v2926 = vrot.slane %v2921, 4
      %v2928 = vshrl.u32 %v2765, 16
      %v2930 = vrot.slane %v2928, 7
      %v2931 = vshll.u32 %v2765, 16
      %v2933 = vor.u32 %v2930, %v2931
      %v2934 = vsel %vm2783, %v2926, %v2933
      %v2935 = vrot.slane %v2930, 4
      %v2937 = vshrl.u32 %v2766, 16
      %v2939 = vrot.slane %v2937, 7
      %v2940 = vshll.u32 %v2766, 16
      %v2942 = vor.u32 %v2939, %v2940
      %v2943 = vsel %vm2783, %v2935, %v2942
      %v2944 = vrot.slane %v2939, 4
      %v2946 = vshrl.u32 %v2767, 16
      %v2948 = vrot.slane %v2946, 7
      %v2949 = vshll.u32 %v2767, 16
      %v2951 = vor.u32 %v2948, %v2949
      %v2952 = vsel %vm2783, %v2944, %v2951
      %v2953 = vrot.slane %v2948, 4
      %v2955 = vshrl.u32 %v2768, 16
      %v2957 = vrot.slane %v2955, 7
      %v2958 = vshll.u32 %v2768, 16
      %v2960 = vor.u32 %v2957, %v2958
      %v2961 = vsel %vm2783, %v2953, %v2960
      %v2962 = vrot.slane %v2957, 4
      %v2964 = vshrl.u32 %v2769, 16
      %v2966 = vrot.slane %v2964, 7
      %v2967 = vshll.u32 %v2769, 16
      %v2969 = vor.u32 %v2966, %v2967
      %v2970 = vsel %vm2783, %v2962, %v2969
      %v2971 = vrot.slane %v2966, 4
      %v2973 = vshrl.u32 %v2770, 16
      %v2975 = vrot.slane %v2973, 7
      %v2976 = vshll.u32 %v2770, 16
      %v2978 = vor.u32 %v2975, %v2976
      %v2979 = vsel %vm2783, %v2971, %v2978
      %v2980 = vrot.slane %v2975, 4
      %v2982 = vshrl.u32 %v2771, 16
      %v2984 = vrot.slane %v2982, 7
      %v2985 = vshll.u32 %v2771, 16
      %v2987 = vor.u32 %v2984, %v2985
      %v2988 = vsel %vm2783, %v2980, %v2987
      %v2989 = vrot.slane %v2984, 4
      %v2991 = vshrl.u32 %v2772, 16
      %v2993 = vrot.slane %v2991, 7
      %v2994 = vshll.u32 %v2772, 16
      %v2996 = vor.u32 %v2993, %v2994
      %v2997 = vsel %vm2783, %v2989, %v2996
      %v2998 = vrot.slane %v2993, 4
      %v3000 = vshrl.u32 %v2773, 16
      %v3002 = vrot.slane %v3000, 7
      %v3003 = vshll.u32 %v2773, 16
      %v3005 = vor.u32 %v3002, %v3003
      %v3006 = vsel %vm2783, %v2998, %v3005
      %v3007 = vrot.slane %v3002, 4
      %v3009 = vshrl.u32 %v2774, 16
      %v3011 = vrot.slane %v3009, 7
      %v3012 = vshll.u32 %v2774, 16
      %v3014 = vor.u32 %v3011, %v3012
      %v3015 = vsel %vm2783, %v3007, %v3014
      %v3016 = vrot.slane %v3011, 4
      %v3018 = vshrl.u32 %v2775, 16
      %v3020 = vrot.slane %v3018, 7
      %v3021 = vshll.u32 %v2775, 16
      %v3023 = vor.u32 %v3020, %v3021
      %v3024 = vsel %vm2783, %v3016, %v3023
      %v3025 = vrot.slane %v3020, 4
      %v3027 = vshrl.u32 %v2776, 16
      %v3029 = vrot.slane %v3027, 7
      %v3030 = vshll.u32 %v2776, 16
      %v3032 = vor.u32 %v3029, %v3030
      %v3033 = vsel %vm2783, %v3025, %v3032
      %v3034 = vrot.slane %v3029, 4
      %v3036 = vshrl.u32 %v2777, 16
      %v3038 = vrot.slane %v3036, 7
      %v3039 = vshll.u32 %v2777, 16
      %v3041 = vor.u32 %v3038, %v3039
      %v3042 = vsel %vm2783, %v3034, %v3041
      %v3043 = vrot.slane %v3038, 4
      %v3045 = vshrl.u32 %v2778, 16
      %v3047 = vrot.slane %v3045, 7
      %v3048 = vshll.u32 %v2778, 16
      %v3050 = vor.u32 %v3047, %v3048
      %v3051 = vsel %vm2783, %v3043, %v3050
      %v3052 = vrot.slane %v3047, 4
      %v3054 = vshrl.u32 %v2779, 16
      %v3056 = vrot.slane %v3054, 7
      %v3057 = vshll.u32 %v2779, 16
      %v3059 = vor.u32 %v3056, %v3057
      %v3060 = vsel %vm2783, %v3052, %v3059
      %v3061 = vrot.slane %v3056, 4
      %v3063 = vshrl.u32 %v2780, 16
      %v3065 = vrot.slane %v3063, 7
      %v3066 = vshll.u32 %v2780, 16
      %v3068 = vor.u32 %v3065, %v3066
      %v3069 = vsel %vm2783, %v3061, %v3068
      %v3070 = vrot.slane %v3065, 4
      %v3071 = vunpack.c.l.b16 %v2790
      %v3072 = vunpack.c.h.b16 %v2790
      %v3073 = vunpack.c.l.b16 0
      %v3074 = vunpack.c.h.b16 0
      %vm3075 = vcmp.ne.s32.totalorder %v3071, %v3073
      %vm3076 = vcmp.ne.s32.totalorder %v3072, %v3074
      %vm3077 = vmpackc.low %vm3076, %vm3075
      %v3078 = vunpack.c.l.b16 %v2799
      %v3079 = vunpack.c.h.b16 %v2799
      %v3080 = vunpack.c.l.b16 0
      %v3081 = vunpack.c.h.b16 0
      %vm3082 = vcmp.ne.s32.totalorder %v3078, %v3080
      %vm3083 = vcmp.ne.s32.totalorder %v3079, %v3081
      %vm3084 = vmpackc.low %vm3083, %vm3082
      %v3085 = vunpack.c.l.b16 %v2808
      %v3086 = vunpack.c.h.b16 %v2808
      %v3087 = vunpack.c.l.b16 0
      %v3088 = vunpack.c.h.b16 0
      %vm3089 = vcmp.ne.s32.totalorder %v3085, %v3087
      %vm3090 = vcmp.ne.s32.totalorder %v3086, %v3088
      %vm3091 = vmpackc.low %vm3090, %vm3089
      %v3092 = vunpack.c.l.b16 %v2817
      %v3093 = vunpack.c.h.b16 %v2817
      %v3094 = vunpack.c.l.b16 0
      %v3095 = vunpack.c.h.b16 0
      %vm3096 = vcmp.ne.s32.totalorder %v3092, %v3094
      %vm3097 = vcmp.ne.s32.totalorder %v3093, %v3095
      %vm3098 = vmpackc.low %vm3097, %vm3096
      %v3099 = vunpack.c.l.b16 %v2826
      %v3100 = vunpack.c.h.b16 %v2826
      %v3101 = vunpack.c.l.b16 0
      %v3102 = vunpack.c.h.b16 0
      %vm3103 = vcmp.ne.s32.totalorder %v3099, %v3101
      %vm3104 = vcmp.ne.s32.totalorder %v3100, %v3102
      %vm3105 = vmpackc.low %vm3104, %vm3103
      %v3106 = vunpack.c.l.b16 %v2835
      %v3107 = vunpack.c.h.b16 %v2835
      %v3108 = vunpack.c.l.b16 0
      %v3109 = vunpack.c.h.b16 0
      %vm3110 = vcmp.ne.s32.totalorder %v3106, %v3108
      %vm3111 = vcmp.ne.s32.totalorder %v3107, %v3109
      %vm3112 = vmpackc.low %vm3111, %vm3110
      %v3113 = vunpack.c.l.b16 %v2844
      %v3114 = vunpack.c.h.b16 %v2844
      %v3115 = vunpack.c.l.b16 0
      %v3116 = vunpack.c.h.b16 0
      %vm3117 = vcmp.ne.s32.totalorder %v3113, %v3115
      %vm3118 = vcmp.ne.s32.totalorder %v3114, %v3116
      %vm3119 = vmpackc.low %vm3118, %vm3117
      %v3120 = vunpack.c.l.b16 %v2853
      %v3121 = vunpack.c.h.b16 %v2853
      %v3122 = vunpack.c.l.b16 0
      %v3123 = vunpack.c.h.b16 0
      %vm3124 = vcmp.ne.s32.totalorder %v3120, %v3122
      %vm3125 = vcmp.ne.s32.totalorder %v3121, %v3123
      %vm3126 = vmpackc.low %vm3125, %vm3124
      %v3127 = vunpack.c.l.b16 %v2862
      %v3128 = vunpack.c.h.b16 %v2862
      %v3129 = vunpack.c.l.b16 0
      %v3130 = vunpack.c.h.b16 0
      %vm3131 = vcmp.ne.s32.totalorder %v3127, %v3129
      %vm3132 = vcmp.ne.s32.totalorder %v3128, %v3130
      %vm3133 = vmpackc.low %vm3132, %vm3131
      %v3134 = vunpack.c.l.b16 %v2871
      %v3135 = vunpack.c.h.b16 %v2871
      %v3136 = vunpack.c.l.b16 0
      %v3137 = vunpack.c.h.b16 0
      %vm3138 = vcmp.ne.s32.totalorder %v3134, %v3136
      %vm3139 = vcmp.ne.s32.totalorder %v3135, %v3137
      %vm3140 = vmpackc.low %vm3139, %vm3138
      %v3141 = vunpack.c.l.b16 %v2880
      %v3142 = vunpack.c.h.b16 %v2880
      %v3143 = vunpack.c.l.b16 0
      %v3144 = vunpack.c.h.b16 0
      %vm3145 = vcmp.ne.s32.totalorder %v3141, %v3143
      %vm3146 = vcmp.ne.s32.totalorder %v3142, %v3144
      %vm3147 = vmpackc.low %vm3146, %vm3145
      %v3148 = vunpack.c.l.b16 %v2889
      %v3149 = vunpack.c.h.b16 %v2889
      %v3150 = vunpack.c.l.b16 0
      %v3151 = vunpack.c.h.b16 0
      %vm3152 = vcmp.ne.s32.totalorder %v3148, %v3150
      %vm3153 = vcmp.ne.s32.totalorder %v3149, %v3151
      %vm3154 = vmpackc.low %vm3153, %vm3152
      %v3155 = vunpack.c.l.b16 %v2898
      %v3156 = vunpack.c.h.b16 %v2898
      %v3157 = vunpack.c.l.b16 0
      %v3158 = vunpack.c.h.b16 0
      %vm3159 = vcmp.ne.s32.totalorder %v3155, %v3157
      %vm3160 = vcmp.ne.s32.totalorder %v3156, %v3158
      %vm3161 = vmpackc.low %vm3160, %vm3159
      %v3162 = vunpack.c.l.b16 %v2907
      %v3163 = vunpack.c.h.b16 %v2907
      %v3164 = vunpack.c.l.b16 0
      %v3165 = vunpack.c.h.b16 0
      %vm3166 = vcmp.ne.s32.totalorder %v3162, %v3164
      %vm3167 = vcmp.ne.s32.totalorder %v3163, %v3165
      %vm3168 = vmpackc.low %vm3167, %vm3166
      %v3169 = vunpack.c.l.b16 %v2916
      %v3170 = vunpack.c.h.b16 %v2916
      %v3171 = vunpack.c.l.b16 0
      %v3172 = vunpack.c.h.b16 0
      %vm3173 = vcmp.ne.s32.totalorder %v3169, %v3171
      %vm3174 = vcmp.ne.s32.totalorder %v3170, %v3172
      %vm3175 = vmpackc.low %vm3174, %vm3173
      %v3176 = vunpack.c.l.b16 %v2925
      %v3177 = vunpack.c.h.b16 %v2925
      %v3178 = vunpack.c.l.b16 0
      %v3179 = vunpack.c.h.b16 0
      %vm3180 = vcmp.ne.s32.totalorder %v3176, %v3178
      %vm3181 = vcmp.ne.s32.totalorder %v3177, %v3179
      %vm3182 = vmpackc.low %vm3181, %vm3180
      %v3183 = vunpack.c.l.b16 %v2934
      %v3184 = vunpack.c.h.b16 %v2934
      %v3185 = vunpack.c.l.b16 0
      %v3186 = vunpack.c.h.b16 0
      %vm3187 = vcmp.ne.s32.totalorder %v3183, %v3185
      %vm3188 = vcmp.ne.s32.totalorder %v3184, %v3186
      %vm3189 = vmpackc.low %vm3188, %vm3187
      %v3190 = vunpack.c.l.b16 %v2943
      %v3191 = vunpack.c.h.b16 %v2943
      %v3192 = vunpack.c.l.b16 0
      %v3193 = vunpack.c.h.b16 0
      %vm3194 = vcmp.ne.s32.totalorder %v3190, %v3192
      %vm3195 = vcmp.ne.s32.totalorder %v3191, %v3193
      %vm3196 = vmpackc.low %vm3195, %vm3194
      %v3197 = vunpack.c.l.b16 %v2952
      %v3198 = vunpack.c.h.b16 %v2952
      %v3199 = vunpack.c.l.b16 0
      %v3200 = vunpack.c.h.b16 0
      %vm3201 = vcmp.ne.s32.totalorder %v3197, %v3199
      %vm3202 = vcmp.ne.s32.totalorder %v3198, %v3200
      %vm3203 = vmpackc.low %vm3202, %vm3201
      %v3204 = vunpack.c.l.b16 %v2961
      %v3205 = vunpack.c.h.b16 %v2961
      %v3206 = vunpack.c.l.b16 0
      %v3207 = vunpack.c.h.b16 0
      %vm3208 = vcmp.ne.s32.totalorder %v3204, %v3206
      %vm3209 = vcmp.ne.s32.totalorder %v3205, %v3207
      %vm3210 = vmpackc.low %vm3209, %vm3208
      %v3211 = vunpack.c.l.b16 %v2970
      %v3212 = vunpack.c.h.b16 %v2970
      %v3213 = vunpack.c.l.b16 0
      %v3214 = vunpack.c.h.b16 0
      %vm3215 = vcmp.ne.s32.totalorder %v3211, %v3213
      %vm3216 = vcmp.ne.s32.totalorder %v3212, %v3214
      %vm3217 = vmpackc.low %vm3216, %vm3215
      %v3218 = vunpack.c.l.b16 %v2979
      %v3219 = vunpack.c.h.b16 %v2979
      %v3220 = vunpack.c.l.b16 0
      %v3221 = vunpack.c.h.b16 0
      %vm3222 = vcmp.ne.s32.totalorder %v3218, %v3220
      %vm3223 = vcmp.ne.s32.totalorder %v3219, %v3221
      %vm3224 = vmpackc.low %vm3223, %vm3222
      %v3225 = vunpack.c.l.b16 %v2988
      %v3226 = vunpack.c.h.b16 %v2988
      %v3227 = vunpack.c.l.b16 0
      %v3228 = vunpack.c.h.b16 0
      %vm3229 = vcmp.ne.s32.totalorder %v3225, %v3227
      %vm3230 = vcmp.ne.s32.totalorder %v3226, %v3228
      %vm3231 = vmpackc.low %vm3230, %vm3229
      %v3232 = vunpack.c.l.b16 %v2997
      %v3233 = vunpack.c.h.b16 %v2997
      %v3234 = vunpack.c.l.b16 0
      %v3235 = vunpack.c.h.b16 0
      %vm3236 = vcmp.ne.s32.totalorder %v3232, %v3234
      %vm3237 = vcmp.ne.s32.totalorder %v3233, %v3235
      %vm3238 = vmpackc.low %vm3237, %vm3236
      %v3239 = vunpack.c.l.b16 %v3006
      %v3240 = vunpack.c.h.b16 %v3006
      %v3241 = vunpack.c.l.b16 0
      %v3242 = vunpack.c.h.b16 0
      %vm3243 = vcmp.ne.s32.totalorder %v3239, %v3241
      %vm3244 = vcmp.ne.s32.totalorder %v3240, %v3242
      %vm3245 = vmpackc.low %vm3244, %vm3243
      %v3246 = vunpack.c.l.b16 %v3015
      %v3247 = vunpack.c.h.b16 %v3015
      %v3248 = vunpack.c.l.b16 0
      %v3249 = vunpack.c.h.b16 0
      %vm3250 = vcmp.ne.s32.totalorder %v3246, %v3248
      %vm3251 = vcmp.ne.s32.totalorder %v3247, %v3249
      %vm3252 = vmpackc.low %vm3251, %vm3250
      %v3253 = vunpack.c.l.b16 %v3024
      %v3254 = vunpack.c.h.b16 %v3024
      %v3255 = vunpack.c.l.b16 0
      %v3256 = vunpack.c.h.b16 0
      %vm3257 = vcmp.ne.s32.totalorder %v3253, %v3255
      %vm3258 = vcmp.ne.s32.totalorder %v3254, %v3256
      %vm3259 = vmpackc.low %vm3258, %vm3257
      %v3260 = vunpack.c.l.b16 %v3033
      %v3261 = vunpack.c.h.b16 %v3033
      %v3262 = vunpack.c.l.b16 0
      %v3263 = vunpack.c.h.b16 0
      %vm3264 = vcmp.ne.s32.totalorder %v3260, %v3262
      %vm3265 = vcmp.ne.s32.totalorder %v3261, %v3263
      %vm3266 = vmpackc.low %vm3265, %vm3264
      %v3267 = vunpack.c.l.b16 %v3042
      %v3268 = vunpack.c.h.b16 %v3042
      %v3269 = vunpack.c.l.b16 0
      %v3270 = vunpack.c.h.b16 0
      %vm3271 = vcmp.ne.s32.totalorder %v3267, %v3269
      %vm3272 = vcmp.ne.s32.totalorder %v3268, %v3270
      %vm3273 = vmpackc.low %vm3272, %vm3271
      %v3274 = vunpack.c.l.b16 %v3051
      %v3275 = vunpack.c.h.b16 %v3051
      %v3276 = vunpack.c.l.b16 0
      %v3277 = vunpack.c.h.b16 0
      %vm3278 = vcmp.ne.s32.totalorder %v3274, %v3276
      %vm3279 = vcmp.ne.s32.totalorder %v3275, %v3277
      %vm3280 = vmpackc.low %vm3279, %vm3278
      %v3281 = vunpack.c.l.b16 %v3060
      %v3282 = vunpack.c.h.b16 %v3060
      %v3283 = vunpack.c.l.b16 0
      %v3284 = vunpack.c.h.b16 0
      %vm3285 = vcmp.ne.s32.totalorder %v3281, %v3283
      %vm3286 = vcmp.ne.s32.totalorder %v3282, %v3284
      %vm3287 = vmpackc.low %vm3286, %vm3285
      %v3288 = vunpack.c.l.b16 %v3069
      %v3289 = vunpack.c.h.b16 %v3069
      %v3290 = vunpack.c.l.b16 0
      %v3291 = vunpack.c.h.b16 0
      %vm3292 = vcmp.ne.s32.totalorder %v3288, %v3290
      %vm3293 = vcmp.ne.s32.totalorder %v3289, %v3291
      %vm3294 = vmpackc.low %vm3293, %vm3292
      %v3295 = vunpack.c.l.b16 %v3070
      %v3296 = vunpack.c.h.b16 %v3070
      %v3297 = vunpack.c.l.b16 0
      %v3298 = vunpack.c.h.b16 0
      %vm3299 = vcmp.ne.s32.totalorder %v3295, %v3297
      %vm3300 = vcmp.ne.s32.totalorder %v3296, %v3298
      %vm3301 = vmpackc.low %vm3300, %vm3299
      %v3302 = vsel %vm3077, %v2588, 0
      %v3303 = vsel %vm3084, %v2589, 0
      %v3304 = vsel %vm3091, %v2590, 0
      %v3305 = vsel %vm3098, %v2591, 0
      %v3306 = vsel %vm3105, %v2592, 0
      %v3307 = vsel %vm3112, %v2593, 0
      %v3308 = vsel %vm3119, %v2594, 0
      %v3309 = vsel %vm3126, %v2595, 0
      %v3310 = vsel %vm3133, %v2596, 0
      %v3311 = vsel %vm3140, %v2597, 0
      %v3312 = vsel %vm3147, %v2598, 0
      %v3313 = vsel %vm3154, %v2599, 0
      %v3314 = vsel %vm3161, %v2600, 0
      %v3315 = vsel %vm3168, %v2601, 0
      %v3316 = vsel %vm3175, %v2602, 0
      %v3317 = vsel %vm3182, %v2603, 0
      %v3318 = vsel %vm3189, %v2604, 0
      %v3319 = vsel %vm3196, %v2605, 0
      %v3320 = vsel %vm3203, %v2606, 0
      %v3321 = vsel %vm3210, %v2607, 0
      %v3322 = vsel %vm3217, %v2608, 0
      %v3323 = vsel %vm3224, %v2609, 0
      %v3324 = vsel %vm3231, %v2610, 0
      %v3325 = vsel %vm3238, %v2611, 0
      %v3326 = vsel %vm3245, %v2612, 0
      %v3327 = vsel %vm3252, %v2613, 0
      %v3328 = vsel %vm3259, %v2614, 0
      %v3329 = vsel %vm3266, %v2615, 0
      %v3330 = vsel %vm3273, %v2616, 0
      %v3331 = vsel %vm3280, %v2617, 0
      %v3332 = vsel %vm3287, %v2618, 0
      %v3333 = vsel %vm3294, %v2619, 0
      %v3334 = vsel %vm3301, %v2620, 0
      %s3335 = scalar_lea.vmem %s4, 8
      %v3336 = vld [vmem:[%s3335] sm:$0xf]
      %v3370 = vunpack.c.l.b16 %v3302
      %v3371 = vunpack.c.l.b16 %v3303
      %v3372 = vunpack.c.l.b16 %v3304
      %v3373 = vunpack.c.l.b16 %v3305
      %v3374 = vunpack.c.l.b16 %v3306
      %v3375 = vunpack.c.l.b16 %v3307
      %v3376 = vunpack.c.l.b16 %v3308
      %v3377 = vunpack.c.l.b16 %v3309
      %v3378 = vunpack.c.l.b16 %v3310
      %v3379 = vunpack.c.l.b16 %v3311
      %v3380 = vunpack.c.l.b16 %v3312
      %v3381 = vunpack.c.l.b16 %v3313
      %v3382 = vunpack.c.l.b16 %v3314
      %v3383 = vunpack.c.l.b16 %v3315
      %v3384 = vunpack.c.l.b16 %v3316
      %v3385 = vunpack.c.l.b16 %v3317
      %v3386 = vunpack.c.l.b16 %v3318
      %v3387 = vunpack.c.l.b16 %v3319
      %v3388 = vunpack.c.l.b16 %v3320
      %v3389 = vunpack.c.l.b16 %v3321
      %v3390 = vunpack.c.l.b16 %v3322
      %v3391 = vunpack.c.l.b16 %v3323
      %v3392 = vunpack.c.l.b16 %v3324
      %v3393 = vunpack.c.l.b16 %v3325
      %v3394 = vunpack.c.l.b16 %v3326
      %v3395 = vunpack.c.l.b16 %v3327
      %v3396 = vunpack.c.l.b16 %v3328
      %v3397 = vunpack.c.l.b16 %v3329
      %v3398 = vunpack.c.l.b16 %v3330
      %v3399 = vunpack.c.l.b16 %v3331
      %v3400 = vunpack.c.l.b16 %v3332
      %v3401 = vunpack.c.l.b16 %v3333
      %v3402 = vunpack.c.l.b16 %v3334
      %v3403 = vpack.c.b16 %v3371, %v3370
      %v3404 = vpack.c.b16 %v3373, %v3372
      %v3405 = vpack.c.b16 %v3375, %v3374
      %v3406 = vpack.c.b16 %v3377, %v3376
      %v3407 = vpack.c.b16 %v3379, %v3378
      %v3408 = vpack.c.b16 %v3381, %v3380
      %v3409 = vpack.c.b16 %v3383, %v3382
      %v3410 = vpack.c.b16 %v3385, %v3384
      %v3411 = vpack.c.b16 %v3387, %v3386
      %v3412 = vpack.c.b16 %v3389, %v3388
      %v3413 = vpack.c.b16 %v3391, %v3390
      %v3414 = vpack.c.b16 %v3393, %v3392
      %v3415 = vpack.c.b16 %v3395, %v3394
      %v3416 = vpack.c.b16 %v3397, %v3396
      %v3417 = vpack.c.b16 %v3399, %v3398
      %v3418 = vpack.c.b16 %v3401, %v3400
      %v3419 = vpack.c.b16 %v3402, %v3402
      %vm3420 = vsmask.f32 7424
      %v3422 = vshrl.u32 %v3403, 16
      %v3424 = vshll.u32 %v3403, 16
      %v3426 = vrot.slane %v3424, 1
      %v3427 = vor.u32 %v3422, %v3426
      %v3429 = vshll.u32 %v3404, 16
      %v3431 = vrot.slane %v3429, 1
      %v3432 = vsel %vm3420, %v3427, %v3431
      %v3433 = vshrl.u32 %v3404, 16
      %v3435 = vor.u32 %v3433, %v3431
      %v3437 = vshll.u32 %v3405, 16
      %v3439 = vrot.slane %v3437, 1
      %v3440 = vsel %vm3420, %v3435, %v3439
      %v3441 = vshrl.u32 %v3405, 16
      %v3443 = vor.u32 %v3441, %v3439
      %v3445 = vshll.u32 %v3406, 16
      %v3447 = vrot.slane %v3445, 1
      %v3448 = vsel %vm3420, %v3443, %v3447
      %v3449 = vshrl.u32 %v3406, 16
      %v3451 = vor.u32 %v3449, %v3447
      %v3453 = vshll.u32 %v3407, 16
      %v3455 = vrot.slane %v3453, 1
      %v3456 = vsel %vm3420, %v3451, %v3455
      %v3457 = vshrl.u32 %v3407, 16
      %v3459 = vor.u32 %v3457, %v3455
      %v3461 = vshll.u32 %v3408, 16
      %v3463 = vrot.slane %v3461, 1
      %v3464 = vsel %vm3420, %v3459, %v3463
      %v3465 = vshrl.u32 %v3408, 16
      %v3467 = vor.u32 %v3465, %v3463
      %v3469 = vshll.u32 %v3409, 16
      %v3471 = vrot.slane %v3469, 1
      %v3472 = vsel %vm3420, %v3467, %v3471
      %v3473 = vshrl.u32 %v3409, 16
      %v3475 = vor.u32 %v3473, %v3471
      %v3477 = vshll.u32 %v3410, 16
      %v3479 = vrot.slane %v3477, 1
      %v3480 = vsel %vm3420, %v3475, %v3479
      %v3481 = vshrl.u32 %v3410, 16
      %v3483 = vor.u32 %v3481, %v3479
      %v3485 = vshll.u32 %v3411, 16
      %v3487 = vrot.slane %v3485, 1
      %v3488 = vsel %vm3420, %v3483, %v3487
      %v3489 = vshrl.u32 %v3411, 16
      %v3491 = vor.u32 %v3489, %v3487
      %v3493 = vshll.u32 %v3412, 16
      %v3495 = vrot.slane %v3493, 1
      %v3496 = vsel %vm3420, %v3491, %v3495
      %v3497 = vshrl.u32 %v3412, 16
      %v3499 = vor.u32 %v3497, %v3495
      %v3501 = vshll.u32 %v3413, 16
      %v3503 = vrot.slane %v3501, 1
      %v3504 = vsel %vm3420, %v3499, %v3503
      %v3505 = vshrl.u32 %v3413, 16
      %v3507 = vor.u32 %v3505, %v3503
      %v3509 = vshll.u32 %v3414, 16
      %v3511 = vrot.slane %v3509, 1
      %v3512 = vsel %vm3420, %v3507, %v3511
      %v3513 = vshrl.u32 %v3414, 16
      %v3515 = vor.u32 %v3513, %v3511
      %v3517 = vshll.u32 %v3415, 16
      %v3519 = vrot.slane %v3517, 1
      %v3520 = vsel %vm3420, %v3515, %v3519
      %v3521 = vshrl.u32 %v3415, 16
      %v3523 = vor.u32 %v3521, %v3519
      %v3525 = vshll.u32 %v3416, 16
      %v3527 = vrot.slane %v3525, 1
      %v3528 = vsel %vm3420, %v3523, %v3527
      %v3529 = vshrl.u32 %v3416, 16
      %v3531 = vor.u32 %v3529, %v3527
      %v3533 = vshll.u32 %v3417, 16
      %v3535 = vrot.slane %v3533, 1
      %v3536 = vsel %vm3420, %v3531, %v3535
      %v3537 = vshrl.u32 %v3417, 16
      %v3539 = vor.u32 %v3537, %v3535
      %v3541 = vshll.u32 %v3418, 16
      %v3543 = vrot.slane %v3541, 1
      %v3544 = vsel %vm3420, %v3539, %v3543
      %v3545 = vshrl.u32 %v3418, 16
      %v3547 = vor.u32 %v3545, %v3543
      %v3549 = vshll.u32 %v3419, 16
      %v3551 = vrot.slane %v3549, 1
      %v3552 = vsel %vm3420, %v3547, %v3551
      %v3554 = vsel %vm2070, %v3432, 0
      %v3557 = vsel %vm2070, %v3440, 0
      %v3560 = vsel %vm2070, %v3448, 0
      %v3563 = vsel %vm2070, %v3456, 0
      %v3566 = vsel %vm2070, %v3464, 0
      %v3569 = vsel %vm2070, %v3472, 0
      %v3572 = vsel %vm2070, %v3480, 0
      %v3575 = vsel %vm2070, %v3488, 0
      %v3578 = vsel %vm2070, %v3496, 0
      %v3581 = vsel %vm2070, %v3504, 0
      %v3584 = vsel %vm2070, %v3512, 0
      %v3587 = vsel %vm2070, %v3520, 0
      %v3590 = vsel %vm2070, %v3528, 0
      %v3593 = vsel %vm2070, %v3536, 0
      %v3596 = vsel %vm2070, %v3544, 0
      %v3599 = vsel %vm2070, %v3552, 0
      %v3602 = vsel %vm2119, %v3336, 0
      %3604 = vmatpush.bf16.msra.mxu0 0
      %3605 = vmatpush.bf16.msra.mxu0 0
      %3606 = vmatpush.bf16.msra.mxu0 0
      %3607 = vmatpush.bf16.msra.mxu0 0
      %3608 = vmatpush.bf16.msra.mxu0 0
      %3609 = vmatpush.bf16.msra.mxu0 0
      %3610 = vmatpush.bf16.msra.mxu0 0
      %3611 = vmatpush.bf16.msra.mxu0 %v3602
      %3612 = vmatmul.bf16.gmra.mxu0 %v3554
      %v3613 = vpop.f32.mrf.mxu0
      %v3614 = vadd.f32 0.0, %v3613
      %v3615 = vpop.f32.mrf.mxu0
      %v3616 = vadd.f32 0.0, %v3615
      %3617 = vmatmul.bf16.gmra.mxu0 %v3557
      %v3618 = vpop.f32.mrf.mxu0
      %v3619 = vadd.f32 0.0, %v3618
      %v3620 = vpop.f32.mrf.mxu0
      %v3621 = vadd.f32 0.0, %v3620
      %3622 = vmatmul.bf16.gmra.mxu0 %v3560
      %v3623 = vpop.f32.mrf.mxu0
      %v3624 = vadd.f32 0.0, %v3623
      %v3625 = vpop.f32.mrf.mxu0
      %v3626 = vadd.f32 0.0, %v3625
      %3627 = vmatmul.bf16.gmra.mxu0 %v3563
      %v3628 = vpop.f32.mrf.mxu0
      %v3629 = vadd.f32 0.0, %v3628
      %v3630 = vpop.f32.mrf.mxu0
      %v3631 = vadd.f32 0.0, %v3630
      %3632 = vmatmul.bf16.gmra.mxu0 %v3566
      %v3633 = vpop.f32.mrf.mxu0
      %v3634 = vadd.f32 0.0, %v3633
      %v3635 = vpop.f32.mrf.mxu0
      %v3636 = vadd.f32 0.0, %v3635
      %3637 = vmatmul.bf16.gmra.mxu0 %v3569
      %v3638 = vpop.f32.mrf.mxu0
      %v3639 = vadd.f32 0.0, %v3638
      %v3640 = vpop.f32.mrf.mxu0
      %v3641 = vadd.f32 0.0, %v3640
      %3642 = vmatmul.bf16.gmra.mxu0 %v3572
      %v3643 = vpop.f32.mrf.mxu0
      %v3644 = vadd.f32 0.0, %v3643
      %v3645 = vpop.f32.mrf.mxu0
      %v3646 = vadd.f32 0.0, %v3645
      %3647 = vmatmul.bf16.gmra.mxu0 %v3575
      %v3648 = vpop.f32.mrf.mxu0
      %v3649 = vadd.f32 0.0, %v3648
      %v3650 = vpop.f32.mrf.mxu0
      %v3651 = vadd.f32 0.0, %v3650
      %3652 = vmatmul.bf16.gmra.mxu0 %v3578
      %v3653 = vpop.f32.mrf.mxu0
      %v3654 = vadd.f32 0.0, %v3653
      %v3655 = vpop.f32.mrf.mxu0
      %v3656 = vadd.f32 0.0, %v3655
      %3657 = vmatmul.bf16.gmra.mxu0 %v3581
      %v3658 = vpop.f32.mrf.mxu0
      %v3659 = vadd.f32 0.0, %v3658
      %v3660 = vpop.f32.mrf.mxu0
      %v3661 = vadd.f32 0.0, %v3660
      %3662 = vmatmul.bf16.gmra.mxu0 %v3584
      %v3663 = vpop.f32.mrf.mxu0
      %v3664 = vadd.f32 0.0, %v3663
      %v3665 = vpop.f32.mrf.mxu0
      %v3666 = vadd.f32 0.0, %v3665
      %3667 = vmatmul.bf16.gmra.mxu0 %v3587
      %v3668 = vpop.f32.mrf.mxu0
      %v3669 = vadd.f32 0.0, %v3668
      %v3670 = vpop.f32.mrf.mxu0
      %v3671 = vadd.f32 0.0, %v3670
      %3672 = vmatmul.bf16.gmra.mxu0 %v3590
      %v3673 = vpop.f32.mrf.mxu0
      %v3674 = vadd.f32 0.0, %v3673
      %v3675 = vpop.f32.mrf.mxu0
      %v3676 = vadd.f32 0.0, %v3675
      %3677 = vmatmul.bf16.gmra.mxu0 %v3593
      %v3678 = vpop.f32.mrf.mxu0
      %v3679 = vadd.f32 0.0, %v3678
      %v3680 = vpop.f32.mrf.mxu0
      %v3681 = vadd.f32 0.0, %v3680
      %3682 = vmatmul.bf16.gmra.mxu0 %v3596
      %v3683 = vpop.f32.mrf.mxu0
      %v3684 = vadd.f32 0.0, %v3683
      %v3685 = vpop.f32.mrf.mxu0
      %v3686 = vadd.f32 0.0, %v3685
      %3687 = vmatmul.bf16.gmra.mxu0 %v3599
      %v3688 = vpop.f32.mrf.mxu0
      %v3689 = vadd.f32 0.0, %v3688
      %v3690 = vpop.f32.mrf.mxu0
      %v3691 = vadd.f32 0.0, %v3690
      %3692 = vdwg.mxu0
      %v3693 = vadd.f32 %v2509, %v3614
      %v3694 = vadd.f32 %v2511, %v3616
      %v3695 = vadd.f32 %v2514, %v3619
      %v3696 = vadd.f32 %v2516, %v3621
      %v3697 = vadd.f32 %v2519, %v3624
      %v3698 = vadd.f32 %v2521, %v3626
      %v3699 = vadd.f32 %v2524, %v3629
      %v3700 = vadd.f32 %v2526, %v3631
      %v3701 = vadd.f32 %v2529, %v3634
      %v3702 = vadd.f32 %v2531, %v3636
      %v3703 = vadd.f32 %v2534, %v3639
      %v3704 = vadd.f32 %v2536, %v3641
      %v3705 = vadd.f32 %v2539, %v3644
      %v3706 = vadd.f32 %v2541, %v3646
      %v3707 = vadd.f32 %v2544, %v3649
      %v3708 = vadd.f32 %v2546, %v3651
      %v3709 = vadd.f32 %v2549, %v3654
      %v3710 = vadd.f32 %v2551, %v3656
      %v3711 = vadd.f32 %v2554, %v3659
      %v3712 = vadd.f32 %v2556, %v3661
      %v3713 = vadd.f32 %v2559, %v3664
      %v3714 = vadd.f32 %v2561, %v3666
      %v3715 = vadd.f32 %v2564, %v3669
      %v3716 = vadd.f32 %v2566, %v3671
      %v3717 = vadd.f32 %v2569, %v3674
      %v3718 = vadd.f32 %v2571, %v3676
      %v3719 = vadd.f32 %v2574, %v3679
      %v3720 = vadd.f32 %v2576, %v3681
      %v3721 = vadd.f32 %v2579, %v3684
      %v3722 = vadd.f32 %v2581, %v3686
      %v3723 = vadd.f32 %v2584, %v3689
      %v3724 = vadd.f32 %v2586, %v3691
      %v3725 = vld [vmem:[#allocation2 + $0x8] sm:$0x8]
      %v3726 = vld [vmem:[#allocation2 + $0xc] sm:$0xf]
      %v3727 = vld [vmem:[#allocation2 + $0x10] sm:$0xf]
      %v3728 = vld [vmem:[#allocation2 + $0x14] sm:$0xf]
      %v3729 = vld [vmem:[#allocation2 + $0x18] sm:$0xf]
      %v3730 = vld [vmem:[#allocation2 + $0x1c] sm:$0xf]
      %v3731 = vld [vmem:[#allocation2 + $0x20] sm:$0xf]
      %v3732 = vld [vmem:[#allocation2 + $0x24] sm:$0xf]
      %v3733 = vld [vmem:[#allocation2 + $0x28] sm:$0xf]
      %v3734 = vld [vmem:[#allocation2 + $0x2c] sm:$0xf]
      %v3735 = vld [vmem:[#allocation2 + $0x30] sm:$0xf]
      %v3736 = vld [vmem:[#allocation2 + $0x34] sm:$0xf]
      %v3737 = vld [vmem:[#allocation2 + $0x38] sm:$0xf]
      %v3738 = vld [vmem:[#allocation2 + $0x3c] sm:$0xf]
      %v3739 = vld [vmem:[#allocation2 + $0x40] sm:$0xf]
      %v3740 = vld [vmem:[#allocation2 + $0x44] sm:$0xf]
      %v3741 = vld [vmem:[#allocation2 + $0x48] sm:$0xf]
      %v3742 = vld [vmem:[#allocation2 + $0x4c] sm:$0xf]
      %v3743 = vld [vmem:[#allocation2 + $0x50] sm:$0xf]
      %v3744 = vld [vmem:[#allocation2 + $0x54] sm:$0xf]
      %v3745 = vld [vmem:[#allocation2 + $0x58] sm:$0xf]
      %v3746 = vld [vmem:[#allocation2 + $0x5c] sm:$0xf]
      %v3747 = vld [vmem:[#allocation2 + $0x60] sm:$0xf]
      %v3748 = vld [vmem:[#allocation2 + $0x64] sm:$0xf]
      %v3749 = vld [vmem:[#allocation2 + $0x68] sm:$0xf]
      %v3750 = vld [vmem:[#allocation2 + $0x6c] sm:$0xf]
      %v3751 = vld [vmem:[#allocation2 + $0x70] sm:$0xf]
      %v3752 = vld [vmem:[#allocation2 + $0x74] sm:$0xf]
      %v3753 = vld [vmem:[#allocation2 + $0x78] sm:$0xf]
      %v3754 = vld [vmem:[#allocation2 + $0x7c] sm:$0xf]
      %v3755 = vld [vmem:[#allocation2 + $0x80] sm:$0xf]
      %v3756 = vld [vmem:[#allocation2 + $0x84] sm:$0xf]
      %v3757 = vld [vmem:[#allocation2 + $0x88] sm:$0xf]
      %v3758 = vsel %vm1729, %v3725, 0
      %v3759 = vsel %vm1736, %v3726, 0
      %v3760 = vsel %vm1743, %v3727, 0
      %v3761 = vsel %vm1750, %v3728, 0
      %v3762 = vsel %vm1757, %v3729, 0
      %v3763 = vsel %vm1764, %v3730, 0
      %v3764 = vsel %vm1771, %v3731, 0
      %v3765 = vsel %vm1778, %v3732, 0
      %v3766 = vsel %vm1785, %v3733, 0
      %v3767 = vsel %vm1792, %v3734, 0
      %v3768 = vsel %vm1799, %v3735, 0
      %v3769 = vsel %vm1806, %v3736, 0
      %v3770 = vsel %vm1813, %v3737, 0
      %v3771 = vsel %vm1820, %v3738, 0
      %v3772 = vsel %vm1827, %v3739, 0
      %v3773 = vsel %vm1834, %v3740, 0
      %v3774 = vsel %vm1841, %v3741, 0
      %v3775 = vsel %vm1848, %v3742, 0
      %v3776 = vsel %vm1855, %v3743, 0
      %v3777 = vsel %vm1862, %v3744, 0
      %v3778 = vsel %vm1869, %v3745, 0
      %v3779 = vsel %vm1876, %v3746, 0
      %v3780 = vsel %vm1883, %v3747, 0
      %v3781 = vsel %vm1890, %v3748, 0
      %v3782 = vsel %vm1897, %v3749, 0
      %v3783 = vsel %vm1904, %v3750, 0
      %v3784 = vsel %vm1911, %v3751, 0
      %v3785 = vsel %vm1918, %v3752, 0
      %v3786 = vsel %vm1925, %v3753, 0
      %v3787 = vsel %vm1932, %v3754, 0
      %v3788 = vsel %vm1939, %v3755, 0
      %v3789 = vsel %vm1946, %v3756, 0
      %v3790 = vsel %vm1953, %v3757, 0
      %s3791 = scalar_lea.vmem %s4, 12
      %v3792 = vld [vmem:[%s3791] sm:$0xf]
      %v3826 = vunpack.c.l.b16 %v3758
      %v3827 = vunpack.c.l.b16 %v3759
      %v3828 = vunpack.c.l.b16 %v3760
      %v3829 = vunpack.c.l.b16 %v3761
      %v3830 = vunpack.c.l.b16 %v3762
      %v3831 = vunpack.c.l.b16 %v3763
      %v3832 = vunpack.c.l.b16 %v3764
      %v3833 = vunpack.c.l.b16 %v3765
      %v3834 = vunpack.c.l.b16 %v3766
      %v3835 = vunpack.c.l.b16 %v3767
      %v3836 = vunpack.c.l.b16 %v3768
      %v3837 = vunpack.c.l.b16 %v3769
      %v3838 = vunpack.c.l.b16 %v3770
      %v3839 = vunpack.c.l.b16 %v3771
      %v3840 = vunpack.c.l.b16 %v3772
      %v3841 = vunpack.c.l.b16 %v3773
      %v3842 = vunpack.c.l.b16 %v3774
      %v3843 = vunpack.c.l.b16 %v3775
      %v3844 = vunpack.c.l.b16 %v3776
      %v3845 = vunpack.c.l.b16 %v3777
      %v3846 = vunpack.c.l.b16 %v3778
      %v3847 = vunpack.c.l.b16 %v3779
      %v3848 = vunpack.c.l.b16 %v3780
      %v3849 = vunpack.c.l.b16 %v3781
      %v3850 = vunpack.c.l.b16 %v3782
      %v3851 = vunpack.c.l.b16 %v3783
      %v3852 = vunpack.c.l.b16 %v3784
      %v3853 = vunpack.c.l.b16 %v3785
      %v3854 = vunpack.c.l.b16 %v3786
      %v3855 = vunpack.c.l.b16 %v3787
      %v3856 = vunpack.c.l.b16 %v3788
      %v3857 = vunpack.c.l.b16 %v3789
      %v3858 = vunpack.c.l.b16 %v3790
      %v3859 = vpack.c.b16 %v3827, %v3826
      %v3860 = vpack.c.b16 %v3829, %v3828
      %v3861 = vpack.c.b16 %v3831, %v3830
      %v3862 = vpack.c.b16 %v3833, %v3832
      %v3863 = vpack.c.b16 %v3835, %v3834
      %v3864 = vpack.c.b16 %v3837, %v3836
      %v3865 = vpack.c.b16 %v3839, %v3838
      %v3866 = vpack.c.b16 %v3841, %v3840
      %v3867 = vpack.c.b16 %v3843, %v3842
      %v3868 = vpack.c.b16 %v3845, %v3844
      %v3869 = vpack.c.b16 %v3847, %v3846
      %v3870 = vpack.c.b16 %v3849, %v3848
      %v3871 = vpack.c.b16 %v3851, %v3850
      %v3872 = vpack.c.b16 %v3853, %v3852
      %v3873 = vpack.c.b16 %v3855, %v3854
      %v3874 = vpack.c.b16 %v3857, %v3856
      %v3875 = vpack.c.b16 %v3858, %v3858
      %v3877 = vshrl.u32 %v3859, 16
      %v3879 = vrot.slane %v3877, 3
      %v3880 = vshll.u32 %v3859, 16
      %v3882 = vrot.slane %v3880, 4
      %v3883 = vor.u32 %v3879, %v3882
      %v3885 = vshrl.u32 %v3860, 16
      %v3887 = vrot.slane %v3885, 3
      %v3888 = vshll.u32 %v3860, 16
      %v3890 = vrot.slane %v3888, 4
      %v3891 = vor.u32 %v3887, %v3890
      %v3892 = vsel %vm2295, %v3883, %v3891
      %v3894 = vshrl.u32 %v3861, 16
      %v3896 = vrot.slane %v3894, 3
      %v3897 = vshll.u32 %v3861, 16
      %v3899 = vrot.slane %v3897, 4
      %v3900 = vor.u32 %v3896, %v3899
      %v3901 = vsel %vm2295, %v3891, %v3900
      %v3903 = vshrl.u32 %v3862, 16
      %v3905 = vrot.slane %v3903, 3
      %v3906 = vshll.u32 %v3862, 16
      %v3908 = vrot.slane %v3906, 4
      %v3909 = vor.u32 %v3905, %v3908
      %v3910 = vsel %vm2295, %v3900, %v3909
      %v3912 = vshrl.u32 %v3863, 16
      %v3914 = vrot.slane %v3912, 3
      %v3915 = vshll.u32 %v3863, 16
      %v3917 = vrot.slane %v3915, 4
      %v3918 = vor.u32 %v3914, %v3917
      %v3919 = vsel %vm2295, %v3909, %v3918
      %v3921 = vshrl.u32 %v3864, 16
      %v3923 = vrot.slane %v3921, 3
      %v3924 = vshll.u32 %v3864, 16
      %v3926 = vrot.slane %v3924, 4
      %v3927 = vor.u32 %v3923, %v3926
      %v3928 = vsel %vm2295, %v3918, %v3927
      %v3930 = vshrl.u32 %v3865, 16
      %v3932 = vrot.slane %v3930, 3
      %v3933 = vshll.u32 %v3865, 16
      %v3935 = vrot.slane %v3933, 4
      %v3936 = vor.u32 %v3932, %v3935
      %v3937 = vsel %vm2295, %v3927, %v3936
      %v3939 = vshrl.u32 %v3866, 16
      %v3941 = vrot.slane %v3939, 3
      %v3942 = vshll.u32 %v3866, 16
      %v3944 = vrot.slane %v3942, 4
      %v3945 = vor.u32 %v3941, %v3944
      %v3946 = vsel %vm2295, %v3936, %v3945
      %v3948 = vshrl.u32 %v3867, 16
      %v3950 = vrot.slane %v3948, 3
      %v3951 = vshll.u32 %v3867, 16
      %v3953 = vrot.slane %v3951, 4
      %v3954 = vor.u32 %v3950, %v3953
      %v3955 = vsel %vm2295, %v3945, %v3954
      %v3957 = vshrl.u32 %v3868, 16
      %v3959 = vrot.slane %v3957, 3
      %v3960 = vshll.u32 %v3868, 16
      %v3962 = vrot.slane %v3960, 4
      %v3963 = vor.u32 %v3959, %v3962
      %v3964 = vsel %vm2295, %v3954, %v3963
      %v3966 = vshrl.u32 %v3869, 16
      %v3968 = vrot.slane %v3966, 3
      %v3969 = vshll.u32 %v3869, 16
      %v3971 = vrot.slane %v3969, 4
      %v3972 = vor.u32 %v3968, %v3971
      %v3973 = vsel %vm2295, %v3963, %v3972
      %v3975 = vshrl.u32 %v3870, 16
      %v3977 = vrot.slane %v3975, 3
      %v3978 = vshll.u32 %v3870, 16
      %v3980 = vrot.slane %v3978, 4
      %v3981 = vor.u32 %v3977, %v3980
      %v3982 = vsel %vm2295, %v3972, %v3981
      %v3984 = vshrl.u32 %v3871, 16
      %v3986 = vrot.slane %v3984, 3
      %v3987 = vshll.u32 %v3871, 16
      %v3989 = vrot.slane %v3987, 4
      %v3990 = vor.u32 %v3986, %v3989
      %v3991 = vsel %vm2295, %v3981, %v3990
      %v3993 = vshrl.u32 %v3872, 16
      %v3995 = vrot.slane %v3993, 3
      %v3996 = vshll.u32 %v3872, 16
      %v3998 = vrot.slane %v3996, 4
      %v3999 = vor.u32 %v3995, %v3998
      %v4000 = vsel %vm2295, %v3990, %v3999
      %v4002 = vshrl.u32 %v3873, 16
      %v4004 = vrot.slane %v4002, 3
      %v4005 = vshll.u32 %v3873, 16
      %v4007 = vrot.slane %v4005, 4
      %v4008 = vor.u32 %v4004, %v4007
      %v4009 = vsel %vm2295, %v3999, %v4008
      %v4011 = vshrl.u32 %v3874, 16
      %v4013 = vrot.slane %v4011, 3
      %v4014 = vshll.u32 %v3874, 16
      %v4016 = vrot.slane %v4014, 4
      %v4017 = vor.u32 %v4013, %v4016
      %v4018 = vsel %vm2295, %v4008, %v4017
      %v4020 = vshrl.u32 %v3875, 16
      %v4022 = vrot.slane %v4020, 3
      %v4023 = vshll.u32 %v3875, 16
      %v4025 = vrot.slane %v4023, 4
      %v4026 = vor.u32 %v4022, %v4025
      %v4027 = vsel %vm2295, %v4017, %v4026
      %v4029 = vsel %vm2070, %v3892, 0
      %v4032 = vsel %vm2070, %v3901, 0
      %v4035 = vsel %vm2070, %v3910, 0
      %v4038 = vsel %vm2070, %v3919, 0
      %v4041 = vsel %vm2070, %v3928, 0
      %v4044 = vsel %vm2070, %v3937, 0
      %v4047 = vsel %vm2070, %v3946, 0
      %v4050 = vsel %vm2070, %v3955, 0
      %v4053 = vsel %vm2070, %v3964, 0
      %v4056 = vsel %vm2070, %v3973, 0
      %v4059 = vsel %vm2070, %v3982, 0
      %v4062 = vsel %vm2070, %v3991, 0
      %v4065 = vsel %vm2070, %v4000, 0
      %v4068 = vsel %vm2070, %v4009, 0
      %v4071 = vsel %vm2070, %v4018, 0
      %v4074 = vsel %vm2070, %v4027, 0
      %v4077 = vsel %vm2119, %v3792, 0
      %4079 = vmatpush.bf16.msra.mxu0 0
      %4080 = vmatpush.bf16.msra.mxu0 0
      %4081 = vmatpush.bf16.msra.mxu0 0
      %4082 = vmatpush.bf16.msra.mxu0 0
      %4083 = vmatpush.bf16.msra.mxu0 0
      %4084 = vmatpush.bf16.msra.mxu0 0
      %4085 = vmatpush.bf16.msra.mxu0 0
      %4086 = vmatpush.bf16.msra.mxu0 %v4077
      %4087 = vmatmul.bf16.gmra.mxu0 %v4029
      %v4088 = vpop.f32.mrf.mxu0
      %v4089 = vadd.f32 0.0, %v4088
      %v4090 = vpop.f32.mrf.mxu0
      %v4091 = vadd.f32 0.0, %v4090
      %4092 = vmatmul.bf16.gmra.mxu0 %v4032
      %v4093 = vpop.f32.mrf.mxu0
      %v4094 = vadd.f32 0.0, %v4093
      %v4095 = vpop.f32.mrf.mxu0
      %v4096 = vadd.f32 0.0, %v4095
      %4097 = vmatmul.bf16.gmra.mxu0 %v4035
      %v4098 = vpop.f32.mrf.mxu0
      %v4099 = vadd.f32 0.0, %v4098
      %v4100 = vpop.f32.mrf.mxu0
      %v4101 = vadd.f32 0.0, %v4100
      %4102 = vmatmul.bf16.gmra.mxu0 %v4038
      %v4103 = vpop.f32.mrf.mxu0
      %v4104 = vadd.f32 0.0, %v4103
      %v4105 = vpop.f32.mrf.mxu0
      %v4106 = vadd.f32 0.0, %v4105
      %4107 = vmatmul.bf16.gmra.mxu0 %v4041
      %v4108 = vpop.f32.mrf.mxu0
      %v4109 = vadd.f32 0.0, %v4108
      %v4110 = vpop.f32.mrf.mxu0
      %v4111 = vadd.f32 0.0, %v4110
      %4112 = vmatmul.bf16.gmra.mxu0 %v4044
      %v4113 = vpop.f32.mrf.mxu0
      %v4114 = vadd.f32 0.0, %v4113
      %v4115 = vpop.f32.mrf.mxu0
      %v4116 = vadd.f32 0.0, %v4115
      %4117 = vmatmul.bf16.gmra.mxu0 %v4047
      %v4118 = vpop.f32.mrf.mxu0
      %v4119 = vadd.f32 0.0, %v4118
      %v4120 = vpop.f32.mrf.mxu0
      %v4121 = vadd.f32 0.0, %v4120
      %4122 = vmatmul.bf16.gmra.mxu0 %v4050
      %v4123 = vpop.f32.mrf.mxu0
      %v4124 = vadd.f32 0.0, %v4123
      %v4125 = vpop.f32.mrf.mxu0
      %v4126 = vadd.f32 0.0, %v4125
      %4127 = vmatmul.bf16.gmra.mxu0 %v4053
      %v4128 = vpop.f32.mrf.mxu0
      %v4129 = vadd.f32 0.0, %v4128
      %v4130 = vpop.f32.mrf.mxu0
      %v4131 = vadd.f32 0.0, %v4130
      %4132 = vmatmul.bf16.gmra.mxu0 %v4056
      %v4133 = vpop.f32.mrf.mxu0
      %v4134 = vadd.f32 0.0, %v4133
      %v4135 = vpop.f32.mrf.mxu0
      %v4136 = vadd.f32 0.0, %v4135
      %4137 = vmatmul.bf16.gmra.mxu0 %v4059
      %v4138 = vpop.f32.mrf.mxu0
      %v4139 = vadd.f32 0.0, %v4138
      %v4140 = vpop.f32.mrf.mxu0
      %v4141 = vadd.f32 0.0, %v4140
      %4142 = vmatmul.bf16.gmra.mxu0 %v4062
      %v4143 = vpop.f32.mrf.mxu0
      %v4144 = vadd.f32 0.0, %v4143
      %v4145 = vpop.f32.mrf.mxu0
      %v4146 = vadd.f32 0.0, %v4145
      %4147 = vmatmul.bf16.gmra.mxu0 %v4065
      %v4148 = vpop.f32.mrf.mxu0
      %v4149 = vadd.f32 0.0, %v4148
      %v4150 = vpop.f32.mrf.mxu0
      %v4151 = vadd.f32 0.0, %v4150
      %4152 = vmatmul.bf16.gmra.mxu0 %v4068
      %v4153 = vpop.f32.mrf.mxu0
      %v4154 = vadd.f32 0.0, %v4153
      %v4155 = vpop.f32.mrf.mxu0
      %v4156 = vadd.f32 0.0, %v4155
      %4157 = vmatmul.bf16.gmra.mxu0 %v4071
      %v4158 = vpop.f32.mrf.mxu0
      %v4159 = vadd.f32 0.0, %v4158
      %v4160 = vpop.f32.mrf.mxu0
      %v4161 = vadd.f32 0.0, %v4160
      %4162 = vmatmul.bf16.gmra.mxu0 %v4074
      %v4163 = vpop.f32.mrf.mxu0
      %v4164 = vadd.f32 0.0, %v4163
      %v4165 = vpop.f32.mrf.mxu0
      %v4166 = vadd.f32 0.0, %v4165
      %4167 = vdwg.mxu0
      %v4168 = vadd.f32 %v3693, %v4089
      %v4169 = vadd.f32 %v3694, %v4091
      %v4170 = vadd.f32 %v3695, %v4094
      %v4171 = vadd.f32 %v3696, %v4096
      %v4172 = vadd.f32 %v3697, %v4099
      %v4173 = vadd.f32 %v3698, %v4101
      %v4174 = vadd.f32 %v3699, %v4104
      %v4175 = vadd.f32 %v3700, %v4106
      %v4176 = vadd.f32 %v3701, %v4109
      %v4177 = vadd.f32 %v3702, %v4111
      %v4178 = vadd.f32 %v3703, %v4114
      %v4179 = vadd.f32 %v3704, %v4116
      %v4180 = vadd.f32 %v3705, %v4119
      %v4181 = vadd.f32 %v3706, %v4121
      %v4182 = vadd.f32 %v3707, %v4124
      %v4183 = vadd.f32 %v3708, %v4126
      %v4184 = vadd.f32 %v3709, %v4129
      %v4185 = vadd.f32 %v3710, %v4131
      %v4186 = vadd.f32 %v3711, %v4134
      %v4187 = vadd.f32 %v3712, %v4136
      %v4188 = vadd.f32 %v3713, %v4139
      %v4189 = vadd.f32 %v3714, %v4141
      %v4190 = vadd.f32 %v3715, %v4144
      %v4191 = vadd.f32 %v3716, %v4146
      %v4192 = vadd.f32 %v3717, %v4149
      %v4193 = vadd.f32 %v3718, %v4151
      %v4194 = vadd.f32 %v3719, %v4154
      %v4195 = vadd.f32 %v3720, %v4156
      %v4196 = vadd.f32 %v3721, %v4159
      %v4197 = vadd.f32 %v3722, %v4161
      %v4198 = vadd.f32 %v3723, %v4164
      %v4199 = vadd.f32 %v3724, %v4166
      %s4200 = scalar_lea.vmem %s4, 16
      %v4201 = vld [vmem:[%s4200] sm:$0xf]
      %v4234 = vunpack.c.l.b16 %v3726
      %v4235 = vunpack.c.l.b16 %v3727
      %v4236 = vunpack.c.l.b16 %v3728
      %v4237 = vunpack.c.l.b16 %v3729
      %v4238 = vunpack.c.l.b16 %v3730
      %v4239 = vunpack.c.l.b16 %v3731
      %v4240 = vunpack.c.l.b16 %v3732
      %v4241 = vunpack.c.l.b16 %v3733
      %v4242 = vunpack.c.l.b16 %v3734
      %v4243 = vunpack.c.l.b16 %v3735
      %v4244 = vunpack.c.l.b16 %v3736
      %v4245 = vunpack.c.l.b16 %v3737
      %v4246 = vunpack.c.l.b16 %v3738
      %v4247 = vunpack.c.l.b16 %v3739
      %v4248 = vunpack.c.l.b16 %v3740
      %v4249 = vunpack.c.l.b16 %v3741
      %v4250 = vunpack.c.l.b16 %v3742
      %v4251 = vunpack.c.l.b16 %v3743
      %v4252 = vunpack.c.l.b16 %v3744
      %v4253 = vunpack.c.l.b16 %v3745
      %v4254 = vunpack.c.l.b16 %v3746
      %v4255 = vunpack.c.l.b16 %v3747
      %v4256 = vunpack.c.l.b16 %v3748
      %v4257 = vunpack.c.l.b16 %v3749
      %v4258 = vunpack.c.l.b16 %v3750
      %v4259 = vunpack.c.l.b16 %v3751
      %v4260 = vunpack.c.l.b16 %v3752
      %v4261 = vunpack.c.l.b16 %v3753
      %v4262 = vunpack.c.l.b16 %v3754
      %v4263 = vunpack.c.l.b16 %v3755
      %v4264 = vunpack.c.l.b16 %v3756
      %v4265 = vunpack.c.l.b16 %v3757
      %v4266 = vpack.c.b16 %v4235, %v4234
      %v4267 = vpack.c.b16 %v4237, %v4236
      %v4268 = vpack.c.b16 %v4239, %v4238
      %v4269 = vpack.c.b16 %v4241, %v4240
      %v4270 = vpack.c.b16 %v4243, %v4242
      %v4271 = vpack.c.b16 %v4245, %v4244
      %v4272 = vpack.c.b16 %v4247, %v4246
      %v4273 = vpack.c.b16 %v4249, %v4248
      %v4274 = vpack.c.b16 %v4251, %v4250
      %v4275 = vpack.c.b16 %v4253, %v4252
      %v4276 = vpack.c.b16 %v4255, %v4254
      %v4277 = vpack.c.b16 %v4257, %v4256
      %v4278 = vpack.c.b16 %v4259, %v4258
      %v4279 = vpack.c.b16 %v4261, %v4260
      %v4280 = vpack.c.b16 %v4263, %v4262
      %v4281 = vpack.c.b16 %v4265, %v4264
      %v4283 = vsel %vm2070, %v4266, 0
      %v4286 = vsel %vm2070, %v4267, 0
      %v4289 = vsel %vm2070, %v4268, 0
      %v4292 = vsel %vm2070, %v4269, 0
      %v4295 = vsel %vm2070, %v4270, 0
      %v4298 = vsel %vm2070, %v4271, 0
      %v4301 = vsel %vm2070, %v4272, 0
      %v4304 = vsel %vm2070, %v4273, 0
      %v4307 = vsel %vm2070, %v4274, 0
      %v4310 = vsel %vm2070, %v4275, 0
      %v4313 = vsel %vm2070, %v4276, 0
      %v4316 = vsel %vm2070, %v4277, 0
      %v4319 = vsel %vm2070, %v4278, 0
      %v4322 = vsel %vm2070, %v4279, 0
      %v4325 = vsel %vm2070, %v4280, 0
      %v4328 = vsel %vm2070, %v4281, 0
      %v4331 = vsel %vm2119, %v4201, 0
      %4333 = vmatpush.bf16.msra.mxu0 0
      %4334 = vmatpush.bf16.msra.mxu0 0
      %4335 = vmatpush.bf16.msra.mxu0 0
      %4336 = vmatpush.bf16.msra.mxu0 0
      %4337 = vmatpush.bf16.msra.mxu0 0
      %4338 = vmatpush.bf16.msra.mxu0 0
      %4339 = vmatpush.bf16.msra.mxu0 0
      %4340 = vmatpush.bf16.msra.mxu0 %v4331
      %4341 = vmatmul.bf16.gmra.mxu0 %v4283
      %v4342 = vpop.f32.mrf.mxu0
      %v4343 = vadd.f32 0.0, %v4342
      %v4344 = vpop.f32.mrf.mxu0
      %v4345 = vadd.f32 0.0, %v4344
      %4346 = vmatmul.bf16.gmra.mxu0 %v4286
      %v4347 = vpop.f32.mrf.mxu0
      %v4348 = vadd.f32 0.0, %v4347
      %v4349 = vpop.f32.mrf.mxu0
      %v4350 = vadd.f32 0.0, %v4349
      %4351 = vmatmul.bf16.gmra.mxu0 %v4289
      %v4352 = vpop.f32.mrf.mxu0
      %v4353 = vadd.f32 0.0, %v4352
      %v4354 = vpop.f32.mrf.mxu0
      %v4355 = vadd.f32 0.0, %v4354
      %4356 = vmatmul.bf16.gmra.mxu0 %v4292
      %v4357 = vpop.f32.mrf.mxu0
      %v4358 = vadd.f32 0.0, %v4357
      %v4359 = vpop.f32.mrf.mxu0
      %v4360 = vadd.f32 0.0, %v4359
      %4361 = vmatmul.bf16.gmra.mxu0 %v4295
      %v4362 = vpop.f32.mrf.mxu0
      %v4363 = vadd.f32 0.0, %v4362
      %v4364 = vpop.f32.mrf.mxu0
      %v4365 = vadd.f32 0.0, %v4364
      %4366 = vmatmul.bf16.gmra.mxu0 %v4298
      %v4367 = vpop.f32.mrf.mxu0
      %v4368 = vadd.f32 0.0, %v4367
      %v4369 = vpop.f32.mrf.mxu0
      %v4370 = vadd.f32 0.0, %v4369
      %4371 = vmatmul.bf16.gmra.mxu0 %v4301
      %v4372 = vpop.f32.mrf.mxu0
      %v4373 = vadd.f32 0.0, %v4372
      %v4374 = vpop.f32.mrf.mxu0
      %v4375 = vadd.f32 0.0, %v4374
      %4376 = vmatmul.bf16.gmra.mxu0 %v4304
      %v4377 = vpop.f32.mrf.mxu0
      %v4378 = vadd.f32 0.0, %v4377
      %v4379 = vpop.f32.mrf.mxu0
      %v4380 = vadd.f32 0.0, %v4379
      %4381 = vmatmul.bf16.gmra.mxu0 %v4307
      %v4382 = vpop.f32.mrf.mxu0
      %v4383 = vadd.f32 0.0, %v4382
      %v4384 = vpop.f32.mrf.mxu0
      %v4385 = vadd.f32 0.0, %v4384
      %4386 = vmatmul.bf16.gmra.mxu0 %v4310
      %v4387 = vpop.f32.mrf.mxu0
      %v4388 = vadd.f32 0.0, %v4387
      %v4389 = vpop.f32.mrf.mxu0
      %v4390 = vadd.f32 0.0, %v4389
      %4391 = vmatmul.bf16.gmra.mxu0 %v4313
      %v4392 = vpop.f32.mrf.mxu0
      %v4393 = vadd.f32 0.0, %v4392
      %v4394 = vpop.f32.mrf.mxu0
      %v4395 = vadd.f32 0.0, %v4394
      %4396 = vmatmul.bf16.gmra.mxu0 %v4316
      %v4397 = vpop.f32.mrf.mxu0
      %v4398 = vadd.f32 0.0, %v4397
      %v4399 = vpop.f32.mrf.mxu0
      %v4400 = vadd.f32 0.0, %v4399
      %4401 = vmatmul.bf16.gmra.mxu0 %v4319
      %v4402 = vpop.f32.mrf.mxu0
      %v4403 = vadd.f32 0.0, %v4402
      %v4404 = vpop.f32.mrf.mxu0
      %v4405 = vadd.f32 0.0, %v4404
      %4406 = vmatmul.bf16.gmra.mxu0 %v4322
      %v4407 = vpop.f32.mrf.mxu0
      %v4408 = vadd.f32 0.0, %v4407
      %v4409 = vpop.f32.mrf.mxu0
      %v4410 = vadd.f32 0.0, %v4409
      %4411 = vmatmul.bf16.gmra.mxu0 %v4325
      %v4412 = vpop.f32.mrf.mxu0
      %v4413 = vadd.f32 0.0, %v4412
      %v4414 = vpop.f32.mrf.mxu0
      %v4415 = vadd.f32 0.0, %v4414
      %4416 = vmatmul.bf16.gmra.mxu0 %v4328
      %v4417 = vpop.f32.mrf.mxu0
      %v4418 = vadd.f32 0.0, %v4417
      %v4419 = vpop.f32.mrf.mxu0
      %v4420 = vadd.f32 0.0, %v4419
      %4421 = vdwg.mxu0
      %v4422 = vadd.f32 %v4168, %v4343
      %v4423 = vadd.f32 %v4169, %v4345
      %v4424 = vadd.f32 %v4170, %v4348
      %v4425 = vadd.f32 %v4171, %v4350
      %v4426 = vadd.f32 %v4172, %v4353
      %v4427 = vadd.f32 %v4173, %v4355
      %v4428 = vadd.f32 %v4174, %v4358
      %v4429 = vadd.f32 %v4175, %v4360
      %v4430 = vadd.f32 %v4176, %v4363
      %v4431 = vadd.f32 %v4177, %v4365
      %v4432 = vadd.f32 %v4178, %v4368
      %v4433 = vadd.f32 %v4179, %v4370
      %v4434 = vadd.f32 %v4180, %v4373
      %v4435 = vadd.f32 %v4181, %v4375
      %v4436 = vadd.f32 %v4182, %v4378
      %v4437 = vadd.f32 %v4183, %v4380
      %v4438 = vadd.f32 %v4184, %v4383
      %v4439 = vadd.f32 %v4185, %v4385
      %v4440 = vadd.f32 %v4186, %v4388
      %v4441 = vadd.f32 %v4187, %v4390
      %v4442 = vadd.f32 %v4188, %v4393
      %v4443 = vadd.f32 %v4189, %v4395
      %v4444 = vadd.f32 %v4190, %v4398
      %v4445 = vadd.f32 %v4191, %v4400
      %v4446 = vadd.f32 %v4192, %v4403
      %v4447 = vadd.f32 %v4193, %v4405
      %v4448 = vadd.f32 %v4194, %v4408
      %v4449 = vadd.f32 %v4195, %v4410
      %v4450 = vadd.f32 %v4196, %v4413
      %v4451 = vadd.f32 %v4197, %v4415
      %v4452 = vadd.f32 %v4198, %v4418
      %v4453 = vadd.f32 %v4199, %v4420
      %v4454 = vld [vmem:[#allocation2 + $0xc] sm:$0xf]
      %v4455 = vld [vmem:[#allocation2 + $0x10] sm:$0xf]
      %v4456 = vld [vmem:[#allocation2 + $0x14] sm:$0xf]
      %v4457 = vld [vmem:[#allocation2 + $0x18] sm:$0xf]
      %v4458 = vld [vmem:[#allocation2 + $0x1c] sm:$0xf]
      %v4459 = vld [vmem:[#allocation2 + $0x20] sm:$0xf]
      %v4460 = vld [vmem:[#allocation2 + $0x24] sm:$0xf]
      %v4461 = vld [vmem:[#allocation2 + $0x28] sm:$0xf]
      %v4462 = vld [vmem:[#allocation2 + $0x2c] sm:$0xf]
      %v4463 = vld [vmem:[#allocation2 + $0x30] sm:$0xf]
      %v4464 = vld [vmem:[#allocation2 + $0x34] sm:$0xf]
      %v4465 = vld [vmem:[#allocation2 + $0x38] sm:$0xf]
      %v4466 = vld [vmem:[#allocation2 + $0x3c] sm:$0xf]
      %v4467 = vld [vmem:[#allocation2 + $0x40] sm:$0xf]
      %v4468 = vld [vmem:[#allocation2 + $0x44] sm:$0xf]
      %v4469 = vld [vmem:[#allocation2 + $0x48] sm:$0xf]
      %v4470 = vld [vmem:[#allocation2 + $0x4c] sm:$0xf]
      %v4471 = vld [vmem:[#allocation2 + $0x50] sm:$0xf]
      %v4472 = vld [vmem:[#allocation2 + $0x54] sm:$0xf]
      %v4473 = vld [vmem:[#allocation2 + $0x58] sm:$0xf]
      %v4474 = vld [vmem:[#allocation2 + $0x5c] sm:$0xf]
      %v4475 = vld [vmem:[#allocation2 + $0x60] sm:$0xf]
      %v4476 = vld [vmem:[#allocation2 + $0x64] sm:$0xf]
      %v4477 = vld [vmem:[#allocation2 + $0x68] sm:$0xf]
      %v4478 = vld [vmem:[#allocation2 + $0x6c] sm:$0xf]
      %v4479 = vld [vmem:[#allocation2 + $0x70] sm:$0xf]
      %v4480 = vld [vmem:[#allocation2 + $0x74] sm:$0xf]
      %v4481 = vld [vmem:[#allocation2 + $0x78] sm:$0xf]
      %v4482 = vld [vmem:[#allocation2 + $0x7c] sm:$0xf]
      %v4483 = vld [vmem:[#allocation2 + $0x80] sm:$0xf]
      %v4484 = vld [vmem:[#allocation2 + $0x84] sm:$0xf]
      %v4485 = vld [vmem:[#allocation2 + $0x88] sm:$0xf]
      %v4486 = vld [vmem:[#allocation2 + $0x8c] sm:$0x1]
      %v4487 = vsel %vm3077, %v4454, 0
      %v4488 = vsel %vm3084, %v4455, 0
      %v4489 = vsel %vm3091, %v4456, 0
      %v4490 = vsel %vm3098, %v4457, 0
      %v4491 = vsel %vm3105, %v4458, 0
      %v4492 = vsel %vm3112, %v4459, 0
      %v4493 = vsel %vm3119, %v4460, 0
      %v4494 = vsel %vm3126, %v4461, 0
      %v4495 = vsel %vm3133, %v4462, 0
      %v4496 = vsel %vm3140, %v4463, 0
      %v4497 = vsel %vm3147, %v4464, 0
      %v4498 = vsel %vm3154, %v4465, 0
      %v4499 = vsel %vm3161, %v4466, 0
      %v4500 = vsel %vm3168, %v4467, 0
      %v4501 = vsel %vm3175, %v4468, 0
      %v4502 = vsel %vm3182, %v4469, 0
      %v4503 = vsel %vm3189, %v4470, 0
      %v4504 = vsel %vm3196, %v4471, 0
      %v4505 = vsel %vm3203, %v4472, 0
      %v4506 = vsel %vm3210, %v4473, 0
      %v4507 = vsel %vm3217, %v4474, 0
      %v4508 = vsel %vm3224, %v4475, 0
      %v4509 = vsel %vm3231, %v4476, 0
      %v4510 = vsel %vm3238, %v4477, 0
      %v4511 = vsel %vm3245, %v4478, 0
      %v4512 = vsel %vm3252, %v4479, 0
      %v4513 = vsel %vm3259, %v4480, 0
      %v4514 = vsel %vm3266, %v4481, 0
      %v4515 = vsel %vm3273, %v4482, 0
      %v4516 = vsel %vm3280, %v4483, 0
      %v4517 = vsel %vm3287, %v4484, 0
      %v4518 = vsel %vm3294, %v4485, 0
      %v4519 = vsel %vm3301, %v4486, 0
      %s4520 = scalar_lea.vmem %s4, 20
      %v4521 = vld [vmem:[%s4520] sm:$0xf]
      %v4555 = vunpack.c.l.b16 %v4487
      %v4556 = vunpack.c.l.b16 %v4488
      %v4557 = vunpack.c.l.b16 %v4489
      %v4558 = vunpack.c.l.b16 %v4490
      %v4559 = vunpack.c.l.b16 %v4491
      %v4560 = vunpack.c.l.b16 %v4492
      %v4561 = vunpack.c.l.b16 %v4493
      %v4562 = vunpack.c.l.b16 %v4494
      %v4563 = vunpack.c.l.b16 %v4495
      %v4564 = vunpack.c.l.b16 %v4496
      %v4565 = vunpack.c.l.b16 %v4497
      %v4566 = vunpack.c.l.b16 %v4498
      %v4567 = vunpack.c.l.b16 %v4499
      %v4568 = vunpack.c.l.b16 %v4500
      %v4569 = vunpack.c.l.b16 %v4501
      %v4570 = vunpack.c.l.b16 %v4502
      %v4571 = vunpack.c.l.b16 %v4503
      %v4572 = vunpack.c.l.b16 %v4504
      %v4573 = vunpack.c.l.b16 %v4505
      %v4574 = vunpack.c.l.b16 %v4506
      %v4575 = vunpack.c.l.b16 %v4507
      %v4576 = vunpack.c.l.b16 %v4508
      %v4577 = vunpack.c.l.b16 %v4509
      %v4578 = vunpack.c.l.b16 %v4510
      %v4579 = vunpack.c.l.b16 %v4511
      %v4580 = vunpack.c.l.b16 %v4512
      %v4581 = vunpack.c.l.b16 %v4513
      %v4582 = vunpack.c.l.b16 %v4514
      %v4583 = vunpack.c.l.b16 %v4515
      %v4584 = vunpack.c.l.b16 %v4516
      %v4585 = vunpack.c.l.b16 %v4517
      %v4586 = vunpack.c.l.b16 %v4518
      %v4587 = vunpack.c.l.b16 %v4519
      %v4588 = vpack.c.b16 %v4556, %v4555
      %v4589 = vpack.c.b16 %v4558, %v4557
      %v4590 = vpack.c.b16 %v4560, %v4559
      %v4591 = vpack.c.b16 %v4562, %v4561
      %v4592 = vpack.c.b16 %v4564, %v4563
      %v4593 = vpack.c.b16 %v4566, %v4565
      %v4594 = vpack.c.b16 %v4568, %v4567
      %v4595 = vpack.c.b16 %v4570, %v4569
      %v4596 = vpack.c.b16 %v4572, %v4571
      %v4597 = vpack.c.b16 %v4574, %v4573
      %v4598 = vpack.c.b16 %v4576, %v4575
      %v4599 = vpack.c.b16 %v4578, %v4577
      %v4600 = vpack.c.b16 %v4580, %v4579
      %v4601 = vpack.c.b16 %v4582, %v4581
      %v4602 = vpack.c.b16 %v4584, %v4583
      %v4603 = vpack.c.b16 %v4586, %v4585
      %v4604 = vpack.c.b16 %v4587, %v4587
      %v4606 = vshrl.u32 %v4588, 16
      %v4608 = vshll.u32 %v4588, 16
      %v4610 = vrot.slane %v4608, 1
      %v4611 = vor.u32 %v4606, %v4610
      %v4613 = vshll.u32 %v4589, 16
      %v4615 = vrot.slane %v4613, 1
      %v4616 = vsel %vm3420, %v4611, %v4615
      %v4617 = vshrl.u32 %v4589, 16
      %v4619 = vor.u32 %v4617, %v4615
      %v4621 = vshll.u32 %v4590, 16
      %v4623 = vrot.slane %v4621, 1
      %v4624 = vsel %vm3420, %v4619, %v4623
      %v4625 = vshrl.u32 %v4590, 16
      %v4627 = vor.u32 %v4625, %v4623
      %v4629 = vshll.u32 %v4591, 16
      %v4631 = vrot.slane %v4629, 1
      %v4632 = vsel %vm3420, %v4627, %v4631
      %v4633 = vshrl.u32 %v4591, 16
      %v4635 = vor.u32 %v4633, %v4631
      %v4637 = vshll.u32 %v4592, 16
      %v4639 = vrot.slane %v4637, 1
      %v4640 = vsel %vm3420, %v4635, %v4639
      %v4641 = vshrl.u32 %v4592, 16
      %v4643 = vor.u32 %v4641, %v4639
      %v4645 = vshll.u32 %v4593, 16
      %v4647 = vrot.slane %v4645, 1
      %v4648 = vsel %vm3420, %v4643, %v4647
      %v4649 = vshrl.u32 %v4593, 16
      %v4651 = vor.u32 %v4649, %v4647
      %v4653 = vshll.u32 %v4594, 16
      %v4655 = vrot.slane %v4653, 1
      %v4656 = vsel %vm3420, %v4651, %v4655
      %v4657 = vshrl.u32 %v4594, 16
      %v4659 = vor.u32 %v4657, %v4655
      %v4661 = vshll.u32 %v4595, 16
      %v4663 = vrot.slane %v4661, 1
      %v4664 = vsel %vm3420, %v4659, %v4663
      %v4665 = vshrl.u32 %v4595, 16
      %v4667 = vor.u32 %v4665, %v4663
      %v4669 = vshll.u32 %v4596, 16
      %v4671 = vrot.slane %v4669, 1
      %v4672 = vsel %vm3420, %v4667, %v4671
      %v4673 = vshrl.u32 %v4596, 16
      %v4675 = vor.u32 %v4673, %v4671
      %v4677 = vshll.u32 %v4597, 16
      %v4679 = vrot.slane %v4677, 1
      %v4680 = vsel %vm3420, %v4675, %v4679
      %v4681 = vshrl.u32 %v4597, 16
      %v4683 = vor.u32 %v4681, %v4679
      %v4685 = vshll.u32 %v4598, 16
      %v4687 = vrot.slane %v4685, 1
      %v4688 = vsel %vm3420, %v4683, %v4687
      %v4689 = vshrl.u32 %v4598, 16
      %v4691 = vor.u32 %v4689, %v4687
      %v4693 = vshll.u32 %v4599, 16
      %v4695 = vrot.slane %v4693, 1
      %v4696 = vsel %vm3420, %v4691, %v4695
      %v4697 = vshrl.u32 %v4599, 16
      %v4699 = vor.u32 %v4697, %v4695
      %v4701 = vshll.u32 %v4600, 16
      %v4703 = vrot.slane %v4701, 1
      %v4704 = vsel %vm3420, %v4699, %v4703
      %v4705 = vshrl.u32 %v4600, 16
      %v4707 = vor.u32 %v4705, %v4703
      %v4709 = vshll.u32 %v4601, 16
      %v4711 = vrot.slane %v4709, 1
      %v4712 = vsel %vm3420, %v4707, %v4711
      %v4713 = vshrl.u32 %v4601, 16
      %v4715 = vor.u32 %v4713, %v4711
      %v4717 = vshll.u32 %v4602, 16
      %v4719 = vrot.slane %v4717, 1
      %v4720 = vsel %vm3420, %v4715, %v4719
      %v4721 = vshrl.u32 %v4602, 16
      %v4723 = vor.u32 %v4721, %v4719
      %v4725 = vshll.u32 %v4603, 16
      %v4727 = vrot.slane %v4725, 1
      %v4728 = vsel %vm3420, %v4723, %v4727
      %v4729 = vshrl.u32 %v4603, 16
      %v4731 = vor.u32 %v4729, %v4727
      %v4733 = vshll.u32 %v4604, 16
      %v4735 = vrot.slane %v4733, 1
      %v4736 = vsel %vm3420, %v4731, %v4735
      %v4738 = vsel %vm2070, %v4616, 0
      %v4741 = vsel %vm2070, %v4624, 0
      %v4744 = vsel %vm2070, %v4632, 0
      %v4747 = vsel %vm2070, %v4640, 0
      %v4750 = vsel %vm2070, %v4648, 0
      %v4753 = vsel %vm2070, %v4656, 0
      %v4756 = vsel %vm2070, %v4664, 0
      %v4759 = vsel %vm2070, %v4672, 0
      %v4762 = vsel %vm2070, %v4680, 0
      %v4765 = vsel %vm2070, %v4688, 0
      %v4768 = vsel %vm2070, %v4696, 0
      %v4771 = vsel %vm2070, %v4704, 0
      %v4774 = vsel %vm2070, %v4712, 0
      %v4777 = vsel %vm2070, %v4720, 0
      %v4780 = vsel %vm2070, %v4728, 0
      %v4783 = vsel %vm2070, %v4736, 0
      %v4786 = vsel %vm2119, %v4521, 0
      %4788 = vmatpush.bf16.msra.mxu0 0
      %4789 = vmatpush.bf16.msra.mxu0 0
      %4790 = vmatpush.bf16.msra.mxu0 0
      %4791 = vmatpush.bf16.msra.mxu0 0
      %4792 = vmatpush.bf16.msra.mxu0 0
      %4793 = vmatpush.bf16.msra.mxu0 0
      %4794 = vmatpush.bf16.msra.mxu0 0
      %4795 = vmatpush.bf16.msra.mxu0 %v4786
      %4796 = vmatmul.bf16.gmra.mxu0 %v4738
      %v4797 = vpop.f32.mrf.mxu0
      %v4798 = vadd.f32 0.0, %v4797
      %v4799 = vpop.f32.mrf.mxu0
      %v4800 = vadd.f32 0.0, %v4799
      %4801 = vmatmul.bf16.gmra.mxu0 %v4741
      %v4802 = vpop.f32.mrf.mxu0
      %v4803 = vadd.f32 0.0, %v4802
      %v4804 = vpop.f32.mrf.mxu0
      %v4805 = vadd.f32 0.0, %v4804
      %4806 = vmatmul.bf16.gmra.mxu0 %v4744
      %v4807 = vpop.f32.mrf.mxu0
      %v4808 = vadd.f32 0.0, %v4807
      %v4809 = vpop.f32.mrf.mxu0
      %v4810 = vadd.f32 0.0, %v4809
      %4811 = vmatmul.bf16.gmra.mxu0 %v4747
      %v4812 = vpop.f32.mrf.mxu0
      %v4813 = vadd.f32 0.0, %v4812
      %v4814 = vpop.f32.mrf.mxu0
      %v4815 = vadd.f32 0.0, %v4814
      %4816 = vmatmul.bf16.gmra.mxu0 %v4750
      %v4817 = vpop.f32.mrf.mxu0
      %v4818 = vadd.f32 0.0, %v4817
      %v4819 = vpop.f32.mrf.mxu0
      %v4820 = vadd.f32 0.0, %v4819
      %4821 = vmatmul.bf16.gmra.mxu0 %v4753
      %v4822 = vpop.f32.mrf.mxu0
      %v4823 = vadd.f32 0.0, %v4822
      %v4824 = vpop.f32.mrf.mxu0
      %v4825 = vadd.f32 0.0, %v4824
      %4826 = vmatmul.bf16.gmra.mxu0 %v4756
      %v4827 = vpop.f32.mrf.mxu0
      %v4828 = vadd.f32 0.0, %v4827
      %v4829 = vpop.f32.mrf.mxu0
      %v4830 = vadd.f32 0.0, %v4829
      %4831 = vmatmul.bf16.gmra.mxu0 %v4759
      %v4832 = vpop.f32.mrf.mxu0
      %v4833 = vadd.f32 0.0, %v4832
      %v4834 = vpop.f32.mrf.mxu0
      %v4835 = vadd.f32 0.0, %v4834
      %4836 = vmatmul.bf16.gmra.mxu0 %v4762
      %v4837 = vpop.f32.mrf.mxu0
      %v4838 = vadd.f32 0.0, %v4837
      %v4839 = vpop.f32.mrf.mxu0
      %v4840 = vadd.f32 0.0, %v4839
      %4841 = vmatmul.bf16.gmra.mxu0 %v4765
      %v4842 = vpop.f32.mrf.mxu0
      %v4843 = vadd.f32 0.0, %v4842
      %v4844 = vpop.f32.mrf.mxu0
      %v4845 = vadd.f32 0.0, %v4844
      %4846 = vmatmul.bf16.gmra.mxu0 %v4768
      %v4847 = vpop.f32.mrf.mxu0
      %v4848 = vadd.f32 0.0, %v4847
      %v4849 = vpop.f32.mrf.mxu0
      %v4850 = vadd.f32 0.0, %v4849
      %4851 = vmatmul.bf16.gmra.mxu0 %v4771
      %v4852 = vpop.f32.mrf.mxu0
      %v4853 = vadd.f32 0.0, %v4852
      %v4854 = vpop.f32.mrf.mxu0
      %v4855 = vadd.f32 0.0, %v4854
      %4856 = vmatmul.bf16.gmra.mxu0 %v4774
      %v4857 = vpop.f32.mrf.mxu0
      %v4858 = vadd.f32 0.0, %v4857
      %v4859 = vpop.f32.mrf.mxu0
      %v4860 = vadd.f32 0.0, %v4859
      %4861 = vmatmul.bf16.gmra.mxu0 %v4777
      %v4862 = vpop.f32.mrf.mxu0
      %v4863 = vadd.f32 0.0, %v4862
      %v4864 = vpop.f32.mrf.mxu0
      %v4865 = vadd.f32 0.0, %v4864
      %4866 = vmatmul.bf16.gmra.mxu0 %v4780
      %v4867 = vpop.f32.mrf.mxu0
      %v4868 = vadd.f32 0.0, %v4867
      %v4869 = vpop.f32.mrf.mxu0
      %v4870 = vadd.f32 0.0, %v4869
      %4871 = vmatmul.bf16.gmra.mxu0 %v4783
      %v4872 = vpop.f32.mrf.mxu0
      %v4873 = vadd.f32 0.0, %v4872
      %v4874 = vpop.f32.mrf.mxu0
      %v4875 = vadd.f32 0.0, %v4874
      %4876 = vdwg.mxu0
      %v4877 = vadd.f32 %v4422, %v4798
      %v4878 = vadd.f32 %v4423, %v4800
      %v4879 = vadd.f32 %v4424, %v4803
      %v4880 = vadd.f32 %v4425, %v4805
      %v4881 = vadd.f32 %v4426, %v4808
      %v4882 = vadd.f32 %v4427, %v4810
      %v4883 = vadd.f32 %v4428, %v4813
      %v4884 = vadd.f32 %v4429, %v4815
      %v4885 = vadd.f32 %v4430, %v4818
      %v4886 = vadd.f32 %v4431, %v4820
      %v4887 = vadd.f32 %v4432, %v4823
      %v4888 = vadd.f32 %v4433, %v4825
      %v4889 = vadd.f32 %v4434, %v4828
      %v4890 = vadd.f32 %v4435, %v4830
      %v4891 = vadd.f32 %v4436, %v4833
      %v4892 = vadd.f32 %v4437, %v4835
      %v4893 = vadd.f32 %v4438, %v4838
      %v4894 = vadd.f32 %v4439, %v4840
      %v4895 = vadd.f32 %v4440, %v4843
      %v4896 = vadd.f32 %v4441, %v4845
      %v4897 = vadd.f32 %v4442, %v4848
      %v4898 = vadd.f32 %v4443, %v4850
      %v4899 = vadd.f32 %v4444, %v4853
      %v4900 = vadd.f32 %v4445, %v4855
      %v4901 = vadd.f32 %v4446, %v4858
      %v4902 = vadd.f32 %v4447, %v4860
      %v4903 = vadd.f32 %v4448, %v4863
      %v4904 = vadd.f32 %v4449, %v4865
      %v4905 = vadd.f32 %v4450, %v4868
      %v4906 = vadd.f32 %v4451, %v4870
      %v4907 = vadd.f32 %v4452, %v4873
      %v4908 = vadd.f32 %v4453, %v4875
      %v4909 = vld [vmem:[#allocation2 + $0x10] sm:$0x8]
      %v4910 = vld [vmem:[#allocation2 + $0x14] sm:$0xf]
      %v4911 = vld [vmem:[#allocation2 + $0x18] sm:$0xf]
      %v4912 = vld [vmem:[#allocation2 + $0x1c] sm:$0xf]
      %v4913 = vld [vmem:[#allocation2 + $0x20] sm:$0xf]
      %v4914 = vld [vmem:[#allocation2 + $0x24] sm:$0xf]
      %v4915 = vld [vmem:[#allocation2 + $0x28] sm:$0xf]
      %v4916 = vld [vmem:[#allocation2 + $0x2c] sm:$0xf]
      %v4917 = vld [vmem:[#allocation2 + $0x30] sm:$0xf]
      %v4918 = vld [vmem:[#allocation2 + $0x34] sm:$0xf]
      %v4919 = vld [vmem:[#allocation2 + $0x38] sm:$0xf]
      %v4920 = vld [vmem:[#allocation2 + $0x3c] sm:$0xf]
      %v4921 = vld [vmem:[#allocation2 + $0x40] sm:$0xf]
      %v4922 = vld [vmem:[#allocation2 + $0x44] sm:$0xf]
      %v4923 = vld [vmem:[#allocation2 + $0x48] sm:$0xf]
      %v4924 = vld [vmem:[#allocation2 + $0x4c] sm:$0xf]
      %v4925 = vld [vmem:[#allocation2 + $0x50] sm:$0xf]
      %v4926 = vld [vmem:[#allocation2 + $0x54] sm:$0xf]
      %v4927 = vld [vmem:[#allocation2 + $0x58] sm:$0xf]
      %v4928 = vld [vmem:[#allocation2 + $0x5c] sm:$0xf]
      %v4929 = vld [vmem:[#allocation2 + $0x60] sm:$0xf]
      %v4930 = vld [vmem:[#allocation2 + $0x64] sm:$0xf]
      %v4931 = vld [vmem:[#allocation2 + $0x68] sm:$0xf]
      %v4932 = vld [vmem:[#allocation2 + $0x6c] sm:$0xf]
      %v4933 = vld [vmem:[#allocation2 + $0x70] sm:$0xf]
      %v4934 = vld [vmem:[#allocation2 + $0x74] sm:$0xf]
      %v4935 = vld [vmem:[#allocation2 + $0x78] sm:$0xf]
      %v4936 = vld [vmem:[#allocation2 + $0x7c] sm:$0xf]
      %v4937 = vld [vmem:[#allocation2 + $0x80] sm:$0xf]
      %v4938 = vld [vmem:[#allocation2 + $0x84] sm:$0xf]
      %v4939 = vld [vmem:[#allocation2 + $0x88] sm:$0xf]
      %v4940 = vld [vmem:[#allocation2 + $0x8c] sm:$0xf]
      %v4941 = vld [vmem:[#allocation2 + $0x90] sm:$0xf]
      %v4942 = vsel %vm1729, %v4909, 0
      %v4943 = vsel %vm1736, %v4910, 0
      %v4944 = vsel %vm1743, %v4911, 0
      %v4945 = vsel %vm1750, %v4912, 0
      %v4946 = vsel %vm1757, %v4913, 0
      %v4947 = vsel %vm1764, %v4914, 0
      %v4948 = vsel %vm1771, %v4915, 0
      %v4949 = vsel %vm1778, %v4916, 0
      %v4950 = vsel %vm1785, %v4917, 0
      %v4951 = vsel %vm1792, %v4918, 0
      %v4952 = vsel %vm1799, %v4919, 0
      %v4953 = vsel %vm1806, %v4920, 0
      %v4954 = vsel %vm1813, %v4921, 0
      %v4955 = vsel %vm1820, %v4922, 0
      %v4956 = vsel %vm1827, %v4923, 0
      %v4957 = vsel %vm1834, %v4924, 0
      %v4958 = vsel %vm1841, %v4925, 0
      %v4959 = vsel %vm1848, %v4926, 0
      %v4960 = vsel %vm1855, %v4927, 0
      %v4961 = vsel %vm1862, %v4928, 0
      %v4962 = vsel %vm1869, %v4929, 0
      %v4963 = vsel %vm1876, %v4930, 0
      %v4964 = vsel %vm1883, %v4931, 0
      %v4965 = vsel %vm1890, %v4932, 0
      %v4966 = vsel %vm1897, %v4933, 0
      %v4967 = vsel %vm1904, %v4934, 0
      %v4968 = vsel %vm1911, %v4935, 0
      %v4969 = vsel %vm1918, %v4936, 0
      %v4970 = vsel %vm1925, %v4937, 0
      %v4971 = vsel %vm1932, %v4938, 0
      %v4972 = vsel %vm1939, %v4939, 0
      %v4973 = vsel %vm1946, %v4940, 0
      %v4974 = vsel %vm1953, %v4941, 0
      %s4975 = scalar_lea.vmem %s4, 24
      %v4976 = vld [vmem:[%s4975] sm:$0xf]
      %v5010 = vunpack.c.l.b16 %v4942
      %v5011 = vunpack.c.l.b16 %v4943
      %v5012 = vunpack.c.l.b16 %v4944
      %v5013 = vunpack.c.l.b16 %v4945
      %v5014 = vunpack.c.l.b16 %v4946
      %v5015 = vunpack.c.l.b16 %v4947
      %v5016 = vunpack.c.l.b16 %v4948
      %v5017 = vunpack.c.l.b16 %v4949
      %v5018 = vunpack.c.l.b16 %v4950
      %v5019 = vunpack.c.l.b16 %v4951
      %v5020 = vunpack.c.l.b16 %v4952
      %v5021 = vunpack.c.l.b16 %v4953
      %v5022 = vunpack.c.l.b16 %v4954
      %v5023 = vunpack.c.l.b16 %v4955
      %v5024 = vunpack.c.l.b16 %v4956
      %v5025 = vunpack.c.l.b16 %v4957
      %v5026 = vunpack.c.l.b16 %v4958
      %v5027 = vunpack.c.l.b16 %v4959
      %v5028 = vunpack.c.l.b16 %v4960
      %v5029 = vunpack.c.l.b16 %v4961
      %v5030 = vunpack.c.l.b16 %v4962
      %v5031 = vunpack.c.l.b16 %v4963
      %v5032 = vunpack.c.l.b16 %v4964
      %v5033 = vunpack.c.l.b16 %v4965
      %v5034 = vunpack.c.l.b16 %v4966
      %v5035 = vunpack.c.l.b16 %v4967
      %v5036 = vunpack.c.l.b16 %v4968
      %v5037 = vunpack.c.l.b16 %v4969
      %v5038 = vunpack.c.l.b16 %v4970
      %v5039 = vunpack.c.l.b16 %v4971
      %v5040 = vunpack.c.l.b16 %v4972
      %v5041 = vunpack.c.l.b16 %v4973
      %v5042 = vunpack.c.l.b16 %v4974
      %v5043 = vpack.c.b16 %v5011, %v5010
      %v5044 = vpack.c.b16 %v5013, %v5012
      %v5045 = vpack.c.b16 %v5015, %v5014
      %v5046 = vpack.c.b16 %v5017, %v5016
      %v5047 = vpack.c.b16 %v5019, %v5018
      %v5048 = vpack.c.b16 %v5021, %v5020
      %v5049 = vpack.c.b16 %v5023, %v5022
      %v5050 = vpack.c.b16 %v5025, %v5024
      %v5051 = vpack.c.b16 %v5027, %v5026
      %v5052 = vpack.c.b16 %v5029, %v5028
      %v5053 = vpack.c.b16 %v5031, %v5030
      %v5054 = vpack.c.b16 %v5033, %v5032
      %v5055 = vpack.c.b16 %v5035, %v5034
      %v5056 = vpack.c.b16 %v5037, %v5036
      %v5057 = vpack.c.b16 %v5039, %v5038
      %v5058 = vpack.c.b16 %v5041, %v5040
      %v5059 = vpack.c.b16 %v5042, %v5042
      %v5061 = vshrl.u32 %v5043, 16
      %v5063 = vrot.slane %v5061, 3
      %v5064 = vshll.u32 %v5043, 16
      %v5066 = vrot.slane %v5064, 4
      %v5067 = vor.u32 %v5063, %v5066
      %v5069 = vshrl.u32 %v5044, 16
      %v5071 = vrot.slane %v5069, 3
      %v5072 = vshll.u32 %v5044, 16
      %v5074 = vrot.slane %v5072, 4
      %v5075 = vor.u32 %v5071, %v5074
      %v5076 = vsel %vm2295, %v5067, %v5075
      %v5078 = vshrl.u32 %v5045, 16
      %v5080 = vrot.slane %v5078, 3
      %v5081 = vshll.u32 %v5045, 16
      %v5083 = vrot.slane %v5081, 4
      %v5084 = vor.u32 %v5080, %v5083
      %v5085 = vsel %vm2295, %v5075, %v5084
      %v5087 = vshrl.u32 %v5046, 16
      %v5089 = vrot.slane %v5087, 3
      %v5090 = vshll.u32 %v5046, 16
      %v5092 = vrot.slane %v5090, 4
      %v5093 = vor.u32 %v5089, %v5092
      %v5094 = vsel %vm2295, %v5084, %v5093
      %v5096 = vshrl.u32 %v5047, 16
      %v5098 = vrot.slane %v5096, 3
      %v5099 = vshll.u32 %v5047, 16
      %v5101 = vrot.slane %v5099, 4
      %v5102 = vor.u32 %v5098, %v5101
      %v5103 = vsel %vm2295, %v5093, %v5102
      %v5105 = vshrl.u32 %v5048, 16
      %v5107 = vrot.slane %v5105, 3
      %v5108 = vshll.u32 %v5048, 16
      %v5110 = vrot.slane %v5108, 4
      %v5111 = vor.u32 %v5107, %v5110
      %v5112 = vsel %vm2295, %v5102, %v5111
      %v5114 = vshrl.u32 %v5049, 16
      %v5116 = vrot.slane %v5114, 3
      %v5117 = vshll.u32 %v5049, 16
      %v5119 = vrot.slane %v5117, 4
      %v5120 = vor.u32 %v5116, %v5119
      %v5121 = vsel %vm2295, %v5111, %v5120
      %v5123 = vshrl.u32 %v5050, 16
      %v5125 = vrot.slane %v5123, 3
      %v5126 = vshll.u32 %v5050, 16
      %v5128 = vrot.slane %v5126, 4
      %v5129 = vor.u32 %v5125, %v5128
      %v5130 = vsel %vm2295, %v5120, %v5129
      %v5132 = vshrl.u32 %v5051, 16
      %v5134 = vrot.slane %v5132, 3
      %v5135 = vshll.u32 %v5051, 16
      %v5137 = vrot.slane %v5135, 4
      %v5138 = vor.u32 %v5134, %v5137
      %v5139 = vsel %vm2295, %v5129, %v5138
      %v5141 = vshrl.u32 %v5052, 16
      %v5143 = vrot.slane %v5141, 3
      %v5144 = vshll.u32 %v5052, 16
      %v5146 = vrot.slane %v5144, 4
      %v5147 = vor.u32 %v5143, %v5146
      %v5148 = vsel %vm2295, %v5138, %v5147
      %v5150 = vshrl.u32 %v5053, 16
      %v5152 = vrot.slane %v5150, 3
      %v5153 = vshll.u32 %v5053, 16
      %v5155 = vrot.slane %v5153, 4
      %v5156 = vor.u32 %v5152, %v5155
      %v5157 = vsel %vm2295, %v5147, %v5156
      %v5159 = vshrl.u32 %v5054, 16
      %v5161 = vrot.slane %v5159, 3
      %v5162 = vshll.u32 %v5054, 16
      %v5164 = vrot.slane %v5162, 4
      %v5165 = vor.u32 %v5161, %v5164
      %v5166 = vsel %vm2295, %v5156, %v5165
      %v5168 = vshrl.u32 %v5055, 16
      %v5170 = vrot.slane %v5168, 3
      %v5171 = vshll.u32 %v5055, 16
      %v5173 = vrot.slane %v5171, 4
      %v5174 = vor.u32 %v5170, %v5173
      %v5175 = vsel %vm2295, %v5165, %v5174
      %v5177 = vshrl.u32 %v5056, 16
      %v5179 = vrot.slane %v5177, 3
      %v5180 = vshll.u32 %v5056, 16
      %v5182 = vrot.slane %v5180, 4
      %v5183 = vor.u32 %v5179, %v5182
      %v5184 = vsel %vm2295, %v5174, %v5183
      %v5186 = vshrl.u32 %v5057, 16
      %v5188 = vrot.slane %v5186, 3
      %v5189 = vshll.u32 %v5057, 16
      %v5191 = vrot.slane %v5189, 4
      %v5192 = vor.u32 %v5188, %v5191
      %v5193 = vsel %vm2295, %v5183, %v5192
      %v5195 = vshrl.u32 %v5058, 16
      %v5197 = vrot.slane %v5195, 3
      %v5198 = vshll.u32 %v5058, 16
      %v5200 = vrot.slane %v5198, 4
      %v5201 = vor.u32 %v5197, %v5200
      %v5202 = vsel %vm2295, %v5192, %v5201
      %v5204 = vshrl.u32 %v5059, 16
      %v5206 = vrot.slane %v5204, 3
      %v5207 = vshll.u32 %v5059, 16
      %v5209 = vrot.slane %v5207, 4
      %v5210 = vor.u32 %v5206, %v5209
      %v5211 = vsel %vm2295, %v5201, %v5210
      %v5213 = vsel %vm2070, %v5076, 0
      %v5216 = vsel %vm2070, %v5085, 0
      %v5219 = vsel %vm2070, %v5094, 0
      %v5222 = vsel %vm2070, %v5103, 0
      %v5225 = vsel %vm2070, %v5112, 0
      %v5228 = vsel %vm2070, %v5121, 0
      %v5231 = vsel %vm2070, %v5130, 0
      %v5234 = vsel %vm2070, %v5139, 0
      %v5237 = vsel %vm2070, %v5148, 0
      %v5240 = vsel %vm2070, %v5157, 0
      %v5243 = vsel %vm2070, %v5166, 0
      %v5246 = vsel %vm2070, %v5175, 0
      %v5249 = vsel %vm2070, %v5184, 0
      %v5252 = vsel %vm2070, %v5193, 0
      %v5255 = vsel %vm2070, %v5202, 0
      %v5258 = vsel %vm2070, %v5211, 0
      %v5261 = vsel %vm2119, %v4976, 0
      %5263 = vmatpush.bf16.msra.mxu0 0
      %5264 = vmatpush.bf16.msra.mxu0 0
      %5265 = vmatpush.bf16.msra.mxu0 0
      %5266 = vmatpush.bf16.msra.mxu0 0
      %5267 = vmatpush.bf16.msra.mxu0 0
      %5268 = vmatpush.bf16.msra.mxu0 0
      %5269 = vmatpush.bf16.msra.mxu0 0
      %5270 = vmatpush.bf16.msra.mxu0 %v5261
      %5271 = vmatmul.bf16.gmra.mxu0 %v5213
      %v5272 = vpop.f32.mrf.mxu0
      %v5273 = vadd.f32 0.0, %v5272
      %v5274 = vpop.f32.mrf.mxu0
      %v5275 = vadd.f32 0.0, %v5274
      %5276 = vmatmul.bf16.gmra.mxu0 %v5216
      %v5277 = vpop.f32.mrf.mxu0
      %v5278 = vadd.f32 0.0, %v5277
      %v5279 = vpop.f32.mrf.mxu0
      %v5280 = vadd.f32 0.0, %v5279
      %5281 = vmatmul.bf16.gmra.mxu0 %v5219
      %v5282 = vpop.f32.mrf.mxu0
      %v5283 = vadd.f32 0.0, %v5282
      %v5284 = vpop.f32.mrf.mxu0
      %v5285 = vadd.f32 0.0, %v5284
      %5286 = vmatmul.bf16.gmra.mxu0 %v5222
      %v5287 = vpop.f32.mrf.mxu0
      %v5288 = vadd.f32 0.0, %v5287
      %v5289 = vpop.f32.mrf.mxu0
      %v5290 = vadd.f32 0.0, %v5289
      %5291 = vmatmul.bf16.gmra.mxu0 %v5225
      %v5292 = vpop.f32.mrf.mxu0
      %v5293 = vadd.f32 0.0, %v5292
      %v5294 = vpop.f32.mrf.mxu0
      %v5295 = vadd.f32 0.0, %v5294
      %5296 = vmatmul.bf16.gmra.mxu0 %v5228
      %v5297 = vpop.f32.mrf.mxu0
      %v5298 = vadd.f32 0.0, %v5297
      %v5299 = vpop.f32.mrf.mxu0
      %v5300 = vadd.f32 0.0, %v5299
      %5301 = vmatmul.bf16.gmra.mxu0 %v5231
      %v5302 = vpop.f32.mrf.mxu0
      %v5303 = vadd.f32 0.0, %v5302
      %v5304 = vpop.f32.mrf.mxu0
      %v5305 = vadd.f32 0.0, %v5304
      %5306 = vmatmul.bf16.gmra.mxu0 %v5234
      %v5307 = vpop.f32.mrf.mxu0
      %v5308 = vadd.f32 0.0, %v5307
      %v5309 = vpop.f32.mrf.mxu0
      %v5310 = vadd.f32 0.0, %v5309
      %5311 = vmatmul.bf16.gmra.mxu0 %v5237
      %v5312 = vpop.f32.mrf.mxu0
      %v5313 = vadd.f32 0.0, %v5312
      %v5314 = vpop.f32.mrf.mxu0
      %v5315 = vadd.f32 0.0, %v5314
      %5316 = vmatmul.bf16.gmra.mxu0 %v5240
      %v5317 = vpop.f32.mrf.mxu0
      %v5318 = vadd.f32 0.0, %v5317
      %v5319 = vpop.f32.mrf.mxu0
      %v5320 = vadd.f32 0.0, %v5319
      %5321 = vmatmul.bf16.gmra.mxu0 %v5243
      %v5322 = vpop.f32.mrf.mxu0
      %v5323 = vadd.f32 0.0, %v5322
      %v5324 = vpop.f32.mrf.mxu0
      %v5325 = vadd.f32 0.0, %v5324
      %5326 = vmatmul.bf16.gmra.mxu0 %v5246
      %v5327 = vpop.f32.mrf.mxu0
      %v5328 = vadd.f32 0.0, %v5327
      %v5329 = vpop.f32.mrf.mxu0
      %v5330 = vadd.f32 0.0, %v5329
      %5331 = vmatmul.bf16.gmra.mxu0 %v5249
      %v5332 = vpop.f32.mrf.mxu0
      %v5333 = vadd.f32 0.0, %v5332
      %v5334 = vpop.f32.mrf.mxu0
      %v5335 = vadd.f32 0.0, %v5334
      %5336 = vmatmul.bf16.gmra.mxu0 %v5252
      %v5337 = vpop.f32.mrf.mxu0
      %v5338 = vadd.f32 0.0, %v5337
      %v5339 = vpop.f32.mrf.mxu0
      %v5340 = vadd.f32 0.0, %v5339
      %5341 = vmatmul.bf16.gmra.mxu0 %v5255
      %v5342 = vpop.f32.mrf.mxu0
      %v5343 = vadd.f32 0.0, %v5342
      %v5344 = vpop.f32.mrf.mxu0
      %v5345 = vadd.f32 0.0, %v5344
      %5346 = vmatmul.bf16.gmra.mxu0 %v5258
      %v5347 = vpop.f32.mrf.mxu0
      %v5348 = vadd.f32 0.0, %v5347
      %v5349 = vpop.f32.mrf.mxu0
      %v5350 = vadd.f32 0.0, %v5349
      %5351 = vdwg.mxu0
      %v5352 = vadd.f32 %v4877, %v5273
      %v5353 = vadd.f32 %v4878, %v5275
      %v5354 = vadd.f32 %v4879, %v5278
      %v5355 = vadd.f32 %v4880, %v5280
      %v5356 = vadd.f32 %v4881, %v5283
      %v5357 = vadd.f32 %v4882, %v5285
      %v5358 = vadd.f32 %v4883, %v5288
      %v5359 = vadd.f32 %v4884, %v5290
      %v5360 = vadd.f32 %v4885, %v5293
      %v5361 = vadd.f32 %v4886, %v5295
      %v5362 = vadd.f32 %v4887, %v5298
      %v5363 = vadd.f32 %v4888, %v5300
      %v5364 = vadd.f32 %v4889, %v5303
      %v5365 = vadd.f32 %v4890, %v5305
      %v5366 = vadd.f32 %v4891, %v5308
      %v5367 = vadd.f32 %v4892, %v5310
      %v5368 = vadd.f32 %v4893, %v5313
      %v5369 = vadd.f32 %v4894, %v5315
      %v5370 = vadd.f32 %v4895, %v5318
      %v5371 = vadd.f32 %v4896, %v5320
      %v5372 = vadd.f32 %v4897, %v5323
      %v5373 = vadd.f32 %v4898, %v5325
      %v5374 = vadd.f32 %v4899, %v5328
      %v5375 = vadd.f32 %v4900, %v5330
      %v5376 = vadd.f32 %v4901, %v5333
      %v5377 = vadd.f32 %v4902, %v5335
      %v5378 = vadd.f32 %v4903, %v5338
      %v5379 = vadd.f32 %v4904, %v5340
      %v5380 = vadd.f32 %v4905, %v5343
      %v5381 = vadd.f32 %v4906, %v5345
      %v5382 = vadd.f32 %v4907, %v5348
      %v5383 = vadd.f32 %v4908, %v5350
      %s5384 = scalar_lea.vmem %s4, 28
      %v5385 = vld [vmem:[%s5384] sm:$0xf]
      %v5418 = vunpack.c.l.b16 %v4910
      %v5419 = vunpack.c.l.b16 %v4911
      %v5420 = vunpack.c.l.b16 %v4912
      %v5421 = vunpack.c.l.b16 %v4913
      %v5422 = vunpack.c.l.b16 %v4914
      %v5423 = vunpack.c.l.b16 %v4915
      %v5424 = vunpack.c.l.b16 %v4916
      %v5425 = vunpack.c.l.b16 %v4917
      %v5426 = vunpack.c.l.b16 %v4918
      %v5427 = vunpack.c.l.b16 %v4919
      %v5428 = vunpack.c.l.b16 %v4920
      %v5429 = vunpack.c.l.b16 %v4921
      %v5430 = vunpack.c.l.b16 %v4922
      %v5431 = vunpack.c.l.b16 %v4923
      %v5432 = vunpack.c.l.b16 %v4924
      %v5433 = vunpack.c.l.b16 %v4925
      %v5434 = vunpack.c.l.b16 %v4926
      %v5435 = vunpack.c.l.b16 %v4927
      %v5436 = vunpack.c.l.b16 %v4928
      %v5437 = vunpack.c.l.b16 %v4929
      %v5438 = vunpack.c.l.b16 %v4930
      %v5439 = vunpack.c.l.b16 %v4931
      %v5440 = vunpack.c.l.b16 %v4932
      %v5441 = vunpack.c.l.b16 %v4933
      %v5442 = vunpack.c.l.b16 %v4934
      %v5443 = vunpack.c.l.b16 %v4935
      %v5444 = vunpack.c.l.b16 %v4936
      %v5445 = vunpack.c.l.b16 %v4937
      %v5446 = vunpack.c.l.b16 %v4938
      %v5447 = vunpack.c.l.b16 %v4939
      %v5448 = vunpack.c.l.b16 %v4940
      %v5449 = vunpack.c.l.b16 %v4941
      %v5450 = vpack.c.b16 %v5419, %v5418
      %v5451 = vpack.c.b16 %v5421, %v5420
      %v5452 = vpack.c.b16 %v5423, %v5422
      %v5453 = vpack.c.b16 %v5425, %v5424
      %v5454 = vpack.c.b16 %v5427, %v5426
      %v5455 = vpack.c.b16 %v5429, %v5428
      %v5456 = vpack.c.b16 %v5431, %v5430
      %v5457 = vpack.c.b16 %v5433, %v5432
      %v5458 = vpack.c.b16 %v5435, %v5434
      %v5459 = vpack.c.b16 %v5437, %v5436
      %v5460 = vpack.c.b16 %v5439, %v5438
      %v5461 = vpack.c.b16 %v5441, %v5440
      %v5462 = vpack.c.b16 %v5443, %v5442
      %v5463 = vpack.c.b16 %v5445, %v5444
      %v5464 = vpack.c.b16 %v5447, %v5446
      %v5465 = vpack.c.b16 %v5449, %v5448
      %v5467 = vsel %vm2070, %v5450, 0
      %v5470 = vsel %vm2070, %v5451, 0
      %v5473 = vsel %vm2070, %v5452, 0
      %v5476 = vsel %vm2070, %v5453, 0
      %v5479 = vsel %vm2070, %v5454, 0
      %v5482 = vsel %vm2070, %v5455, 0
      %v5485 = vsel %vm2070, %v5456, 0
      %v5488 = vsel %vm2070, %v5457, 0
      %v5491 = vsel %vm2070, %v5458, 0
      %v5494 = vsel %vm2070, %v5459, 0
      %v5497 = vsel %vm2070, %v5460, 0
      %v5500 = vsel %vm2070, %v5461, 0
      %v5503 = vsel %vm2070, %v5462, 0
      %v5506 = vsel %vm2070, %v5463, 0
      %v5509 = vsel %vm2070, %v5464, 0
      %v5512 = vsel %vm2070, %v5465, 0
      %v5515 = vsel %vm2119, %v5385, 0
      %5517 = vmatpush.bf16.msra.mxu0 0
      %5518 = vmatpush.bf16.msra.mxu0 0
      %5519 = vmatpush.bf16.msra.mxu0 0
      %5520 = vmatpush.bf16.msra.mxu0 0
      %5521 = vmatpush.bf16.msra.mxu0 0
      %5522 = vmatpush.bf16.msra.mxu0 0
      %5523 = vmatpush.bf16.msra.mxu0 0
      %5524 = vmatpush.bf16.msra.mxu0 %v5515
      %5525 = vmatmul.bf16.gmra.mxu0 %v5467
      %v5526 = vpop.f32.mrf.mxu0
      %v5527 = vadd.f32 0.0, %v5526
      %v5528 = vpop.f32.mrf.mxu0
      %v5529 = vadd.f32 0.0, %v5528
      %5530 = vmatmul.bf16.gmra.mxu0 %v5470
      %v5531 = vpop.f32.mrf.mxu0
      %v5532 = vadd.f32 0.0, %v5531
      %v5533 = vpop.f32.mrf.mxu0
      %v5534 = vadd.f32 0.0, %v5533
      %5535 = vmatmul.bf16.gmra.mxu0 %v5473
      %v5536 = vpop.f32.mrf.mxu0
      %v5537 = vadd.f32 0.0, %v5536
      %v5538 = vpop.f32.mrf.mxu0
      %v5539 = vadd.f32 0.0, %v5538
      %5540 = vmatmul.bf16.gmra.mxu0 %v5476
      %v5541 = vpop.f32.mrf.mxu0
      %v5542 = vadd.f32 0.0, %v5541
      %v5543 = vpop.f32.mrf.mxu0
      %v5544 = vadd.f32 0.0, %v5543
      %5545 = vmatmul.bf16.gmra.mxu0 %v5479
      %v5546 = vpop.f32.mrf.mxu0
      %v5547 = vadd.f32 0.0, %v5546
      %v5548 = vpop.f32.mrf.mxu0
      %v5549 = vadd.f32 0.0, %v5548
      %5550 = vmatmul.bf16.gmra.mxu0 %v5482
      %v5551 = vpop.f32.mrf.mxu0
      %v5552 = vadd.f32 0.0, %v5551
      %v5553 = vpop.f32.mrf.mxu0
      %v5554 = vadd.f32 0.0, %v5553
      %5555 = vmatmul.bf16.gmra.mxu0 %v5485
      %v5556 = vpop.f32.mrf.mxu0
      %v5557 = vadd.f32 0.0, %v5556
      %v5558 = vpop.f32.mrf.mxu0
      %v5559 = vadd.f32 0.0, %v5558
      %5560 = vmatmul.bf16.gmra.mxu0 %v5488
      %v5561 = vpop.f32.mrf.mxu0
      %v5562 = vadd.f32 0.0, %v5561
      %v5563 = vpop.f32.mrf.mxu0
      %v5564 = vadd.f32 0.0, %v5563
      %5565 = vmatmul.bf16.gmra.mxu0 %v5491
      %v5566 = vpop.f32.mrf.mxu0
      %v5567 = vadd.f32 0.0, %v5566
      %v5568 = vpop.f32.mrf.mxu0
      %v5569 = vadd.f32 0.0, %v5568
      %5570 = vmatmul.bf16.gmra.mxu0 %v5494
      %v5571 = vpop.f32.mrf.mxu0
      %v5572 = vadd.f32 0.0, %v5571
      %v5573 = vpop.f32.mrf.mxu0
      %v5574 = vadd.f32 0.0, %v5573
      %5575 = vmatmul.bf16.gmra.mxu0 %v5497
      %v5576 = vpop.f32.mrf.mxu0
      %v5577 = vadd.f32 0.0, %v5576
      %v5578 = vpop.f32.mrf.mxu0
      %v5579 = vadd.f32 0.0, %v5578
      %5580 = vmatmul.bf16.gmra.mxu0 %v5500
      %v5581 = vpop.f32.mrf.mxu0
      %v5582 = vadd.f32 0.0, %v5581
      %v5583 = vpop.f32.mrf.mxu0
      %v5584 = vadd.f32 0.0, %v5583
      %5585 = vmatmul.bf16.gmra.mxu0 %v5503
      %v5586 = vpop.f32.mrf.mxu0
      %v5587 = vadd.f32 0.0, %v5586
      %v5588 = vpop.f32.mrf.mxu0
      %v5589 = vadd.f32 0.0, %v5588
      %5590 = vmatmul.bf16.gmra.mxu0 %v5506
      %v5591 = vpop.f32.mrf.mxu0
      %v5592 = vadd.f32 0.0, %v5591
      %v5593 = vpop.f32.mrf.mxu0
      %v5594 = vadd.f32 0.0, %v5593
      %5595 = vmatmul.bf16.gmra.mxu0 %v5509
      %v5596 = vpop.f32.mrf.mxu0
      %v5597 = vadd.f32 0.0, %v5596
      %v5598 = vpop.f32.mrf.mxu0
      %v5599 = vadd.f32 0.0, %v5598
      %5600 = vmatmul.bf16.gmra.mxu0 %v5512
      %v5601 = vpop.f32.mrf.mxu0
      %v5602 = vadd.f32 0.0, %v5601
      %v5603 = vpop.f32.mrf.mxu0
      %v5604 = vadd.f32 0.0, %v5603
      %5605 = vdwg.mxu0
      %v5606 = vadd.f32 %v5352, %v5527
      %v5607 = vadd.f32 %v5353, %v5529
      %v5608 = vadd.f32 %v5354, %v5532
      %v5609 = vadd.f32 %v5355, %v5534
      %v5610 = vadd.f32 %v5356, %v5537
      %v5611 = vadd.f32 %v5357, %v5539
      %v5612 = vadd.f32 %v5358, %v5542
      %v5613 = vadd.f32 %v5359, %v5544
      %v5614 = vadd.f32 %v5360, %v5547
      %v5615 = vadd.f32 %v5361, %v5549
      %v5616 = vadd.f32 %v5362, %v5552
      %v5617 = vadd.f32 %v5363, %v5554
      %v5618 = vadd.f32 %v5364, %v5557
      %v5619 = vadd.f32 %v5365, %v5559
      %v5620 = vadd.f32 %v5366, %v5562
      %v5621 = vadd.f32 %v5367, %v5564
      %v5622 = vadd.f32 %v5368, %v5567
      %v5623 = vadd.f32 %v5369, %v5569
      %v5624 = vadd.f32 %v5370, %v5572
      %v5625 = vadd.f32 %v5371, %v5574
      %v5626 = vadd.f32 %v5372, %v5577
      %v5627 = vadd.f32 %v5373, %v5579
      %v5628 = vadd.f32 %v5374, %v5582
      %v5629 = vadd.f32 %v5375, %v5584
      %v5630 = vadd.f32 %v5376, %v5587
      %v5631 = vadd.f32 %v5377, %v5589
      %v5632 = vadd.f32 %v5378, %v5592
      %v5633 = vadd.f32 %v5379, %v5594
      %v5634 = vadd.f32 %v5380, %v5597
      %v5635 = vadd.f32 %v5381, %v5599
      %v5636 = vadd.f32 %v5382, %v5602
      %v5637 = vadd.f32 %v5383, %v5604
      %v5638 = vld [vmem:[#allocation2 + $0x14] sm:$0xf]
      %v5639 = vld [vmem:[#allocation2 + $0x18] sm:$0xf]
      %v5640 = vld [vmem:[#allocation2 + $0x1c] sm:$0xf]
      %v5641 = vld [vmem:[#allocation2 + $0x20] sm:$0xf]
      %v5642 = vld [vmem:[#allocation2 + $0x24] sm:$0xf]
      %v5643 = vld [vmem:[#allocation2 + $0x28] sm:$0xf]
      %v5644 = vld [vmem:[#allocation2 + $0x2c] sm:$0xf]
      %v5645 = vld [vmem:[#allocation2 + $0x30] sm:$0xf]
      %v5646 = vld [vmem:[#allocation2 + $0x34] sm:$0xf]
      %v5647 = vld [vmem:[#allocation2 + $0x38] sm:$0xf]
      %v5648 = vld [vmem:[#allocation2 + $0x3c] sm:$0xf]
      %v5649 = vld [vmem:[#allocation2 + $0x40] sm:$0xf]
      %v5650 = vld [vmem:[#allocation2 + $0x44] sm:$0xf]
      %v5651 = vld [vmem:[#allocation2 + $0x48] sm:$0xf]
      %v5652 = vld [vmem:[#allocation2 + $0x4c] sm:$0xf]
      %v5653 = vld [vmem:[#allocation2 + $0x50] sm:$0xf]
      %v5654 = vld [vmem:[#allocation2 + $0x54] sm:$0xf]
      %v5655 = vld [vmem:[#allocation2 + $0x58] sm:$0xf]
      %v5656 = vld [vmem:[#allocation2 + $0x5c] sm:$0xf]
      %v5657 = vld [vmem:[#allocation2 + $0x60] sm:$0xf]
      %v5658 = vld [vmem:[#allocation2 + $0x64] sm:$0xf]
      %v5659 = vld [vmem:[#allocation2 + $0x68] sm:$0xf]
      %v5660 = vld [vmem:[#allocation2 + $0x6c] sm:$0xf]
      %v5661 = vld [vmem:[#allocation2 + $0x70] sm:$0xf]
      %v5662 = vld [vmem:[#allocation2 + $0x74] sm:$0xf]
      %v5663 = vld [vmem:[#allocation2 + $0x78] sm:$0xf]
      %v5664 = vld [vmem:[#allocation2 + $0x7c] sm:$0xf]
      %v5665 = vld [vmem:[#allocation2 + $0x80] sm:$0xf]
      %v5666 = vld [vmem:[#allocation2 + $0x84] sm:$0xf]
      %v5667 = vld [vmem:[#allocation2 + $0x88] sm:$0xf]
      %v5668 = vld [vmem:[#allocation2 + $0x8c] sm:$0xf]
      %v5669 = vld [vmem:[#allocation2 + $0x90] sm:$0xf]
      %v5670 = vld [vmem:[#allocation2 + $0x94] sm:$0x1]
      %v5671 = vsel %vm3077, %v5638, 0
      %v5672 = vsel %vm3084, %v5639, 0
      %v5673 = vsel %vm3091, %v5640, 0
      %v5674 = vsel %vm3098, %v5641, 0
      %v5675 = vsel %vm3105, %v5642, 0
      %v5676 = vsel %vm3112, %v5643, 0
      %v5677 = vsel %vm3119, %v5644, 0
      %v5678 = vsel %vm3126, %v5645, 0
      %v5679 = vsel %vm3133, %v5646, 0
      %v5680 = vsel %vm3140, %v5647, 0
      %v5681 = vsel %vm3147, %v5648, 0
      %v5682 = vsel %vm3154, %v5649, 0
      %v5683 = vsel %vm3161, %v5650, 0
      %v5684 = vsel %vm3168, %v5651, 0
      %v5685 = vsel %vm3175, %v5652, 0
      %v5686 = vsel %vm3182, %v5653, 0
      %v5687 = vsel %vm3189, %v5654, 0
      %v5688 = vsel %vm3196, %v5655, 0
      %v5689 = vsel %vm3203, %v5656, 0
      %v5690 = vsel %vm3210, %v5657, 0
      %v5691 = vsel %vm3217, %v5658, 0
      %v5692 = vsel %vm3224, %v5659, 0
      %v5693 = vsel %vm3231, %v5660, 0
      %v5694 = vsel %vm3238, %v5661, 0
      %v5695 = vsel %vm3245, %v5662, 0
      %v5696 = vsel %vm3252, %v5663, 0
      %v5697 = vsel %vm3259, %v5664, 0
      %v5698 = vsel %vm3266, %v5665, 0
      %v5699 = vsel %vm3273, %v5666, 0
      %v5700 = vsel %vm3280, %v5667, 0
      %v5701 = vsel %vm3287, %v5668, 0
      %v5702 = vsel %vm3294, %v5669, 0
      %v5703 = vsel %vm3301, %v5670, 0
      %s5704 = scalar_lea.vmem %s4, 32
      %v5705 = vld [vmem:[%s5704] sm:$0xf]
      %v5739 = vunpack.c.l.b16 %v5671
      %v5740 = vunpack.c.l.b16 %v5672
      %v5741 = vunpack.c.l.b16 %v5673
      %v5742 = vunpack.c.l.b16 %v5674
      %v5743 = vunpack.c.l.b16 %v5675
      %v5744 = vunpack.c.l.b16 %v5676
      %v5745 = vunpack.c.l.b16 %v5677
      %v5746 = vunpack.c.l.b16 %v5678
      %v5747 = vunpack.c.l.b16 %v5679
      %v5748 = vunpack.c.l.b16 %v5680
      %v5749 = vunpack.c.l.b16 %v5681
      %v5750 = vunpack.c.l.b16 %v5682
      %v5751 = vunpack.c.l.b16 %v5683
      %v5752 = vunpack.c.l.b16 %v5684
      %v5753 = vunpack.c.l.b16 %v5685
      %v5754 = vunpack.c.l.b16 %v5686
      %v5755 = vunpack.c.l.b16 %v5687
      %v5756 = vunpack.c.l.b16 %v5688
      %v5757 = vunpack.c.l.b16 %v5689
      %v5758 = vunpack.c.l.b16 %v5690
      %v5759 = vunpack.c.l.b16 %v5691
      %v5760 = vunpack.c.l.b16 %v5692
      %v5761 = vunpack.c.l.b16 %v5693
      %v5762 = vunpack.c.l.b16 %v5694
      %v5763 = vunpack.c.l.b16 %v5695
      %v5764 = vunpack.c.l.b16 %v5696
      %v5765 = vunpack.c.l.b16 %v5697
      %v5766 = vunpack.c.l.b16 %v5698
      %v5767 = vunpack.c.l.b16 %v5699
      %v5768 = vunpack.c.l.b16 %v5700
      %v5769 = vunpack.c.l.b16 %v5701
      %v5770 = vunpack.c.l.b16 %v5702
      %v5771 = vunpack.c.l.b16 %v5703
      %v5772 = vpack.c.b16 %v5740, %v5739
      %v5773 = vpack.c.b16 %v5742, %v5741
      %v5774 = vpack.c.b16 %v5744, %v5743
      %v5775 = vpack.c.b16 %v5746, %v5745
      %v5776 = vpack.c.b16 %v5748, %v5747
      %v5777 = vpack.c.b16 %v5750, %v5749
      %v5778 = vpack.c.b16 %v5752, %v5751
      %v5779 = vpack.c.b16 %v5754, %v5753
      %v5780 = vpack.c.b16 %v5756, %v5755
      %v5781 = vpack.c.b16 %v5758, %v5757
      %v5782 = vpack.c.b16 %v5760, %v5759
      %v5783 = vpack.c.b16 %v5762, %v5761
      %v5784 = vpack.c.b16 %v5764, %v5763
      %v5785 = vpack.c.b16 %v5766, %v5765
      %v5786 = vpack.c.b16 %v5768, %v5767
      %v5787 = vpack.c.b16 %v5770, %v5769
      %v5788 = vpack.c.b16 %v5771, %v5771
      %v5790 = vshrl.u32 %v5772, 16
      %v5792 = vshll.u32 %v5772, 16
      %v5794 = vrot.slane %v5792, 1
      %v5795 = vor.u32 %v5790, %v5794
      %v5797 = vshll.u32 %v5773, 16
      %v5799 = vrot.slane %v5797, 1
      %v5800 = vsel %vm3420, %v5795, %v5799
      %v5801 = vshrl.u32 %v5773, 16
      %v5803 = vor.u32 %v5801, %v5799
      %v5805 = vshll.u32 %v5774, 16
      %v5807 = vrot.slane %v5805, 1
      %v5808 = vsel %vm3420, %v5803, %v5807
      %v5809 = vshrl.u32 %v5774, 16
      %v5811 = vor.u32 %v5809, %v5807
      %v5813 = vshll.u32 %v5775, 16
      %v5815 = vrot.slane %v5813, 1
      %v5816 = vsel %vm3420, %v5811, %v5815
      %v5817 = vshrl.u32 %v5775, 16
      %v5819 = vor.u32 %v5817, %v5815
      %v5821 = vshll.u32 %v5776, 16
      %v5823 = vrot.slane %v5821, 1
      %v5824 = vsel %vm3420, %v5819, %v5823
      %v5825 = vshrl.u32 %v5776, 16
      %v5827 = vor.u32 %v5825, %v5823
      %v5829 = vshll.u32 %v5777, 16
      %v5831 = vrot.slane %v5829, 1
      %v5832 = vsel %vm3420, %v5827, %v5831
      %v5833 = vshrl.u32 %v5777, 16
      %v5835 = vor.u32 %v5833, %v5831
      %v5837 = vshll.u32 %v5778, 16
      %v5839 = vrot.slane %v5837, 1
      %v5840 = vsel %vm3420, %v5835, %v5839
      %v5841 = vshrl.u32 %v5778, 16
      %v5843 = vor.u32 %v5841, %v5839
      %v5845 = vshll.u32 %v5779, 16
      %v5847 = vrot.slane %v5845, 1
      %v5848 = vsel %vm3420, %v5843, %v5847
      %v5849 = vshrl.u32 %v5779, 16
      %v5851 = vor.u32 %v5849, %v5847
      %v5853 = vshll.u32 %v5780, 16
      %v5855 = vrot.slane %v5853, 1
      %v5856 = vsel %vm3420, %v5851, %v5855
      %v5857 = vshrl.u32 %v5780, 16
      %v5859 = vor.u32 %v5857, %v5855
      %v5861 = vshll.u32 %v5781, 16
      %v5863 = vrot.slane %v5861, 1
      %v5864 = vsel %vm3420, %v5859, %v5863
      %v5865 = vshrl.u32 %v5781, 16
      %v5867 = vor.u32 %v5865, %v5863
      %v5869 = vshll.u32 %v5782, 16
      %v5871 = vrot.slane %v5869, 1
      %v5872 = vsel %vm3420, %v5867, %v5871
      %v5873 = vshrl.u32 %v5782, 16
      %v5875 = vor.u32 %v5873, %v5871
      %v5877 = vshll.u32 %v5783, 16
      %v5879 = vrot.slane %v5877, 1
      %v5880 = vsel %vm3420, %v5875, %v5879
      %v5881 = vshrl.u32 %v5783, 16
      %v5883 = vor.u32 %v5881, %v5879
      %v5885 = vshll.u32 %v5784, 16
      %v5887 = vrot.slane %v5885, 1
      %v5888 = vsel %vm3420, %v5883, %v5887
      %v5889 = vshrl.u32 %v5784, 16
      %v5891 = vor.u32 %v5889, %v5887
      %v5893 = vshll.u32 %v5785, 16
      %v5895 = vrot.slane %v5893, 1
      %v5896 = vsel %vm3420, %v5891, %v5895
      %v5897 = vshrl.u32 %v5785, 16
      %v5899 = vor.u32 %v5897, %v5895
      %v5901 = vshll.u32 %v5786, 16
      %v5903 = vrot.slane %v5901, 1
      %v5904 = vsel %vm3420, %v5899, %v5903
      %v5905 = vshrl.u32 %v5786, 16
      %v5907 = vor.u32 %v5905, %v5903
      %v5909 = vshll.u32 %v5787, 16
      %v5911 = vrot.slane %v5909, 1
      %v5912 = vsel %vm3420, %v5907, %v5911
      %v5913 = vshrl.u32 %v5787, 16
      %v5915 = vor.u32 %v5913, %v5911
      %v5917 = vshll.u32 %v5788, 16
      %v5919 = vrot.slane %v5917, 1
      %v5920 = vsel %vm3420, %v5915, %v5919
      %v5922 = vsel %vm2070, %v5800, 0
      %v5925 = vsel %vm2070, %v5808, 0
      %v5928 = vsel %vm2070, %v5816, 0
      %v5931 = vsel %vm2070, %v5824, 0
      %v5934 = vsel %vm2070, %v5832, 0
      %v5937 = vsel %vm2070, %v5840, 0
      %v5940 = vsel %vm2070, %v5848, 0
      %v5943 = vsel %vm2070, %v5856, 0
      %v5946 = vsel %vm2070, %v5864, 0
      %v5949 = vsel %vm2070, %v5872, 0
      %v5952 = vsel %vm2070, %v5880, 0
      %v5955 = vsel %vm2070, %v5888, 0
      %v5958 = vsel %vm2070, %v5896, 0
      %v5961 = vsel %vm2070, %v5904, 0
      %v5964 = vsel %vm2070, %v5912, 0
      %v5967 = vsel %vm2070, %v5920, 0
      %v5970 = vsel %vm2119, %v5705, 0
      %5972 = vmatpush.bf16.msra.mxu0 0
      %5973 = vmatpush.bf16.msra.mxu0 0
      %5974 = vmatpush.bf16.msra.mxu0 0
      %5975 = vmatpush.bf16.msra.mxu0 0
      %5976 = vmatpush.bf16.msra.mxu0 0
      %5977 = vmatpush.bf16.msra.mxu0 0
      %5978 = vmatpush.bf16.msra.mxu0 0
      %5979 = vmatpush.bf16.msra.mxu0 %v5970
      %5980 = vmatmul.bf16.gmra.mxu0 %v5922
      %v5981 = vpop.f32.mrf.mxu0
      %v5982 = vadd.f32 0.0, %v5981
      %v5983 = vpop.f32.mrf.mxu0
      %v5984 = vadd.f32 0.0, %v5983
      %5985 = vmatmul.bf16.gmra.mxu0 %v5925
      %v5986 = vpop.f32.mrf.mxu0
      %v5987 = vadd.f32 0.0, %v5986
      %v5988 = vpop.f32.mrf.mxu0
      %v5989 = vadd.f32 0.0, %v5988
      %5990 = vmatmul.bf16.gmra.mxu0 %v5928
      %v5991 = vpop.f32.mrf.mxu0
      %v5992 = vadd.f32 0.0, %v5991
      %v5993 = vpop.f32.mrf.mxu0
      %v5994 = vadd.f32 0.0, %v5993
      %5995 = vmatmul.bf16.gmra.mxu0 %v5931
      %v5996 = vpop.f32.mrf.mxu0
      %v5997 = vadd.f32 0.0, %v5996
      %v5998 = vpop.f32.mrf.mxu0
      %v5999 = vadd.f32 0.0, %v5998
      %6000 = vmatmul.bf16.gmra.mxu0 %v5934
      %v6001 = vpop.f32.mrf.mxu0
      %v6002 = vadd.f32 0.0, %v6001
      %v6003 = vpop.f32.mrf.mxu0
      %v6004 = vadd.f32 0.0, %v6003
      %6005 = vmatmul.bf16.gmra.mxu0 %v5937
      %v6006 = vpop.f32.mrf.mxu0
      %v6007 = vadd.f32 0.0, %v6006
      %v6008 = vpop.f32.mrf.mxu0
      %v6009 = vadd.f32 0.0, %v6008
      %6010 = vmatmul.bf16.gmra.mxu0 %v5940
      %v6011 = vpop.f32.mrf.mxu0
      %v6012 = vadd.f32 0.0, %v6011
      %v6013 = vpop.f32.mrf.mxu0
      %v6014 = vadd.f32 0.0, %v6013
      %6015 = vmatmul.bf16.gmra.mxu0 %v5943
      %v6016 = vpop.f32.mrf.mxu0
      %v6017 = vadd.f32 0.0, %v6016
      %v6018 = vpop.f32.mrf.mxu0
      %v6019 = vadd.f32 0.0, %v6018
      %6020 = vmatmul.bf16.gmra.mxu0 %v5946
      %v6021 = vpop.f32.mrf.mxu0
      %v6022 = vadd.f32 0.0, %v6021
      %v6023 = vpop.f32.mrf.mxu0
      %v6024 = vadd.f32 0.0, %v6023
      %6025 = vmatmul.bf16.gmra.mxu0 %v5949
      %v6026 = vpop.f32.mrf.mxu0
      %v6027 = vadd.f32 0.0, %v6026
      %v6028 = vpop.f32.mrf.mxu0
      %v6029 = vadd.f32 0.0, %v6028
      %6030 = vmatmul.bf16.gmra.mxu0 %v5952
      %v6031 = vpop.f32.mrf.mxu0
      %v6032 = vadd.f32 0.0, %v6031
      %v6033 = vpop.f32.mrf.mxu0
      %v6034 = vadd.f32 0.0, %v6033
      %6035 = vmatmul.bf16.gmra.mxu0 %v5955
      %v6036 = vpop.f32.mrf.mxu0
      %v6037 = vadd.f32 0.0, %v6036
      %v6038 = vpop.f32.mrf.mxu0
      %v6039 = vadd.f32 0.0, %v6038
      %6040 = vmatmul.bf16.gmra.mxu0 %v5958
      %v6041 = vpop.f32.mrf.mxu0
      %v6042 = vadd.f32 0.0, %v6041
      %v6043 = vpop.f32.mrf.mxu0
      %v6044 = vadd.f32 0.0, %v6043
      %6045 = vmatmul.bf16.gmra.mxu0 %v5961
      %v6046 = vpop.f32.mrf.mxu0
      %v6047 = vadd.f32 0.0, %v6046
      %v6048 = vpop.f32.mrf.mxu0
      %v6049 = vadd.f32 0.0, %v6048
      %6050 = vmatmul.bf16.gmra.mxu0 %v5964
      %v6051 = vpop.f32.mrf.mxu0
      %v6052 = vadd.f32 0.0, %v6051
      %v6053 = vpop.f32.mrf.mxu0
      %v6054 = vadd.f32 0.0, %v6053
      %6055 = vmatmul.bf16.gmra.mxu0 %v5967
      %v6056 = vpop.f32.mrf.mxu0
      %v6057 = vadd.f32 0.0, %v6056
      %v6058 = vpop.f32.mrf.mxu0
      %v6059 = vadd.f32 0.0, %v6058
      %6060 = vdwg.mxu0
      %v6061 = vadd.f32 %v5606, %v5982
      %v6062 = vadd.f32 %v5607, %v5984
      %v6063 = vadd.f32 %v5608, %v5987
      %v6064 = vadd.f32 %v5609, %v5989
      %v6065 = vadd.f32 %v5610, %v5992
      %v6066 = vadd.f32 %v5611, %v5994
      %v6067 = vadd.f32 %v5612, %v5997
      %v6068 = vadd.f32 %v5613, %v5999
      %v6069 = vadd.f32 %v5614, %v6002
      %v6070 = vadd.f32 %v5615, %v6004
      %v6071 = vadd.f32 %v5616, %v6007
      %v6072 = vadd.f32 %v5617, %v6009
      %v6073 = vadd.f32 %v5618, %v6012
      %v6074 = vadd.f32 %v5619, %v6014
      %v6075 = vadd.f32 %v5620, %v6017
      %v6076 = vadd.f32 %v5621, %v6019
      %v6077 = vadd.f32 %v5622, %v6022
      %v6078 = vadd.f32 %v5623, %v6024
      %v6079 = vadd.f32 %v5624, %v6027
      %v6080 = vadd.f32 %v5625, %v6029
      %v6081 = vadd.f32 %v5626, %v6032
      %v6082 = vadd.f32 %v5627, %v6034
      %v6083 = vadd.f32 %v5628, %v6037
      %v6084 = vadd.f32 %v5629, %v6039
      %v6085 = vadd.f32 %v5630, %v6042
      %v6086 = vadd.f32 %v5631, %v6044
      %v6087 = vadd.f32 %v5632, %v6047
      %v6088 = vadd.f32 %v5633, %v6049
      %v6089 = vadd.f32 %v5634, %v6052
      %v6090 = vadd.f32 %v5635, %v6054
      %v6091 = vadd.f32 %v5636, %v6057
      %v6092 = vadd.f32 %v5637, %v6059
      %v6093 = vld [vmem:[%s5] sm:$0x1]
      %v6095 = vperm.slane %v6093, 0
      %v6097 = vmul.f32 %v6061, %v6095
      %v6098 = vmul.f32 %v6062, %v6095
      %v6099 = vmul.f32 %v6063, %v6095
      %v6100 = vmul.f32 %v6064, %v6095
      %v6101 = vmul.f32 %v6065, %v6095
      %v6102 = vmul.f32 %v6066, %v6095
      %v6103 = vmul.f32 %v6067, %v6095
      %v6104 = vmul.f32 %v6068, %v6095
      %v6105 = vmul.f32 %v6069, %v6095
      %v6106 = vmul.f32 %v6070, %v6095
      %v6107 = vmul.f32 %v6071, %v6095
      %v6108 = vmul.f32 %v6072, %v6095
      %v6109 = vmul.f32 %v6073, %v6095
      %v6110 = vmul.f32 %v6074, %v6095
      %v6111 = vmul.f32 %v6075, %v6095
      %v6112 = vmul.f32 %v6076, %v6095
      %v6113 = vmul.f32 %v6077, %v6095
      %v6114 = vmul.f32 %v6078, %v6095
      %v6115 = vmul.f32 %v6079, %v6095
      %v6116 = vmul.f32 %v6080, %v6095
      %v6117 = vmul.f32 %v6081, %v6095
      %v6118 = vmul.f32 %v6082, %v6095
      %v6119 = vmul.f32 %v6083, %v6095
      %v6120 = vmul.f32 %v6084, %v6095
      %v6121 = vmul.f32 %v6085, %v6095
      %v6122 = vmul.f32 %v6086, %v6095
      %v6123 = vmul.f32 %v6087, %v6095
      %v6124 = vmul.f32 %v6088, %v6095
      %v6125 = vmul.f32 %v6089, %v6095
      %v6126 = vmul.f32 %v6090, %v6095
      %v6127 = vmul.f32 %v6091, %v6095
      %v6128 = vmul.f32 %v6092, %v6095
      %v6129 = vld [vmem:[%s6] sm:$0x1]
      %v6131 = vperm.slane %v6129, 0
      %v6133 = vadd.f32 %v6097, %v6131
      %v6134 = vadd.f32 %v6098, %v6131
      %v6135 = vadd.f32 %v6099, %v6131
      %v6136 = vadd.f32 %v6100, %v6131
      %v6137 = vadd.f32 %v6101, %v6131
      %v6138 = vadd.f32 %v6102, %v6131
      %v6139 = vadd.f32 %v6103, %v6131
      %v6140 = vadd.f32 %v6104, %v6131
      %v6141 = vadd.f32 %v6105, %v6131
      %v6142 = vadd.f32 %v6106, %v6131
      %v6143 = vadd.f32 %v6107, %v6131
      %v6144 = vadd.f32 %v6108, %v6131
      %v6145 = vadd.f32 %v6109, %v6131
      %v6146 = vadd.f32 %v6110, %v6131
      %v6147 = vadd.f32 %v6111, %v6131
      %v6148 = vadd.f32 %v6112, %v6131
      %v6149 = vadd.f32 %v6113, %v6131
      %v6150 = vadd.f32 %v6114, %v6131
      %v6151 = vadd.f32 %v6115, %v6131
      %v6152 = vadd.f32 %v6116, %v6131
      %v6153 = vadd.f32 %v6117, %v6131
      %v6154 = vadd.f32 %v6118, %v6131
      %v6155 = vadd.f32 %v6119, %v6131
      %v6156 = vadd.f32 %v6120, %v6131
      %v6157 = vadd.f32 %v6121, %v6131
      %v6158 = vadd.f32 %v6122, %v6131
      %v6159 = vadd.f32 %v6123, %v6131
      %v6160 = vadd.f32 %v6124, %v6131
      %v6161 = vadd.f32 %v6125, %v6131
      %v6162 = vadd.f32 %v6126, %v6131
      %v6163 = vadd.f32 %v6127, %v6131
      %v6164 = vadd.f32 %v6128, %v6131
      %v6165 = vmax.f32 %v6133, 0.0
      %v6166 = vmax.f32 %v6134, 0.0
      %v6167 = vmax.f32 %v6135, 0.0
      %v6168 = vmax.f32 %v6136, 0.0
      %v6169 = vmax.f32 %v6137, 0.0
      %v6170 = vmax.f32 %v6138, 0.0
      %v6171 = vmax.f32 %v6139, 0.0
      %v6172 = vmax.f32 %v6140, 0.0
      %v6173 = vmax.f32 %v6141, 0.0
      %v6174 = vmax.f32 %v6142, 0.0
      %v6175 = vmax.f32 %v6143, 0.0
      %v6176 = vmax.f32 %v6144, 0.0
      %v6177 = vmax.f32 %v6145, 0.0
      %v6178 = vmax.f32 %v6146, 0.0
      %v6179 = vmax.f32 %v6147, 0.0
      %v6180 = vmax.f32 %v6148, 0.0
      %v6181 = vmax.f32 %v6149, 0.0
      %v6182 = vmax.f32 %v6150, 0.0
      %v6183 = vmax.f32 %v6151, 0.0
      %v6184 = vmax.f32 %v6152, 0.0
      %v6185 = vmax.f32 %v6153, 0.0
      %v6186 = vmax.f32 %v6154, 0.0
      %v6187 = vmax.f32 %v6155, 0.0
      %v6188 = vmax.f32 %v6156, 0.0
      %v6189 = vmax.f32 %v6157, 0.0
      %v6190 = vmax.f32 %v6158, 0.0
      %v6191 = vmax.f32 %v6159, 0.0
      %v6192 = vmax.f32 %v6160, 0.0
      %v6193 = vmax.f32 %v6161, 0.0
      %v6194 = vmax.f32 %v6162, 0.0
      %v6195 = vmax.f32 %v6163, 0.0
      %v6196 = vmax.f32 %v6164, 0.0
      %v6197 = vpack.c.bf16 %v6165, %v6165
      %v6198 = vpack.c.bf16 %v6166, %v6166
      %v6199 = vpack.c.bf16 %v6167, %v6167
      %v6200 = vpack.c.bf16 %v6168, %v6168
      %v6201 = vpack.c.bf16 %v6169, %v6169
      %v6202 = vpack.c.bf16 %v6170, %v6170
      %v6203 = vpack.c.bf16 %v6171, %v6171
      %v6204 = vpack.c.bf16 %v6172, %v6172
      %v6205 = vpack.c.bf16 %v6173, %v6173
      %v6206 = vpack.c.bf16 %v6174, %v6174
      %v6207 = vpack.c.bf16 %v6175, %v6175
      %v6208 = vpack.c.bf16 %v6176, %v6176
      %v6209 = vpack.c.bf16 %v6177, %v6177
      %v6210 = vpack.c.bf16 %v6178, %v6178
      %v6211 = vpack.c.bf16 %v6179, %v6179
      %v6212 = vpack.c.bf16 %v6180, %v6180
      %v6213 = vpack.c.bf16 %v6181, %v6181
      %v6214 = vpack.c.bf16 %v6182, %v6182
      %v6215 = vpack.c.bf16 %v6183, %v6183
      %v6216 = vpack.c.bf16 %v6184, %v6184
      %v6217 = vpack.c.bf16 %v6185, %v6185
      %v6218 = vpack.c.bf16 %v6186, %v6186
      %v6219 = vpack.c.bf16 %v6187, %v6187
      %v6220 = vpack.c.bf16 %v6188, %v6188
      %v6221 = vpack.c.bf16 %v6189, %v6189
      %v6222 = vpack.c.bf16 %v6190, %v6190
      %v6223 = vpack.c.bf16 %v6191, %v6191
      %v6224 = vpack.c.bf16 %v6192, %v6192
      %v6225 = vpack.c.bf16 %v6193, %v6193
      %v6226 = vpack.c.bf16 %v6194, %v6194
      %v6227 = vpack.c.bf16 %v6195, %v6195
      %v6228 = vpack.c.bf16 %v6196, %v6196
      %6229 = vst.msk [vmem:[%s311] sm:$0xf] %vm688, %v6197
      %6230 = vst.msk [vmem:[%s311 + $0x4] sm:$0xf] %vm688, %v6198
      %6231 = vst.msk [vmem:[%s311 + $0x8] sm:$0xf] %vm688, %v6199
      %6232 = vst.msk [vmem:[%s311 + $0xc] sm:$0xf] %vm688, %v6200
      %6233 = vst.msk [vmem:[%s311 + $0x10] sm:$0xf] %vm688, %v6201
      %6234 = vst.msk [vmem:[%s311 + $0x14] sm:$0xf] %vm688, %v6202
      %6235 = vst.msk [vmem:[%s311 + $0x18] sm:$0xf] %vm688, %v6203
      %6236 = vst.msk [vmem:[%s311 + $0x1c] sm:$0xf] %vm688, %v6204
      %6237 = vst.msk [vmem:[%s311 + $0x20] sm:$0xf] %vm688, %v6205
      %6238 = vst.msk [vmem:[%s311 + $0x24] sm:$0xf] %vm688, %v6206
      %6239 = vst.msk [vmem:[%s311 + $0x28] sm:$0xf] %vm688, %v6207
      %6240 = vst.msk [vmem:[%s311 + $0x2c] sm:$0xf] %vm688, %v6208
      %6241 = vst.msk [vmem:[%s311 + $0x30] sm:$0xf] %vm688, %v6209
      %6242 = vst.msk [vmem:[%s311 + $0x34] sm:$0xf] %vm688, %v6210
      %6243 = vst.msk [vmem:[%s311 + $0x38] sm:$0xf] %vm688, %v6211
      %6244 = vst.msk [vmem:[%s311 + $0x3c] sm:$0xf] %vm688, %v6212
      %6245 = vst.msk [vmem:[%s311 + $0x40] sm:$0xf] %vm688, %v6213
      %6246 = vst.msk [vmem:[%s311 + $0x44] sm:$0xf] %vm688, %v6214
      %6247 = vst.msk [vmem:[%s311 + $0x48] sm:$0xf] %vm688, %v6215
      %6248 = vst.msk [vmem:[%s311 + $0x4c] sm:$0xf] %vm688, %v6216
      %6249 = vst.msk [vmem:[%s311 + $0x50] sm:$0xf] %vm688, %v6217
      %6250 = vst.msk [vmem:[%s311 + $0x54] sm:$0xf] %vm688, %v6218
      %6251 = vst.msk [vmem:[%s311 + $0x58] sm:$0xf] %vm688, %v6219
      %6252 = vst.msk [vmem:[%s311 + $0x5c] sm:$0xf] %vm688, %v6220
      %6253 = vst.msk [vmem:[%s311 + $0x60] sm:$0xf] %vm688, %v6221
      %6254 = vst.msk [vmem:[%s311 + $0x64] sm:$0xf] %vm688, %v6222
      %6255 = vst.msk [vmem:[%s311 + $0x68] sm:$0xf] %vm688, %v6223
      %6256 = vst.msk [vmem:[%s311 + $0x6c] sm:$0xf] %vm688, %v6224
      %6257 = vst.msk [vmem:[%s311 + $0x70] sm:$0xf] %vm688, %v6225
      %6258 = vst.msk [vmem:[%s311 + $0x74] sm:$0xf] %vm688, %v6226
      %6259 = vst.msk [vmem:[%s311 + $0x78] sm:$0xf] %vm688, %v6227
      %6260 = vst.msk [vmem:[%s311 + $0x7c] sm:$0xf] %vm688, %v6228
      %v6261 = vsel %vm2070, %v6165, 0.0
      %v6262 = vsel %vm2070, %v6166, 0.0
      %v6263 = vadd.f32 %v6261, %v6262
      %v6264 = vsel %vm2070, %v6167, 0.0
      %v6265 = vadd.f32 %v6263, %v6264
      %v6266 = vsel %vm2070, %v6168, 0.0
      %v6267 = vadd.f32 %v6265, %v6266
      %v6268 = vsel %vm2070, %v6169, 0.0
      %v6269 = vadd.f32 %v6267, %v6268
      %v6270 = vsel %vm2070, %v6170, 0.0
      %v6271 = vadd.f32 %v6269, %v6270
      %v6272 = vsel %vm2070, %v6171, 0.0
      %v6273 = vadd.f32 %v6271, %v6272
      %v6274 = vsel %vm2070, %v6172, 0.0
      %v6275 = vadd.f32 %v6273, %v6274
      %v6276 = vsel %vm2070, %v6173, 0.0
      %v6277 = vadd.f32 %v6275, %v6276
      %v6278 = vsel %vm2070, %v6174, 0.0
      %v6279 = vadd.f32 %v6277, %v6278
      %v6280 = vsel %vm2070, %v6175, 0.0
      %v6281 = vadd.f32 %v6279, %v6280
      %v6282 = vsel %vm2070, %v6176, 0.0
      %v6283 = vadd.f32 %v6281, %v6282
      %v6284 = vsel %vm2070, %v6177, 0.0
      %v6285 = vadd.f32 %v6283, %v6284
      %v6286 = vsel %vm2070, %v6178, 0.0
      %v6287 = vadd.f32 %v6285, %v6286
      %v6288 = vsel %vm2070, %v6179, 0.0
      %v6289 = vadd.f32 %v6287, %v6288
      %v6290 = vsel %vm2070, %v6180, 0.0
      %v6291 = vadd.f32 %v6289, %v6290
      %v6292 = vsel %vm2070, %v6181, 0.0
      %v6293 = vadd.f32 %v6291, %v6292
      %v6294 = vsel %vm2070, %v6182, 0.0
      %v6295 = vadd.f32 %v6293, %v6294
      %v6296 = vsel %vm2070, %v6183, 0.0
      %v6297 = vadd.f32 %v6295, %v6296
      %v6298 = vsel %vm2070, %v6184, 0.0
      %v6299 = vadd.f32 %v6297, %v6298
      %v6300 = vsel %vm2070, %v6185, 0.0
      %v6301 = vadd.f32 %v6299, %v6300
      %v6302 = vsel %vm2070, %v6186, 0.0
      %v6303 = vadd.f32 %v6301, %v6302
      %v6304 = vsel %vm2070, %v6187, 0.0
      %v6305 = vadd.f32 %v6303, %v6304
      %v6306 = vsel %vm2070, %v6188, 0.0
      %v6307 = vadd.f32 %v6305, %v6306
      %v6308 = vsel %vm2070, %v6189, 0.0
      %v6309 = vadd.f32 %v6307, %v6308
      %v6310 = vsel %vm2070, %v6190, 0.0
      %v6311 = vadd.f32 %v6309, %v6310
      %v6312 = vsel %vm2070, %v6191, 0.0
      %v6313 = vadd.f32 %v6311, %v6312
      %v6314 = vsel %vm2070, %v6192, 0.0
      %v6315 = vadd.f32 %v6313, %v6314
      %v6316 = vsel %vm2070, %v6193, 0.0
      %v6317 = vadd.f32 %v6315, %v6316
      %v6318 = vsel %vm2070, %v6194, 0.0
      %v6319 = vadd.f32 %v6317, %v6318
      %v6320 = vsel %vm2070, %v6195, 0.0
      %v6321 = vadd.f32 %v6319, %v6320
      %v6322 = vsel %vm2070, %v6196, 0.0
      %v6323 = vadd.f32 %v6321, %v6322
      %v6324 = vrot.slane %v6323, 4
      %v6325 = vadd.f32 %v6323, %v6324
      %v6326 = vrot.slane %v6325, 2
      %v6327 = vadd.f32 %v6325, %v6326
      %v6328 = vrot.slane %v6327, 1
      %v6329 = vadd.f32 %v6327, %v6328
      %vm6330 = vcmask 57344
      %6331 = vst.msk [vmem:[%s314] sm:$0x1] %vm6330, %v6329
      %p6332 = scmp.lt.s32.totalorder %s20, 1
      %s6333 = scalar_select %p6332, %s20, 1
      %s6334 = smul.addr %s6333, 32
      %s6335 = smul.addr %s6334, 4
      %s6336 = scalar_lea.vmem %s7, %s6335
      %p6337 = scmp.lt.s32.totalorder %s20, 1
      %s6338 = scalar_select %p6337, %s20, 1
      %s6339 = scalar_lea.vmem %s8, %s6338
      // Predicated region
      $region49: #{bottleneck_forward.2} parent=47 // pred_check
        %p6340 = pneg %p190
      $region50: #{bottleneck_forward.2} parent=47 // pred_check_branch
        %6342 = sbr.rel (%p6340) target = $region52
      $region51: #{bottleneck_forward.2} parent=47 // pred_region
        _
      $region52: #{bottleneck_forward.2} parent=47 // pred_fallthru
        _
      // Predicated region
      $region53: #{bottleneck_forward.2} parent=47 // pred_check
        %p6343 = pneg %p216
      $region54: #{bottleneck_forward.2} parent=47 // pred_check_branch
        %6345 = sbr.rel (%p6343) target = $region56
      $region55: #{bottleneck_forward.2} parent=47 // pred_region
        _
      $region56: #{bottleneck_forward.2} parent=47 // pred_fallthru
        _
    $region48: #{bottleneck_forward.2} parent=5 // pred_fallthru
      _
    %p6346 = scmp.le.s32.totalorder 2, %s15
    // Predicated region
    $region57: #{bottleneck_forward.2} parent=5 // pred_check
      %p6347 = pneg %p6346
    $region58: #{bottleneck_forward.2} parent=5 // pred_check_branch
      %6349 = sbr.rel (%p6347) target = $region60
    $region59: #{bottleneck_forward.2} parent=5 // pred_region
      %s6350 = ssub.s32 %s15, 2
      // Predicated region
      $region61: #{bottleneck_forward.2} parent=59 // pred_check
        %p6351 = pneg %p196
      $region62: #{bottleneck_forward.2} parent=59 // pred_check_branch
        %6353 = sbr.rel (%p6351) target = $region64
      $region63: #{bottleneck_forward.2} parent=59 // pred_region
        %p6354 = scmp.lt.s32.totalorder %s21, 1
        %s6355 = scalar_select %p6354, %s21, 1
        %s6356 = smul.addr %s6355, 32
        %s6357 = smul.addr %s6356, 4
        %s6358 = scalar_lea.vmem %s7, %s6357
      $region64: #{bottleneck_forward.2} parent=59 // pred_fallthru
        _
      // Predicated region
      $region65: #{bottleneck_forward.2} parent=59 // pred_check
        %p6359 = pneg %p222
      $region66: #{bottleneck_forward.2} parent=59 // pred_check_branch
        %6361 = sbr.rel (%p6359) target = $region68
      $region67: #{bottleneck_forward.2} parent=59 // pred_region
        %p6362 = scmp.lt.s32.totalorder %s21, 1
        %s6363 = scalar_select %p6362, %s21, 1
        %s6364 = scalar_lea.vmem %s8, %s6363
      $region68: #{bottleneck_forward.2} parent=59 // pred_fallthru
        _
    $region60: #{bottleneck_forward.2} parent=5 // pred_fallthru
      _
  $region6: #{bottleneck_forward.2} parent=0 // loop_footer
    %s19 = sadd.s32 1, %s15
  $region7: #{bottleneck_forward.2} parent=0 // loop_footer_branch
    %14 = sbr.rel target = $region3
  $region8: #{bottleneck_forward.2} parent=0 // loop_exit
    _

</llo_original>
